<compile_context>
chip_gen: v7x
topology: tpu7x:2x2x1
jax: 0.10.0
libtpu: 0.0.40
codegen_flags: <defaults>
</compile_context>

<pallas_src>
import jax
import jax.numpy as jnp
from jax.experimental import pallas as pl
from jax.experimental.pallas import tpu as pltpu

_DIMS = (28 * 28, 512, 256, 128, 64, 10)   # logical (PyTorch) layer widths
_PAD_H4 = 128           # lane-dense padded width of the 64-wide hidden layer
_PAD_OUT = 128          # lane-dense padded width of the final (10-wide) layer
_NEG_INF = -1e30        # pad bias so padded logits contribute exp(.) == 0 (f32 only)


def _round_up(n, m):
    return ((n + m - 1) // m) * m


def _pick_tile(B, tile_b):
    """Batch tile: big enough to fill the MXU M dim, small enough to keep >=4 grid
    steps at moderate batch (>=2 per TensorCore under v7x megacore)."""
    tb = tile_b
    while tb > 128 and pl.cdiv(B, tb) < 4:
        tb //= 2
    return min(tb, max(_round_up(B, 8), 8))


def _mlp_kernel(x_ref,
                w1_ref, b1_ref, w2_ref, b2_ref, w3_ref, b3_ref,
                w4_ref, b4_ref, w5_ref, b5_ref,
                o_ref):
    # In-kernel f32 -> bf16 cast (hidden under the layer-1 matmul).
    h = x_ref[...].astype(jnp.bfloat16)                           # (tb, 784) bf16
    for w_ref, b_ref in ((w1_ref, b1_ref), (w2_ref, b2_ref),
                         (w3_ref, b3_ref), (w4_ref, b4_ref)):
        # bf16 MXU matmul, f32 accumulation; bias/ReLU in f32
        z = jnp.dot(h, w_ref[...], preferred_element_type=jnp.float32) + b_ref[...]
        h = jnp.maximum(z, 0.0).astype(jnp.bfloat16)              # ReLU (+ dropout = identity)

    # final layer, padded to 128 lanes (padded bias = -1e30)
    z = jnp.dot(h, w5_ref[...], preferred_element_type=jnp.float32) + b5_ref[...]  # (tb, 128) f32

    # numerically stable log_softmax along the feature axis (f32!);
    # padded lanes sit at -1e30 so exp(.) underflows cleanly to 0.
    m = jnp.max(z, axis=1, keepdims=True)
    lse = m + jnp.log(jnp.sum(jnp.exp(z - m), axis=1, keepdims=True))
    o_ref[...] = (z - lse).astype(o_ref.dtype)


def classifier_forward(x, prepared, *, tile_b=512):
    """x: (B, 784) float32.  prepared: output of prepare_params().  Returns (B, 10) log-probs."""
    B = x.shape[0]
    tb = _pick_tile(B, tile_b)
    Bp = _round_up(B, tb)

    xp = x
    if Bp != B:
        xp = jnp.pad(x, ((0, Bp - B), (0, 0)))

    weights_biases = []
    in_specs = [pl.BlockSpec((tb, _DIMS[0]), lambda i: (i, 0))]   # x: f32, tiled over batch
    for k in range(1, 6):
        w = prepared[f"w{k}"]
        b = prepared[f"b{k}"]
        weights_biases += [w, b]
        # constant block index -> weights/biases stay VMEM-resident across grid steps
        in_specs += [pl.BlockSpec(w.shape, lambda i: (0, 0)),
                     pl.BlockSpec(b.shape, lambda i: (0, 0))]

    # advisory cost estimate (padded layer widths)
    kdims = (_DIMS[0], _DIMS[1], _DIMS[2], _DIMS[3], _PAD_H4, _PAD_OUT)
    flops = 2 * Bp * sum(di * do for di, do in zip(kdims[:-1], kdims[1:]))
    bytes_accessed = (sum(int(a.size) * a.dtype.itemsize for a in weights_biases)
                      + int(xp.size) * 4 + Bp * _PAD_OUT * 4)
    cost = pl.CostEstimate(flops=flops,
                           transcendentals=Bp * (_PAD_OUT + 1),
                           bytes_accessed=bytes_accessed)

    out = pl.pallas_call(
        _mlp_kernel,
        out_shape=jax.ShapeDtypeStruct((Bp, _PAD_OUT), jnp.float32),
        grid=(Bp // tb,),
        in_specs=in_specs,
        out_specs=pl.BlockSpec((tb, _PAD_OUT), lambda i: (i, 0)),
        compiler_params=pltpu.CompilerParams(
            dimension_semantics=("parallel",),
            vmem_limit_bytes=32 << 20),
        cost_estimate=cost,
    )(xp, *weights_biases)

    # TODO(synk): at large B consider returning the padded (Bp, 128) buffer (or bf16
    # log-probs) and slicing at the consumer to avoid this extra XLA slice pass.
    return out[:B, :_DIMS[-1]]


def init_params(key):
    """Deterministic synthetic init matching nn.Linear shapes (stored transposed), f32."""
    params = {}
    keys = jax.random.split(key, len(_DIMS) - 1)
    for i, (d_in, d_out) in enumerate(zip(_DIMS[:-1], _DIMS[1:]), start=1):
        kw, kb = jax.random.split(keys[i - 1])
        bound = 1.0 / jnp.sqrt(d_in)
        params[f"w{i}"] = jax.random.uniform(kw, (d_in, d_out), jnp.float32, -bound, bound)
        params[f"b{i}"] = jax.random.uniform(kb, (1, d_out), jnp.float32, -bound, bound)
    return params


def prepare_params(params):
    """Cast weights to bf16 (biases stay f32) and pad layers 4/5 to lane-dense widths."""
    prep = {}
    for k in (1, 2, 3):
        prep[f"w{k}"] = params[f"w{k}"].astype(jnp.bfloat16)
        prep[f"b{k}"] = params[f"b{k}"].astype(jnp.float32)

    # layer 4: pad output 64 -> 128 with zeros (ReLU keeps padded lanes at exactly 0)
    w4 = params["w4"].astype(jnp.bfloat16)            # (128, 64)
    b4 = params["b4"].astype(jnp.float32)             # (1, 64)
    d4_in, d4_out = w4.shape
    prep["w4"] = jnp.zeros((d4_in, _PAD_H4), jnp.bfloat16).at[:, :d4_out].set(w4)
    prep["b4"] = jnp.zeros((1, _PAD_H4), jnp.float32).at[:, :d4_out].set(b4)

    # layer 5: pad input rows 64 -> 128 with zeros (match padded h4) and output
    # cols 10 -> 128; padded bias = -1e30 so padded logits vanish in the f32 softmax.
    w5 = params["w5"].astype(jnp.bfloat16)            # (64, 10)
    b5 = params["b5"].astype(jnp.float32)             # (1, 10)
    d5_in, d5_out = w5.shape
    prep["w5"] = jnp.zeros((_PAD_H4, _PAD_OUT), jnp.bfloat16).at[:d5_in, :d5_out].set(w5)
    prep["b5"] = jnp.full((1, _PAD_OUT), _NEG_INF, jnp.float32).at[:, :d5_out].set(b5)
    return prep


def reference_forward(x, prepared):
    """Pure-JAX reference using the same bf16/f32 mixed precision as the kernel."""
    h = x.astype(jnp.bfloat16)
    for k in range(1, 5):
        z = jnp.dot(h, prepared[f"w{k}"], preferred_element_type=jnp.float32) + prepared[f"b{k}"]
        h = jnp.maximum(z, 0.0).astype(jnp.bfloat16)
    z = jnp.dot(h, prepared["w5"], preferred_element_type=jnp.float32) + prepared["b5"]
    return jax.nn.log_softmax(z, axis=1)[:, :_DIMS[-1]]


if __name__ == "__main__":
    key = jax.random.PRNGKey(0)
    k_params, k_x = jax.random.split(key)

    params = init_params(k_params)
    prepared = prepare_params(params)

    # B=256 -> tile_b adapts to 128 -> 2 grid steps (exercises pipelining / megacore).
    B = 256
    x = jax.random.normal(k_x, (B, 28 * 28), dtype=jnp.float32)

    out = jax.block_until_ready(classifier_forward(x, prepared))
    assert out.shape == (B, 10)

    # log_softmax rows must sum (in prob space) to 1
    row_sums = jnp.sum(jnp.exp(out), axis=1)
    assert bool(jnp.all(jnp.abs(row_sums - 1.0) < 1e-4))

    # match pure-JAX reference with the same precision recipe
    ref = reference_forward(x, prepared)
    assert bool(jnp.max(jnp.abs(out - ref)) < 5e-2)

    print("KERNEL_OK")
</pallas_src>

<mosaic_0001>
module attributes {stable_mosaic.version = 11 : i64} {
  func.func @_mlp_kernel(%arg0: i32, %arg1: memref<128x784xf32, #tpu.memory_space<vmem>>, %arg2: memref<784x512xbf16, #tpu.memory_space<vmem>>, %arg3: memref<1x512xf32, #tpu.memory_space<vmem>>, %arg4: memref<512x256xbf16, #tpu.memory_space<vmem>>, %arg5: memref<1x256xf32, #tpu.memory_space<vmem>>, %arg6: memref<256x128xbf16, #tpu.memory_space<vmem>>, %arg7: memref<1x128xf32, #tpu.memory_space<vmem>>, %arg8: memref<128x128xbf16, #tpu.memory_space<vmem>>, %arg9: memref<1x128xf32, #tpu.memory_space<vmem>>, %arg10: memref<128x128xbf16, #tpu.memory_space<vmem>>, %arg11: memref<1x128xf32, #tpu.memory_space<vmem>>, %arg12: memref<128x128xf32, #tpu.memory_space<vmem>>) attributes {dimension_semantics = [#tpu.dimension_semantics<parallel>], iteration_bounds = array<i64: 2>, scalar_prefetch = 0 : i64, scratch_operands = 0 : i64, tpu.core_type = #tpu.core_type<tc>, window_params = [{transform_indices = @transform_0, window_bounds = array<i64: 128, 784>}, {pipeline_mode = #tpu.pipeline_mode<synchronous>, transform_indices = @transform_1, window_bounds = array<i64: 784, 512>}, {pipeline_mode = #tpu.pipeline_mode<synchronous>, transform_indices = @transform_2, window_bounds = array<i64: 1, 512>}, {pipeline_mode = #tpu.pipeline_mode<synchronous>, transform_indices = @transform_3, window_bounds = array<i64: 512, 256>}, {pipeline_mode = #tpu.pipeline_mode<synchronous>, transform_indices = @transform_4, window_bounds = array<i64: 1, 256>}, {pipeline_mode = #tpu.pipeline_mode<synchronous>, transform_indices = @transform_5, window_bounds = array<i64: 256, 128>}, {pipeline_mode = #tpu.pipeline_mode<synchronous>, transform_indices = @transform_6, window_bounds = array<i64: 1, 128>}, {pipeline_mode = #tpu.pipeline_mode<synchronous>, transform_indices = @transform_7, window_bounds = array<i64: 128, 128>}, {pipeline_mode = #tpu.pipeline_mode<synchronous>, transform_indices = @transform_8, window_bounds = array<i64: 1, 128>}, {pipeline_mode = #tpu.pipeline_mode<synchronous>, transform_indices = @transform_9, window_bounds = array<i64: 128, 128>}, {pipeline_mode = #tpu.pipeline_mode<synchronous>, transform_indices = @transform_10, window_bounds = array<i64: 1, 128>}, {transform_indices = @transform_11, window_bounds = array<i64: 128, 128>}]} {
    %c0 = arith.constant 0 : index
    %c0_0 = arith.constant 0 : index
    %0 = vector.load %arg1[%c0, %c0_0] : memref<128x784xf32, #tpu.memory_space<vmem>>, vector<128x784xf32>
    %1 = arith.truncf %0 : vector<128x784xf32> to vector<128x784xbf16>
    %c0_1 = arith.constant 0 : index
    %c0_2 = arith.constant 0 : index
    %2 = vector.load %arg2[%c0_1, %c0_2] : memref<784x512xbf16, #tpu.memory_space<vmem>>, vector<784x512xbf16>
    %cst = arith.constant dense<0.000000e+00> : vector<128x512xf32>
    %3 = tpu.matmul %1, %2, %cst {dimension_numbers = #tpu.dot_dimension_numbers<[1], [0], [0], [1], [0, 0, 1, 1], [], []>} : vector<128x784xbf16>, vector<784x512xbf16>, vector<128x512xf32> -> vector<128x512xf32>
    %c0_3 = arith.constant 0 : index
    %c0_4 = arith.constant 0 : index
    %4 = vector.load %arg3[%c0_3, %c0_4] : memref<1x512xf32, #tpu.memory_space<vmem>>, vector<1x512xf32>
    %5 = vector.broadcast %4 : vector<1x512xf32> to vector<128x512xf32>
    %6 = arith.addf %3, %5 : vector<128x512xf32>
    %cst_5 = arith.constant 0.000000e+00 : f32
    %7 = vector.broadcast %cst_5 : f32 to vector<128x512xf32>
    %8 = arith.maximumf %6, %7 : vector<128x512xf32>
    %9 = arith.truncf %8 : vector<128x512xf32> to vector<128x512xbf16>
    %c0_6 = arith.constant 0 : index
    %c0_7 = arith.constant 0 : index
    %10 = vector.load %arg4[%c0_6, %c0_7] : memref<512x256xbf16, #tpu.memory_space<vmem>>, vector<512x256xbf16>
    %cst_8 = arith.constant dense<0.000000e+00> : vector<128x256xf32>
    %11 = tpu.matmul %9, %10, %cst_8 {dimension_numbers = #tpu.dot_dimension_numbers<[1], [0], [0], [1], [0, 0, 1, 1], [], []>} : vector<128x512xbf16>, vector<512x256xbf16>, vector<128x256xf32> -> vector<128x256xf32>
    %c0_9 = arith.constant 0 : index
    %c0_10 = arith.constant 0 : index
    %12 = vector.load %arg5[%c0_9, %c0_10] : memref<1x256xf32, #tpu.memory_space<vmem>>, vector<1x256xf32>
    %13 = vector.broadcast %12 : vector<1x256xf32> to vector<128x256xf32>
    %14 = arith.addf %11, %13 : vector<128x256xf32>
    %cst_11 = arith.constant 0.000000e+00 : f32
    %15 = vector.broadcast %cst_11 : f32 to vector<128x256xf32>
    %16 = arith.maximumf %14, %15 : vector<128x256xf32>
    %17 = arith.truncf %16 : vector<128x256xf32> to vector<128x256xbf16>
    %c0_12 = arith.constant 0 : index
    %c0_13 = arith.constant 0 : index
    %18 = vector.load %arg6[%c0_12, %c0_13] : memref<256x128xbf16, #tpu.memory_space<vmem>>, vector<256x128xbf16>
    %cst_14 = arith.constant dense<0.000000e+00> : vector<128x128xf32>
    %19 = tpu.matmul %17, %18, %cst_14 {dimension_numbers = #tpu.dot_dimension_numbers<[1], [0], [0], [1], [0, 0, 1, 1], [], []>} : vector<128x256xbf16>, vector<256x128xbf16>, vector<128x128xf32> -> vector<128x128xf32>
    %c0_15 = arith.constant 0 : index
    %c0_16 = arith.constant 0 : index
    %20 = vector.load %arg7[%c0_15, %c0_16] : memref<1x128xf32, #tpu.memory_space<vmem>>, vector<1x128xf32>
    %21 = vector.broadcast %20 : vector<1x128xf32> to vector<128x128xf32>
    %22 = arith.addf %19, %21 : vector<128x128xf32>
    %cst_17 = arith.constant 0.000000e+00 : f32
    %23 = vector.broadcast %cst_17 : f32 to vector<128x128xf32>
    %24 = arith.maximumf %22, %23 : vector<128x128xf32>
    %25 = arith.truncf %24 : vector<128x128xf32> to vector<128x128xbf16>
    %c0_18 = arith.constant 0 : index
    %c0_19 = arith.constant 0 : index
    %26 = vector.load %arg8[%c0_18, %c0_19] : memref<128x128xbf16, #tpu.memory_space<vmem>>, vector<128x128xbf16>
    %cst_20 = arith.constant dense<0.000000e+00> : vector<128x128xf32>
    %27 = tpu.matmul %25, %26, %cst_20 {dimension_numbers = #tpu.dot_dimension_numbers<[1], [0], [0], [1], [0, 0, 1, 1], [], []>} : vector<128x128xbf16>, vector<128x128xbf16>, vector<128x128xf32> -> vector<128x128xf32>
    %c0_21 = arith.constant 0 : index
    %c0_22 = arith.constant 0 : index
    %28 = vector.load %arg9[%c0_21, %c0_22] : memref<1x128xf32, #tpu.memory_space<vmem>>, vector<1x128xf32>
    %29 = vector.broadcast %28 : vector<1x128xf32> to vector<128x128xf32>
    %30 = arith.addf %27, %29 : vector<128x128xf32>
    %cst_23 = arith.constant 0.000000e+00 : f32
    %31 = vector.broadcast %cst_23 : f32 to vector<128x128xf32>
    %32 = arith.maximumf %30, %31 : vector<128x128xf32>
    %33 = arith.truncf %32 : vector<128x128xf32> to vector<128x128xbf16>
    %c0_24 = arith.constant 0 : index
    %c0_25 = arith.constant 0 : index
    %34 = vector.load %arg10[%c0_24, %c0_25] : memref<128x128xbf16, #tpu.memory_space<vmem>>, vector<128x128xbf16>
    %cst_26 = arith.constant dense<0.000000e+00> : vector<128x128xf32>
    %35 = tpu.matmul %33, %34, %cst_26 {dimension_numbers = #tpu.dot_dimension_numbers<[1], [0], [0], [1], [0, 0, 1, 1], [], []>} : vector<128x128xbf16>, vector<128x128xbf16>, vector<128x128xf32> -> vector<128x128xf32>
    %c0_27 = arith.constant 0 : index
    %c0_28 = arith.constant 0 : index
    %36 = vector.load %arg11[%c0_27, %c0_28] : memref<1x128xf32, #tpu.memory_space<vmem>>, vector<1x128xf32>
    %37 = vector.broadcast %36 : vector<1x128xf32> to vector<128x128xf32>
    %38 = arith.addf %35, %37 : vector<128x128xf32>
    %cst_29 = arith.constant dense<0xFF800000> : vector<128xf32>
    %39 = vector.multi_reduction <maximumf>, %38, %cst_29 [1] : vector<128x128xf32> to vector<128xf32>
    %40 = vector.shape_cast %39 : vector<128xf32> to vector<128x1xf32>
    %41 = vector.broadcast %40 : vector<128x1xf32> to vector<128x128xf32>
    %42 = arith.subf %38, %41 : vector<128x128xf32>
    %43 = math.exp %42 : vector<128x128xf32>
    %cst_30 = arith.constant dense<0.000000e+00> : vector<128xf32>
    %44 = vector.multi_reduction <add>, %43, %cst_30 [1] : vector<128x128xf32> to vector<128xf32>
    %45 = vector.shape_cast %44 : vector<128xf32> to vector<128x1xf32>
    %46 = math.log %45 : vector<128x1xf32>
    %47 = arith.addf %40, %46 : vector<128x1xf32>
    %48 = vector.broadcast %47 : vector<128x1xf32> to vector<128x128xf32>
    %49 = arith.subf %38, %48 : vector<128x128xf32>
    %c0_31 = arith.constant 0 : index
    %c0_32 = arith.constant 0 : index
    %50 = vector.load %arg12[%c0_31, %c0_32] : memref<128x128xf32, #tpu.memory_space<vmem>>, vector<128x128xf32>
    tpu.vector_store %arg12[%c0_31, %c0_32], %49 {strides = array<i32>} : memref<128x128xf32, #tpu.memory_space<vmem>>, vector<128x128xf32>,
    return
  }
  func.func @transform_0(%arg0: i32) -> (i32, i32) {
    %c0_i32 = arith.constant 0 : i32
    %c0_i32_0 = arith.constant 0 : i32
    return %arg0, %c0_i32 : i32, i32
  }
  func.func @transform_1(%arg0: i32) -> (i32, i32) {
    %c0_i32 = arith.constant 0 : i32
    %c0_i32_0 = arith.constant 0 : i32
    %c0_i32_1 = arith.constant 0 : i32
    return %c0_i32, %c0_i32_0 : i32, i32
  }
  func.func @transform_2(%arg0: i32) -> (i32, i32) {
    %c0_i32 = arith.constant 0 : i32
    %c0_i32_0 = arith.constant 0 : i32
    %c0_i32_1 = arith.constant 0 : i32
    return %c0_i32, %c0_i32_0 : i32, i32
  }
  func.func @transform_3(%arg0: i32) -> (i32, i32) {
    %c0_i32 = arith.constant 0 : i32
    %c0_i32_0 = arith.constant 0 : i32
    %c0_i32_1 = arith.constant 0 : i32
    return %c0_i32, %c0_i32_0 : i32, i32
  }
  func.func @transform_4(%arg0: i32) -> (i32, i32) {
    %c0_i32 = arith.constant 0 : i32
    %c0_i32_0 = arith.constant 0 : i32
    %c0_i32_1 = arith.constant 0 : i32
    return %c0_i32, %c0_i32_0 : i32, i32
  }
  func.func @transform_5(%arg0: i32) -> (i32, i32) {
    %c0_i32 = arith.constant 0 : i32
    %c0_i32_0 = arith.constant 0 : i32
    %c0_i32_1 = arith.constant 0 : i32
    return %c0_i32, %c0_i32_0 : i32, i32
  }
  func.func @transform_6(%arg0: i32) -> (i32, i32) {
    %c0_i32 = arith.constant 0 : i32
    %c0_i32_0 = arith.constant 0 : i32
    %c0_i32_1 = arith.constant 0 : i32
    return %c0_i32, %c0_i32_0 : i32, i32
  }
  func.func @transform_7(%arg0: i32) -> (i32, i32) {
    %c0_i32 = arith.constant 0 : i32
    %c0_i32_0 = arith.constant 0 : i32
    %c0_i32_1 = arith.constant 0 : i32
    return %c0_i32, %c0_i32_0 : i32, i32
  }
  func.func @transform_8(%arg0: i32) -> (i32, i32) {
    %c0_i32 = arith.constant 0 : i32
    %c0_i32_0 = arith.constant 0 : i32
    %c0_i32_1 = arith.constant 0 : i32
    return %c0_i32, %c0_i32_0 : i32, i32
  }
  func.func @transform_9(%arg0: i32) -> (i32, i32) {
    %c0_i32 = arith.constant 0 : i32
    %c0_i32_0 = arith.constant 0 : i32
    %c0_i32_1 = arith.constant 0 : i32
    return %c0_i32, %c0_i32_0 : i32, i32
  }
  func.func @transform_10(%arg0: i32) -> (i32, i32) {
    %c0_i32 = arith.constant 0 : i32
    %c0_i32_0 = arith.constant 0 : i32
    %c0_i32_1 = arith.constant 0 : i32
    return %c0_i32, %c0_i32_0 : i32, i32
  }
  func.func @transform_11(%arg0: i32) -> (i32, i32) {
    %c0_i32 = arith.constant 0 : i32
    %c0_i32_0 = arith.constant 0 : i32
    return %arg0, %c0_i32 : i32, i32
  }
}

</mosaic_0001>

<llo_original>
// kernel: tpu_custom_call.1
$region0: #{tpu_custom_call.1}
  #allocation0 [shape = 'u32[]', space=smem, size = 0x4, offset = 0x4, fixed_abs, tag = 'smem constant byte address 0x4 - core index']
  #allocation1 [shape = 'u32[144,128]{1,0:T(1,128)}', space=vmem, size = 0x12000, scoped, tag = 'internal scratch']
  %s0 = inlined_call_operand.vmem [shape: f32[256,784], index: 0, kind: input, shape index: {}]
  %s1 = inlined_call_operand.vmem [shape: bf16[784,512], index: 1, kind: input, shape index: {}]
  %s2 = inlined_call_operand.vmem [shape: f32[1,512], index: 2, kind: input, shape index: {}]
  %s3 = inlined_call_operand.vmem [shape: bf16[512,256], index: 3, kind: input, shape index: {}]
  %s4 = inlined_call_operand.vmem [shape: f32[1,256], index: 4, kind: input, shape index: {}]
  %s5 = inlined_call_operand.vmem [shape: bf16[256,128], index: 5, kind: input, shape index: {}]
  %s6 = inlined_call_operand.vmem [shape: f32[1,128], index: 6, kind: input, shape index: {}]
  %s7 = inlined_call_operand.vmem [shape: bf16[128,128], index: 7, kind: input, shape index: {}]
  %s8 = inlined_call_operand.vmem [shape: f32[1,128], index: 8, kind: input, shape index: {}]
  %s9 = inlined_call_operand.vmem [shape: bf16[128,128], index: 9, kind: input, shape index: {}]
  %s10 = inlined_call_operand.vmem [shape: f32[1,128], index: 10, kind: input, shape index: {}]
  %s11 = inlined_call_operand.hbm [shape: f32[256,128], index: 11, kind: output, shape index: {}]
  %s12 = sld [smem:[#allocation0]]
  $region77: #{tpu_custom_call.1} parent=0
    _
  %s14 = ssub.s32 1, %s12
  %s15 = scalar_select 0, %s14, %s12
  $region1: #{tpu_custom_call.1} parent=0
    #allocation2 [shape = 'u8[131072]{0}', space=vmem, size = 0x20000, scoped, tag = 'output window, operand 0']
    #allocation3 [shape = 's32[2]{0}', space=sflag, size = 0x8, scoped, tag = 'scoped memory for tpu_custom_call.1']
    %16 = vsyncpa [#allocation3], 0
    %s17 = scalar_lea.sflag [#allocation3], 1
    %18 = vsyncpa %s17, 0
    loop: start=0, step=1, limit=4
    $region2: #{tpu_custom_call.1} parent=1 // loop_pre_header
      _
    $region3: #{tpu_custom_call.1} parent=1 // loop_header
      %s20 = sphi 0, %s24
      %p21 = scmp.ge.s32.totalorder %s20, 4
      %s30 = sphi 0, %s32
      %s33 = sphi 0, %s30
      %s34 = sphi 0, %s33
      %s50 = sphi 0, %s34
      %s54 = sphi 0, %s54
      %s56 = sphi 0, %s54
      %s57 = sphi 0, %s56
      %s71 = sphi 0, %s57
      %s75 = sphi 0, %s75
      %s77 = sphi 0, %s75
      %s78 = sphi 0, %s77
      %s92 = sphi 0, %s78
      %s96 = sphi 0, %s96
      %s98 = sphi 0, %s96
      %s99 = sphi 0, %s98
      %s113 = sphi 0, %s99
      %s117 = sphi 0, %s117
      %s119 = sphi 0, %s117
      %s120 = sphi 0, %s119
      %s134 = sphi 0, %s120
      %s138 = sphi 0, %s138
      %s140 = sphi 0, %s138
      %s141 = sphi 0, %s140
      %s155 = sphi 0, %s141
      %s159 = sphi 0, %s159
      %s161 = sphi 0, %s159
      %s162 = sphi 0, %s161
      %s176 = sphi 0, %s162
      %s180 = sphi 0, %s180
      %s182 = sphi 0, %s180
      %s183 = sphi 0, %s182
      %s197 = sphi 0, %s183
      %s201 = sphi 0, %s201
      %s203 = sphi 0, %s201
      %s204 = sphi 0, %s203
      %s218 = sphi 0, %s204
      %s222 = sphi 0, %s222
      %s224 = sphi 0, %s222
      %s225 = sphi 0, %s224
      %s239 = sphi 0, %s225
      %s243 = sphi 0, %s243
      %s245 = sphi 0, %s243
      %s246 = sphi 0, %s245
      %s260 = sphi 0, %s246
      %s266 = sphi 0, %s268
      %s269 = sphi 0, %s266
      %s270 = sphi 0, %s269
      %s286 = sphi 0, %s270
    $region4: #{tpu_custom_call.1} parent=1 // loop_header_branch
      %23 = sbr.rel (%p21) target = $region8
    $region5: #{tpu_custom_call.1} parent=1 // loop_body
      %s25 = ssub.s32 %s20, 1
      %s26 = ssub.s32 %s20, 2
      %s27 = sadd.s32 %s20, 1
      %s28 = ssub.s32 %s20, %s27
      %p29 = scmp.eq.s32.totalorder %s28, 0
      %s31 = sadd.s32 %s30, 1
      %s32 = scalar_select %p29, %s30, %s31
      %p35 = pneg %p29
      %p36 = scmp.eq.s32.totalorder %s20, 1
      %p37 = por %p35, %p36
      %p38 = scmp.ne.s32.totalorder %s30, %s33
      %p39 = scmp.eq.s32.totalorder %s20, 0
      %p40 = por %p38, %p39
      %p41 = scmp.ne.s32.totalorder %s30, %s33
      %p42 = scmp.eq.s32.totalorder %s25, 1
      %p43 = por %p41, %p42
      %p44 = scmp.ne.s32.totalorder %s33, %s34
      %p45 = scmp.eq.s32.totalorder %s25, 0
      %p46 = por %p44, %p45
      %p47 = scmp.ne.s32.totalorder %s33, %s34
      %p48 = scmp.eq.s32.totalorder %s26, 1
      %p49 = por %p47, %p48
      %p51 = scmp.ne.s32.totalorder %s34, %s50
      %p52 = scmp.eq.s32.totalorder %s26, 0
      %p53 = por %p51, %p52
      %s55 = sadd.s32 %s54, 1
      %p58 = scmp.eq.s32.totalorder %s20, 1
      %p59 = scmp.ne.s32.totalorder %s54, %s56
      %p60 = scmp.eq.s32.totalorder %s20, 0
      %p61 = por %p59, %p60
      %p62 = scmp.ne.s32.totalorder %s54, %s56
      %p63 = scmp.eq.s32.totalorder %s25, 1
      %p64 = por %p62, %p63
      %p65 = scmp.ne.s32.totalorder %s56, %s57
      %p66 = scmp.eq.s32.totalorder %s25, 0
      %p67 = por %p65, %p66
      %p68 = scmp.ne.s32.totalorder %s56, %s57
      %p69 = scmp.eq.s32.totalorder %s26, 1
      %p70 = por %p68, %p69
      %p72 = scmp.ne.s32.totalorder %s57, %s71
      %p73 = scmp.eq.s32.totalorder %s26, 0
      %p74 = por %p72, %p73
      %s76 = sadd.s32 %s75, 1
      %p79 = scmp.eq.s32.totalorder %s20, 1
      %p80 = scmp.ne.s32.totalorder %s75, %s77
      %p81 = scmp.eq.s32.totalorder %s20, 0
      %p82 = por %p80, %p81
      %p83 = scmp.ne.s32.totalorder %s75, %s77
      %p84 = scmp.eq.s32.totalorder %s25, 1
      %p85 = por %p83, %p84
      %p86 = scmp.ne.s32.totalorder %s77, %s78
      %p87 = scmp.eq.s32.totalorder %s25, 0
      %p88 = por %p86, %p87
      %p89 = scmp.ne.s32.totalorder %s77, %s78
      %p90 = scmp.eq.s32.totalorder %s26, 1
      %p91 = por %p89, %p90
      %p93 = scmp.ne.s32.totalorder %s78, %s92
      %p94 = scmp.eq.s32.totalorder %s26, 0
      %p95 = por %p93, %p94
      %s97 = sadd.s32 %s96, 1
      %p100 = scmp.eq.s32.totalorder %s20, 1
      %p101 = scmp.ne.s32.totalorder %s96, %s98
      %p102 = scmp.eq.s32.totalorder %s20, 0
      %p103 = por %p101, %p102
      %p104 = scmp.ne.s32.totalorder %s96, %s98
      %p105 = scmp.eq.s32.totalorder %s25, 1
      %p106 = por %p104, %p105
      %p107 = scmp.ne.s32.totalorder %s98, %s99
      %p108 = scmp.eq.s32.totalorder %s25, 0
      %p109 = por %p107, %p108
      %p110 = scmp.ne.s32.totalorder %s98, %s99
      %p111 = scmp.eq.s32.totalorder %s26, 1
      %p112 = por %p110, %p111
      %p114 = scmp.ne.s32.totalorder %s99, %s113
      %p115 = scmp.eq.s32.totalorder %s26, 0
      %p116 = por %p114, %p115
      %s118 = sadd.s32 %s117, 1
      %p121 = scmp.eq.s32.totalorder %s20, 1
      %p122 = scmp.ne.s32.totalorder %s117, %s119
      %p123 = scmp.eq.s32.totalorder %s20, 0
      %p124 = por %p122, %p123
      %p125 = scmp.ne.s32.totalorder %s117, %s119
      %p126 = scmp.eq.s32.totalorder %s25, 1
      %p127 = por %p125, %p126
      %p128 = scmp.ne.s32.totalorder %s119, %s120
      %p129 = scmp.eq.s32.totalorder %s25, 0
      %p130 = por %p128, %p129
      %p131 = scmp.ne.s32.totalorder %s119, %s120
      %p132 = scmp.eq.s32.totalorder %s26, 1
      %p133 = por %p131, %p132
      %p135 = scmp.ne.s32.totalorder %s120, %s134
      %p136 = scmp.eq.s32.totalorder %s26, 0
      %p137 = por %p135, %p136
      %s139 = sadd.s32 %s138, 1
      %p142 = scmp.eq.s32.totalorder %s20, 1
      %p143 = scmp.ne.s32.totalorder %s138, %s140
      %p144 = scmp.eq.s32.totalorder %s20, 0
      %p145 = por %p143, %p144
      %p146 = scmp.ne.s32.totalorder %s138, %s140
      %p147 = scmp.eq.s32.totalorder %s25, 1
      %p148 = por %p146, %p147
      %p149 = scmp.ne.s32.totalorder %s140, %s141
      %p150 = scmp.eq.s32.totalorder %s25, 0
      %p151 = por %p149, %p150
      %p152 = scmp.ne.s32.totalorder %s140, %s141
      %p153 = scmp.eq.s32.totalorder %s26, 1
      %p154 = por %p152, %p153
      %p156 = scmp.ne.s32.totalorder %s141, %s155
      %p157 = scmp.eq.s32.totalorder %s26, 0
      %p158 = por %p156, %p157
      %s160 = sadd.s32 %s159, 1
      %p163 = scmp.eq.s32.totalorder %s20, 1
      %p164 = scmp.ne.s32.totalorder %s159, %s161
      %p165 = scmp.eq.s32.totalorder %s20, 0
      %p166 = por %p164, %p165
      %p167 = scmp.ne.s32.totalorder %s159, %s161
      %p168 = scmp.eq.s32.totalorder %s25, 1
      %p169 = por %p167, %p168
      %p170 = scmp.ne.s32.totalorder %s161, %s162
      %p171 = scmp.eq.s32.totalorder %s25, 0
      %p172 = por %p170, %p171
      %p173 = scmp.ne.s32.totalorder %s161, %s162
      %p174 = scmp.eq.s32.totalorder %s26, 1
      %p175 = por %p173, %p174
      %p177 = scmp.ne.s32.totalorder %s162, %s176
      %p178 = scmp.eq.s32.totalorder %s26, 0
      %p179 = por %p177, %p178
      %s181 = sadd.s32 %s180, 1
      %p184 = scmp.eq.s32.totalorder %s20, 1
      %p185 = scmp.ne.s32.totalorder %s180, %s182
      %p186 = scmp.eq.s32.totalorder %s20, 0
      %p187 = por %p185, %p186
      %p188 = scmp.ne.s32.totalorder %s180, %s182
      %p189 = scmp.eq.s32.totalorder %s25, 1
      %p190 = por %p188, %p189
      %p191 = scmp.ne.s32.totalorder %s182, %s183
      %p192 = scmp.eq.s32.totalorder %s25, 0
      %p193 = por %p191, %p192
      %p194 = scmp.ne.s32.totalorder %s182, %s183
      %p195 = scmp.eq.s32.totalorder %s26, 1
      %p196 = por %p194, %p195
      %p198 = scmp.ne.s32.totalorder %s183, %s197
      %p199 = scmp.eq.s32.totalorder %s26, 0
      %p200 = por %p198, %p199
      %s202 = sadd.s32 %s201, 1
      %p205 = scmp.eq.s32.totalorder %s20, 1
      %p206 = scmp.ne.s32.totalorder %s201, %s203
      %p207 = scmp.eq.s32.totalorder %s20, 0
      %p208 = por %p206, %p207
      %p209 = scmp.ne.s32.totalorder %s201, %s203
      %p210 = scmp.eq.s32.totalorder %s25, 1
      %p211 = por %p209, %p210
      %p212 = scmp.ne.s32.totalorder %s203, %s204
      %p213 = scmp.eq.s32.totalorder %s25, 0
      %p214 = por %p212, %p213
      %p215 = scmp.ne.s32.totalorder %s203, %s204
      %p216 = scmp.eq.s32.totalorder %s26, 1
      %p217 = por %p215, %p216
      %p219 = scmp.ne.s32.totalorder %s204, %s218
      %p220 = scmp.eq.s32.totalorder %s26, 0
      %p221 = por %p219, %p220
      %s223 = sadd.s32 %s222, 1
      %p226 = scmp.eq.s32.totalorder %s20, 1
      %p227 = scmp.ne.s32.totalorder %s222, %s224
      %p228 = scmp.eq.s32.totalorder %s20, 0
      %p229 = por %p227, %p228
      %p230 = scmp.ne.s32.totalorder %s222, %s224
      %p231 = scmp.eq.s32.totalorder %s25, 1
      %p232 = por %p230, %p231
      %p233 = scmp.ne.s32.totalorder %s224, %s225
      %p234 = scmp.eq.s32.totalorder %s25, 0
      %p235 = por %p233, %p234
      %p236 = scmp.ne.s32.totalorder %s224, %s225
      %p237 = scmp.eq.s32.totalorder %s26, 1
      %p238 = por %p236, %p237
      %p240 = scmp.ne.s32.totalorder %s225, %s239
      %p241 = scmp.eq.s32.totalorder %s26, 0
      %p242 = por %p240, %p241
      %s244 = sadd.s32 %s243, 1
      %p247 = scmp.eq.s32.totalorder %s20, 1
      %p248 = scmp.ne.s32.totalorder %s243, %s245
      %p249 = scmp.eq.s32.totalorder %s20, 0
      %p250 = por %p248, %p249
      %p251 = scmp.ne.s32.totalorder %s243, %s245
      %p252 = scmp.eq.s32.totalorder %s25, 1
      %p253 = por %p251, %p252
      %p254 = scmp.ne.s32.totalorder %s245, %s246
      %p255 = scmp.eq.s32.totalorder %s25, 0
      %p256 = por %p254, %p255
      %p257 = scmp.ne.s32.totalorder %s245, %s246
      %p258 = scmp.eq.s32.totalorder %s26, 1
      %p259 = por %p257, %p258
      %p261 = scmp.ne.s32.totalorder %s246, %s260
      %p262 = scmp.eq.s32.totalorder %s26, 0
      %p263 = por %p261, %p262
      %s264 = ssub.s32 %s20, %s27
      %p265 = scmp.eq.s32.totalorder %s264, 0
      %s267 = sadd.s32 %s266, 1
      %s268 = scalar_select %p265, %s266, %s267
      %p271 = pneg %p265
      %p272 = scmp.eq.s32.totalorder %s20, 1
      %p273 = por %p271, %p272
      %p274 = scmp.ne.s32.totalorder %s266, %s269
      %p275 = scmp.eq.s32.totalorder %s20, 0
      %p276 = por %p274, %p275
      %p277 = scmp.ne.s32.totalorder %s266, %s269
      %p278 = scmp.eq.s32.totalorder %s25, 1
      %p279 = por %p277, %p278
      %p280 = scmp.ne.s32.totalorder %s269, %s270
      %p281 = scmp.eq.s32.totalorder %s25, 0
      %p282 = por %p280, %p281
      %p283 = scmp.ne.s32.totalorder %s269, %s270
      %p284 = scmp.eq.s32.totalorder %s26, 1
      %p285 = por %p283, %p284
      %p287 = scmp.ne.s32.totalorder %s270, %s286
      %p288 = scmp.eq.s32.totalorder %s26, 0
      %p289 = por %p287, %p288
      %p290 = scmp.le.s32.totalorder 1, %s20
      %p291 = scmp.lt.s32.totalorder %s20, 3
      %p292 = pnand %p290, %p291
      %p293 = pneg %p292
      // Predicated region
      $region9: #{tpu_custom_call.1} parent=5 // pred_check
        _
      $region10: #{tpu_custom_call.1} parent=5 // pred_check_branch
        %295 = sbr.rel (%p292) target = $region12
      $region11: #{tpu_custom_call.1} parent=5 // pred_region
        %s296 = ssub.s32 %s20, 1
        // Predicated region
        $region13: #{tpu_custom_call.1} parent=11 // pred_check
          %p297 = pneg %p67
        $region14: #{tpu_custom_call.1} parent=11 // pred_check_branch
          %299 = sbr.rel (%p297) target = $region16
        $region15: #{tpu_custom_call.1} parent=11 // pred_region
          _
        $region16: #{tpu_custom_call.1} parent=11 // pred_fallthru
          _
        // Predicated region
        $region17: #{tpu_custom_call.1} parent=11 // pred_check
          %p300 = pneg %p88
        $region18: #{tpu_custom_call.1} parent=11 // pred_check_branch
          %302 = sbr.rel (%p300) target = $region20
        $region19: #{tpu_custom_call.1} parent=11 // pred_region
          _
        $region20: #{tpu_custom_call.1} parent=11 // pred_fallthru
          _
        // Predicated region
        $region21: #{tpu_custom_call.1} parent=11 // pred_check
          %p303 = pneg %p109
        $region22: #{tpu_custom_call.1} parent=11 // pred_check_branch
          %305 = sbr.rel (%p303) target = $region24
        $region23: #{tpu_custom_call.1} parent=11 // pred_region
          _
        $region24: #{tpu_custom_call.1} parent=11 // pred_fallthru
          _
        // Predicated region
        $region25: #{tpu_custom_call.1} parent=11 // pred_check
          %p306 = pneg %p130
        $region26: #{tpu_custom_call.1} parent=11 // pred_check_branch
          %308 = sbr.rel (%p306) target = $region28
        $region27: #{tpu_custom_call.1} parent=11 // pred_region
          _
        $region28: #{tpu_custom_call.1} parent=11 // pred_fallthru
          _
        // Predicated region
        $region29: #{tpu_custom_call.1} parent=11 // pred_check
          %p309 = pneg %p151
        $region30: #{tpu_custom_call.1} parent=11 // pred_check_branch
          %311 = sbr.rel (%p309) target = $region32
        $region31: #{tpu_custom_call.1} parent=11 // pred_region
          _
        $region32: #{tpu_custom_call.1} parent=11 // pred_fallthru
          _
        // Predicated region
        $region33: #{tpu_custom_call.1} parent=11 // pred_check
          %p312 = pneg %p172
        $region34: #{tpu_custom_call.1} parent=11 // pred_check_branch
          %314 = sbr.rel (%p312) target = $region36
        $region35: #{tpu_custom_call.1} parent=11 // pred_region
          _
        $region36: #{tpu_custom_call.1} parent=11 // pred_fallthru
          _
        // Predicated region
        $region37: #{tpu_custom_call.1} parent=11 // pred_check
          %p315 = pneg %p193
        $region38: #{tpu_custom_call.1} parent=11 // pred_check_branch
          %317 = sbr.rel (%p315) target = $region40
        $region39: #{tpu_custom_call.1} parent=11 // pred_region
          _
        $region40: #{tpu_custom_call.1} parent=11 // pred_fallthru
          _
        // Predicated region
        $region41: #{tpu_custom_call.1} parent=11 // pred_check
          %p318 = pneg %p214
        $region42: #{tpu_custom_call.1} parent=11 // pred_check_branch
          %320 = sbr.rel (%p318) target = $region44
        $region43: #{tpu_custom_call.1} parent=11 // pred_region
          _
        $region44: #{tpu_custom_call.1} parent=11 // pred_fallthru
          _
        // Predicated region
        $region45: #{tpu_custom_call.1} parent=11 // pred_check
          %p321 = pneg %p235
        $region46: #{tpu_custom_call.1} parent=11 // pred_check_branch
          %323 = sbr.rel (%p321) target = $region48
        $region47: #{tpu_custom_call.1} parent=11 // pred_region
          _
        $region48: #{tpu_custom_call.1} parent=11 // pred_fallthru
          _
        // Predicated region
        $region49: #{tpu_custom_call.1} parent=11 // pred_check
          %p324 = pneg %p256
        $region50: #{tpu_custom_call.1} parent=11 // pred_check_branch
          %326 = sbr.rel (%p324) target = $region52
        $region51: #{tpu_custom_call.1} parent=11 // pred_region
          _
        $region52: #{tpu_custom_call.1} parent=11 // pred_fallthru
          _
      $region12: #{tpu_custom_call.1} parent=5 // pred_fallthru
        _
      %p327 = scmp.lt.s32.totalorder %s20, 2
      // Predicated region
      $region53: #{tpu_custom_call.1} parent=5 // pred_check
        %p328 = pneg %p327
      $region54: #{tpu_custom_call.1} parent=5 // pred_check_branch
        %330 = sbr.rel (%p328) target = $region56
      $region55: #{tpu_custom_call.1} parent=5 // pred_region
        // Predicated region
        $region57: #{tpu_custom_call.1} parent=55 // pred_check
          %p331 = pneg %p40
        $region58: #{tpu_custom_call.1} parent=55 // pred_check_branch
          %333 = sbr.rel (%p331) target = $region60
        $region59: #{tpu_custom_call.1} parent=55 // pred_region
          %s334 = smul.u32 16, %s20
          %p335 = scmp.lt.s32.totalorder %s334, 31
          %s336 = scalar_select %p335, %s334, 31
          %s337 = smul.addr %s336, 7
          %s338 = smul.addr %s337, 8
          %s339 = scalar_lea.vmem %s0, %s338
          %s340 = smul.u32 16, %s20
        $region60: #{tpu_custom_call.1} parent=55 // pred_fallthru
          _
      $region56: #{tpu_custom_call.1} parent=5 // pred_fallthru
        _
      %p341 = scmp.le.s32.totalorder 1, %s20
      %p342 = scmp.lt.s32.totalorder %s20, 3
      %p343 = pnand %p341, %p342
      %p344 = pneg %p343
      // Predicated region
      $region61: #{tpu_custom_call.1} parent=5 // pred_check
        _
      $region62: #{tpu_custom_call.1} parent=5 // pred_check_branch
        %346 = sbr.rel (%p343) target = $region64
      $region63: #{tpu_custom_call.1} parent=5 // pred_region
        %s347 = ssub.s32 %s20, 1
        %s348 = smul.u32 16, %s25
        %p349 = scmp.lt.s32.totalorder %s348, 31
        %s350 = scalar_select %p349, %s348, 31
        %s351 = smul.addr %s350, 7
        %s352 = smul.addr %s351, 8
        %s353 = scalar_lea.vmem %s0, %s352
        %p354 = pneg %p46
        %p355 = pneg %p43
        %p356 = pneg %p67
        %p357 = pneg %p64
        %p358 = pneg %p88
        %p359 = pneg %p85
        %p360 = pneg %p109
        %p361 = pneg %p106
        %p362 = pneg %p130
        %p363 = pneg %p127
        %p364 = pneg %p151
        %p365 = pneg %p148
        %p366 = pneg %p172
        %p367 = pneg %p169
        %p368 = pneg %p193
        %p369 = pneg %p190
        %p370 = pneg %p214
        %p371 = pneg %p211
        %p372 = pneg %p235
        %p373 = pneg %p232
        %p374 = pneg %p256
        %p375 = pneg %p253
        %p376 = pneg %p282
        %p377 = pneg %p279
        %s378 = sand.u32 %s269, 1
        %s379 = scalar_lea.sflag [#allocation3], %s378
        %s380 = sand.u32 %s269, 1
        %s381 = smul.addr %s380, 128
        %s382 = scalar_lea.vmem [#allocation2], %s381
        %s383 = smul.u32 16, %s25
        %p384 = scmp.lt.s32.totalorder %s383, 31
        %s385 = scalar_select %p384, %s383, 31
        %s386 = smul.addr %s385, 7
        %s387 = smul.addr %s386, 8
        %s388 = scalar_lea.vmem %s0, %s387
        %s389 = smul.u32 16, %s25
        %s390 = smul.u32 16, %s25
        %v392 = vld [vmem:[%s388] sm:$0xff]
        %v393 = vld [vmem:[%s388 + $0x8] sm:$0xff]
        %v394 = vld [vmem:[%s388 + $0x10] sm:$0xff]
        %v395 = vld [vmem:[%s388 + $0x18] sm:$0xff]
        %v396 = vld [vmem:[%s388 + $0x20] sm:$0xff]
        %v397 = vld [vmem:[%s388 + $0x28] sm:$0xff]
        %v398 = vld [vmem:[%s388 + $0x30] sm:$0xff]
        %v399 = vld [vmem:[%s388 + $0x38] sm:$0xff]
        %v400 = vld [vmem:[%s388 + $0x40] sm:$0xff]
        %v401 = vld [vmem:[%s388 + $0x48] sm:$0xff]
        %v402 = vld [vmem:[%s388 + $0x50] sm:$0xff]
        %v403 = vld [vmem:[%s388 + $0x58] sm:$0xff]
        %v404 = vld [vmem:[%s388 + $0x60] sm:$0xff]
        %v405 = vld [vmem:[%s388 + $0x68] sm:$0xff]
        %v406 = vld [vmem:[%s388 + $0x70] sm:$0xff]
        %v407 = vld [vmem:[%s388 + $0x78] sm:$0xff]
        %v408 = vld [vmem:[%s388 + $0x80] sm:$0xff]
        %v409 = vld [vmem:[%s388 + $0x88] sm:$0xff]
        %v410 = vld [vmem:[%s388 + $0x90] sm:$0xff]
        %v411 = vld [vmem:[%s388 + $0x98] sm:$0xff]
        %v412 = vld [vmem:[%s388 + $0xa0] sm:$0xff]
        %v413 = vld [vmem:[%s388 + $0xa8] sm:$0xff]
        %v414 = vld [vmem:[%s388 + $0xb0] sm:$0xff]
        %v415 = vld [vmem:[%s388 + $0xb8] sm:$0xff]
        %v416 = vld [vmem:[%s388 + $0xc0] sm:$0xff]
        %v417 = vld [vmem:[%s388 + $0xc8] sm:$0xff]
        %v418 = vld [vmem:[%s388 + $0xd0] sm:$0xff]
        %v419 = vld [vmem:[%s388 + $0xd8] sm:$0xff]
        %v420 = vld [vmem:[%s388 + $0xe0] sm:$0xff]
        %v421 = vld [vmem:[%s388 + $0xe8] sm:$0xff]
        %v422 = vld [vmem:[%s388 + $0xf0] sm:$0xff]
        %v423 = vld [vmem:[%s388 + $0xf8] sm:$0xff]
        %v424 = vld [vmem:[%s388 + $0x100] sm:$0xff]
        %v425 = vld [vmem:[%s388 + $0x108] sm:$0xff]
        %v426 = vld [vmem:[%s388 + $0x110] sm:$0xff]
        %v427 = vld [vmem:[%s388 + $0x118] sm:$0xff]
        %v428 = vld [vmem:[%s388 + $0x120] sm:$0xff]
        %v429 = vld [vmem:[%s388 + $0x128] sm:$0xff]
        %v430 = vld [vmem:[%s388 + $0x130] sm:$0xff]
        %v431 = vld [vmem:[%s388 + $0x138] sm:$0xff]
        %v432 = vld [vmem:[%s388 + $0x140] sm:$0xff]
        %v433 = vld [vmem:[%s388 + $0x148] sm:$0xff]
        %v434 = vld [vmem:[%s388 + $0x150] sm:$0xff]
        %v435 = vld [vmem:[%s388 + $0x158] sm:$0xff]
        %v436 = vld [vmem:[%s388 + $0x160] sm:$0xff]
        %v437 = vld [vmem:[%s388 + $0x168] sm:$0xff]
        %v438 = vld [vmem:[%s388 + $0x170] sm:$0xff]
        %v439 = vld [vmem:[%s388 + $0x178] sm:$0xff]
        %v440 = vld [vmem:[%s388 + $0x180] sm:$0xff]
        %v441 = vld [vmem:[%s388 + $0x188] sm:$0xff]
        %v442 = vld [vmem:[%s388 + $0x190] sm:$0xff]
        %v443 = vld [vmem:[%s388 + $0x198] sm:$0xff]
        %v444 = vld [vmem:[%s388 + $0x1a0] sm:$0xff]
        %v445 = vld [vmem:[%s388 + $0x1a8] sm:$0xff]
        %v446 = vld [vmem:[%s388 + $0x1b0] sm:$0xff]
        %v447 = vld [vmem:[%s388 + $0x1b8] sm:$0xff]
        %v448 = vld [vmem:[%s388 + $0x1c0] sm:$0xff]
        %v449 = vld [vmem:[%s388 + $0x1c8] sm:$0xff]
        %v450 = vld [vmem:[%s388 + $0x1d0] sm:$0xff]
        %v451 = vld [vmem:[%s388 + $0x1d8] sm:$0xff]
        %v452 = vld [vmem:[%s388 + $0x1e0] sm:$0xff]
        %v453 = vld [vmem:[%s388 + $0x1e8] sm:$0xff]
        %v454 = vld [vmem:[%s388 + $0x1f0] sm:$0xff]
        %v455 = vld [vmem:[%s388 + $0x1f8] sm:$0xff]
        %v456 = vld [vmem:[%s388 + $0x200] sm:$0xff]
        %v457 = vld [vmem:[%s388 + $0x208] sm:$0xff]
        %v458 = vld [vmem:[%s388 + $0x210] sm:$0xff]
        %v459 = vld [vmem:[%s388 + $0x218] sm:$0xff]
        %v460 = vld [vmem:[%s388 + $0x220] sm:$0xff]
        %v461 = vld [vmem:[%s388 + $0x228] sm:$0xff]
        %v462 = vld [vmem:[%s388 + $0x230] sm:$0xff]
        %v463 = vld [vmem:[%s388 + $0x238] sm:$0xff]
        %v464 = vld [vmem:[%s388 + $0x240] sm:$0xff]
        %v465 = vld [vmem:[%s388 + $0x248] sm:$0xff]
        %v466 = vld [vmem:[%s388 + $0x250] sm:$0xff]
        %v467 = vld [vmem:[%s388 + $0x258] sm:$0xff]
        %v468 = vld [vmem:[%s388 + $0x260] sm:$0xff]
        %v469 = vld [vmem:[%s388 + $0x268] sm:$0xff]
        %v470 = vld [vmem:[%s388 + $0x270] sm:$0xff]
        %v471 = vld [vmem:[%s388 + $0x278] sm:$0xff]
        %v472 = vld [vmem:[%s388 + $0x280] sm:$0xff]
        %v473 = vld [vmem:[%s388 + $0x288] sm:$0xff]
        %v474 = vld [vmem:[%s388 + $0x290] sm:$0xff]
        %v475 = vld [vmem:[%s388 + $0x298] sm:$0xff]
        %v476 = vld [vmem:[%s388 + $0x2a0] sm:$0xff]
        %v477 = vld [vmem:[%s388 + $0x2a8] sm:$0xff]
        %v478 = vld [vmem:[%s388 + $0x2b0] sm:$0xff]
        %v479 = vld [vmem:[%s388 + $0x2b8] sm:$0xff]
        %v480 = vld [vmem:[%s388 + $0x2c0] sm:$0xff]
        %v481 = vld [vmem:[%s388 + $0x2c8] sm:$0xff]
        %v482 = vld [vmem:[%s388 + $0x2d0] sm:$0xff]
        %v483 = vld [vmem:[%s388 + $0x2d8] sm:$0xff]
        %v484 = vld [vmem:[%s388 + $0x2e0] sm:$0xff]
        %v485 = vld [vmem:[%s388 + $0x2e8] sm:$0xff]
        %v486 = vld [vmem:[%s388 + $0x2f0] sm:$0xff]
        %v487 = vld [vmem:[%s388 + $0x2f8] sm:$0xff]
        %v488 = vld [vmem:[%s388 + $0x300] sm:$0xff]
        %v489 = vld [vmem:[%s388 + $0x308] sm:$0xff]
        %v490 = vld [vmem:[%s388 + $0x310] sm:$0xff]
        %v491 = vld [vmem:[%s388 + $0x318] sm:$0xff]
        %v492 = vld [vmem:[%s388 + $0x320] sm:$0xff]
        %v493 = vld [vmem:[%s388 + $0x328] sm:$0xff]
        %v494 = vld [vmem:[%s388 + $0x330] sm:$0xff]
        %v495 = vld [vmem:[%s388 + $0x338] sm:$0xff]
        %v496 = vld [vmem:[%s388 + $0x340] sm:$0xff]
        %v497 = vld [vmem:[%s388 + $0x348] sm:$0xff]
        %v498 = vld [vmem:[%s388 + $0x350] sm:$0xff]
        %v499 = vld [vmem:[%s388 + $0x358] sm:$0xff]
        %v500 = vld [vmem:[%s388 + $0x360] sm:$0xff]
        %v501 = vld [vmem:[%s388 + $0x368] sm:$0xff]
        %v502 = vld [vmem:[%s388 + $0x370] sm:$0xff]
        %v503 = vld [vmem:[%s388 + $0x378] sm:$0xff]
        %v504 = vpack.c.bf16 %v399, %v392
        %v505 = vpack.c.bf16 %v400, %v393
        %v506 = vpack.c.bf16 %v401, %v394
        %v507 = vpack.c.bf16 %v402, %v395
        %v508 = vpack.c.bf16 %v403, %v396
        %v509 = vpack.c.bf16 %v404, %v397
        %v510 = vpack.c.bf16 %v405, %v398
        %v511 = vpack.c.bf16 %v413, %v406
        %v512 = vpack.c.bf16 %v414, %v407
        %v513 = vpack.c.bf16 %v415, %v408
        %v514 = vpack.c.bf16 %v416, %v409
        %v515 = vpack.c.bf16 %v417, %v410
        %v516 = vpack.c.bf16 %v418, %v411
        %v517 = vpack.c.bf16 %v419, %v412
        %v518 = vpack.c.bf16 %v427, %v420
        %v519 = vpack.c.bf16 %v428, %v421
        %v520 = vpack.c.bf16 %v429, %v422
        %v521 = vpack.c.bf16 %v430, %v423
        %v522 = vpack.c.bf16 %v431, %v424
        %v523 = vpack.c.bf16 %v432, %v425
        %v524 = vpack.c.bf16 %v433, %v426
        %v525 = vpack.c.bf16 %v441, %v434
        %v526 = vpack.c.bf16 %v442, %v435
        %v527 = vpack.c.bf16 %v443, %v436
        %v528 = vpack.c.bf16 %v444, %v437
        %v529 = vpack.c.bf16 %v445, %v438
        %v530 = vpack.c.bf16 %v446, %v439
        %v531 = vpack.c.bf16 %v447, %v440
        %v532 = vpack.c.bf16 %v455, %v448
        %v533 = vpack.c.bf16 %v456, %v449
        %v534 = vpack.c.bf16 %v457, %v450
        %v535 = vpack.c.bf16 %v458, %v451
        %v536 = vpack.c.bf16 %v459, %v452
        %v537 = vpack.c.bf16 %v460, %v453
        %v538 = vpack.c.bf16 %v461, %v454
        %v539 = vpack.c.bf16 %v469, %v462
        %v540 = vpack.c.bf16 %v470, %v463
        %v541 = vpack.c.bf16 %v471, %v464
        %v542 = vpack.c.bf16 %v472, %v465
        %v543 = vpack.c.bf16 %v473, %v466
        %v544 = vpack.c.bf16 %v474, %v467
        %v545 = vpack.c.bf16 %v475, %v468
        %v546 = vpack.c.bf16 %v483, %v476
        %v547 = vpack.c.bf16 %v484, %v477
        %v548 = vpack.c.bf16 %v485, %v478
        %v549 = vpack.c.bf16 %v486, %v479
        %v550 = vpack.c.bf16 %v487, %v480
        %v551 = vpack.c.bf16 %v488, %v481
        %v552 = vpack.c.bf16 %v489, %v482
        %v553 = vpack.c.bf16 %v497, %v490
        %v554 = vpack.c.bf16 %v498, %v491
        %v555 = vpack.c.bf16 %v499, %v492
        %v556 = vpack.c.bf16 %v500, %v493
        %v557 = vpack.c.bf16 %v501, %v494
        %v558 = vpack.c.bf16 %v502, %v495
        %v559 = vpack.c.bf16 %v503, %v496
        %v560 = vld [vmem:[%s1] sm:$0xff]
        %v561 = vld [vmem:[%s1 + $0x8] sm:$0xff]
        %v562 = vld [vmem:[%s1 + $0x10] sm:$0xff]
        %v563 = vld [vmem:[%s1 + $0x18] sm:$0xff]
        %v564 = vld [vmem:[%s1 + $0x20] sm:$0xff]
        %v565 = vld [vmem:[%s1 + $0x28] sm:$0xff]
        %v566 = vld [vmem:[%s1 + $0x30] sm:$0xff]
        %v567 = vld [vmem:[%s1 + $0x38] sm:$0xff]
        %v568 = vld [vmem:[%s1 + $0x40] sm:$0xff]
        %v569 = vld [vmem:[%s1 + $0x48] sm:$0xff]
        %v570 = vld [vmem:[%s1 + $0x50] sm:$0xff]
        %v571 = vld [vmem:[%s1 + $0x58] sm:$0xff]
        %v572 = vld [vmem:[%s1 + $0x60] sm:$0xff]
        %v573 = vld [vmem:[%s1 + $0x68] sm:$0xff]
        %v574 = vld [vmem:[%s1 + $0x70] sm:$0xff]
        %v575 = vld [vmem:[%s1 + $0x78] sm:$0xff]
        %v576 = vld [vmem:[%s1 + $0x80] sm:$0xff]
        %v577 = vld [vmem:[%s1 + $0x88] sm:$0xff]
        %v578 = vld [vmem:[%s1 + $0x90] sm:$0xff]
        %v579 = vld [vmem:[%s1 + $0x98] sm:$0xff]
        %v580 = vld [vmem:[%s1 + $0xa0] sm:$0xff]
        %v581 = vld [vmem:[%s1 + $0xa8] sm:$0xff]
        %v582 = vld [vmem:[%s1 + $0xb0] sm:$0xff]
        %v583 = vld [vmem:[%s1 + $0xb8] sm:$0xff]
        %v584 = vld [vmem:[%s1 + $0xc0] sm:$0xff]
        %v585 = vld [vmem:[%s1 + $0xc8] sm:$0xff]
        %v586 = vld [vmem:[%s1 + $0xd0] sm:$0xff]
        %v587 = vld [vmem:[%s1 + $0xd8] sm:$0xff]
        %v588 = vld [vmem:[%s1 + $0xe0] sm:$0xff]
        %v589 = vld [vmem:[%s1 + $0xe8] sm:$0xff]
        %v590 = vld [vmem:[%s1 + $0xf0] sm:$0xff]
        %v591 = vld [vmem:[%s1 + $0xf8] sm:$0xff]
        %v592 = vld [vmem:[%s1 + $0x100] sm:$0xff]
        %v593 = vld [vmem:[%s1 + $0x108] sm:$0xff]
        %v594 = vld [vmem:[%s1 + $0x110] sm:$0xff]
        %v595 = vld [vmem:[%s1 + $0x118] sm:$0xff]
        %v596 = vld [vmem:[%s1 + $0x120] sm:$0xff]
        %v597 = vld [vmem:[%s1 + $0x128] sm:$0xff]
        %v598 = vld [vmem:[%s1 + $0x130] sm:$0xff]
        %v599 = vld [vmem:[%s1 + $0x138] sm:$0xff]
        %v600 = vld [vmem:[%s1 + $0x140] sm:$0xff]
        %v601 = vld [vmem:[%s1 + $0x148] sm:$0xff]
        %v602 = vld [vmem:[%s1 + $0x150] sm:$0xff]
        %v603 = vld [vmem:[%s1 + $0x158] sm:$0xff]
        %v604 = vld [vmem:[%s1 + $0x160] sm:$0xff]
        %v605 = vld [vmem:[%s1 + $0x168] sm:$0xff]
        %v606 = vld [vmem:[%s1 + $0x170] sm:$0xff]
        %v607 = vld [vmem:[%s1 + $0x178] sm:$0xff]
        %v608 = vld [vmem:[%s1 + $0x180] sm:$0xff]
        %v609 = vld [vmem:[%s1 + $0x188] sm:$0xff]
        %v610 = vld [vmem:[%s1 + $0x190] sm:$0xff]
        %v611 = vld [vmem:[%s1 + $0x198] sm:$0xff]
        %v612 = vld [vmem:[%s1 + $0x1a0] sm:$0xff]
        %v613 = vld [vmem:[%s1 + $0x1a8] sm:$0xff]
        %v614 = vld [vmem:[%s1 + $0x1b0] sm:$0xff]
        %v615 = vld [vmem:[%s1 + $0x1b8] sm:$0xff]
        %v616 = vld [vmem:[%s1 + $0x1c0] sm:$0xff]
        %v617 = vld [vmem:[%s1 + $0x1c8] sm:$0xff]
        %v618 = vld [vmem:[%s1 + $0x1d0] sm:$0xff]
        %v619 = vld [vmem:[%s1 + $0x1d8] sm:$0xff]
        %v620 = vld [vmem:[%s1 + $0x1e0] sm:$0xff]
        %v621 = vld [vmem:[%s1 + $0x1e8] sm:$0xff]
        %v622 = vld [vmem:[%s1 + $0x1f0] sm:$0xff]
        %v623 = vld [vmem:[%s1 + $0x1f8] sm:$0xff]
        %v624 = vld [vmem:[%s1 + $0x200] sm:$0xff]
        %v625 = vld [vmem:[%s1 + $0x208] sm:$0xff]
        %v626 = vld [vmem:[%s1 + $0x210] sm:$0xff]
        %v627 = vld [vmem:[%s1 + $0x218] sm:$0xff]
        %v628 = vld [vmem:[%s1 + $0x220] sm:$0xff]
        %v629 = vld [vmem:[%s1 + $0x228] sm:$0xff]
        %v630 = vld [vmem:[%s1 + $0x230] sm:$0xff]
        %v631 = vld [vmem:[%s1 + $0x238] sm:$0xff]
        %v632 = vld [vmem:[%s1 + $0x240] sm:$0xff]
        %v633 = vld [vmem:[%s1 + $0x248] sm:$0xff]
        %v634 = vld [vmem:[%s1 + $0x250] sm:$0xff]
        %v635 = vld [vmem:[%s1 + $0x258] sm:$0xff]
        %v636 = vld [vmem:[%s1 + $0x260] sm:$0xff]
        %v637 = vld [vmem:[%s1 + $0x268] sm:$0xff]
        %v638 = vld [vmem:[%s1 + $0x270] sm:$0xff]
        %v639 = vld [vmem:[%s1 + $0x278] sm:$0xff]
        %v640 = vld [vmem:[%s1 + $0x280] sm:$0xff]
        %v641 = vld [vmem:[%s1 + $0x288] sm:$0xff]
        %v642 = vld [vmem:[%s1 + $0x290] sm:$0xff]
        %v643 = vld [vmem:[%s1 + $0x298] sm:$0xff]
        %v644 = vld [vmem:[%s1 + $0x2a0] sm:$0xff]
        %v645 = vld [vmem:[%s1 + $0x2a8] sm:$0xff]
        %v646 = vld [vmem:[%s1 + $0x2b0] sm:$0xff]
        %v647 = vld [vmem:[%s1 + $0x2b8] sm:$0xff]
        %v648 = vld [vmem:[%s1 + $0x2c0] sm:$0xff]
        %v649 = vld [vmem:[%s1 + $0x2c8] sm:$0xff]
        %v650 = vld [vmem:[%s1 + $0x2d0] sm:$0xff]
        %v651 = vld [vmem:[%s1 + $0x2d8] sm:$0xff]
        %v652 = vld [vmem:[%s1 + $0x2e0] sm:$0xff]
        %v653 = vld [vmem:[%s1 + $0x2e8] sm:$0xff]
        %v654 = vld [vmem:[%s1 + $0x2f0] sm:$0xff]
        %v655 = vld [vmem:[%s1 + $0x2f8] sm:$0xff]
        %v656 = vld [vmem:[%s1 + $0x300] sm:$0xff]
        %v657 = vld [vmem:[%s1 + $0x308] sm:$0xff]
        %v658 = vld [vmem:[%s1 + $0x310] sm:$0xff]
        %v659 = vld [vmem:[%s1 + $0x318] sm:$0xff]
        %v660 = vld [vmem:[%s1 + $0x320] sm:$0xff]
        %v661 = vld [vmem:[%s1 + $0x328] sm:$0xff]
        %v662 = vld [vmem:[%s1 + $0x330] sm:$0xff]
        %v663 = vld [vmem:[%s1 + $0x338] sm:$0xff]
        %v664 = vld [vmem:[%s1 + $0x340] sm:$0xff]
        %v665 = vld [vmem:[%s1 + $0x348] sm:$0xff]
        %v666 = vld [vmem:[%s1 + $0x350] sm:$0xff]
        %v667 = vld [vmem:[%s1 + $0x358] sm:$0xff]
        %v668 = vld [vmem:[%s1 + $0x360] sm:$0xff]
        %v669 = vld [vmem:[%s1 + $0x368] sm:$0xff]
        %v670 = vld [vmem:[%s1 + $0x370] sm:$0xff]
        %v671 = vld [vmem:[%s1 + $0x378] sm:$0xff]
        %v672 = vld [vmem:[%s1 + $0x380] sm:$0xff]
        %v673 = vld [vmem:[%s1 + $0x388] sm:$0xff]
        %v674 = vld [vmem:[%s1 + $0x390] sm:$0xff]
        %v675 = vld [vmem:[%s1 + $0x398] sm:$0xff]
        %v676 = vld [vmem:[%s1 + $0x3a0] sm:$0xff]
        %v677 = vld [vmem:[%s1 + $0x3a8] sm:$0xff]
        %v678 = vld [vmem:[%s1 + $0x3b0] sm:$0xff]
        %v679 = vld [vmem:[%s1 + $0x3b8] sm:$0xff]
        %v680 = vld [vmem:[%s1 + $0x3c0] sm:$0xff]
        %v681 = vld [vmem:[%s1 + $0x3c8] sm:$0xff]
        %v682 = vld [vmem:[%s1 + $0x3d0] sm:$0xff]
        %v683 = vld [vmem:[%s1 + $0x3d8] sm:$0xff]
        %v684 = vld [vmem:[%s1 + $0x3e0] sm:$0xff]
        %v685 = vld [vmem:[%s1 + $0x3e8] sm:$0xff]
        %v686 = vld [vmem:[%s1 + $0x3f0] sm:$0xff]
        %v687 = vld [vmem:[%s1 + $0x3f8] sm:$0xff]
        %v688 = vld [vmem:[%s1 + $0x400] sm:$0xff]
        %v689 = vld [vmem:[%s1 + $0x408] sm:$0xff]
        %v690 = vld [vmem:[%s1 + $0x410] sm:$0xff]
        %v691 = vld [vmem:[%s1 + $0x418] sm:$0xff]
        %v692 = vld [vmem:[%s1 + $0x420] sm:$0xff]
        %v693 = vld [vmem:[%s1 + $0x428] sm:$0xff]
        %v694 = vld [vmem:[%s1 + $0x430] sm:$0xff]
        %v695 = vld [vmem:[%s1 + $0x438] sm:$0xff]
        %v696 = vld [vmem:[%s1 + $0x440] sm:$0xff]
        %v697 = vld [vmem:[%s1 + $0x448] sm:$0xff]
        %v698 = vld [vmem:[%s1 + $0x450] sm:$0xff]
        %v699 = vld [vmem:[%s1 + $0x458] sm:$0xff]
        %v700 = vld [vmem:[%s1 + $0x460] sm:$0xff]
        %v701 = vld [vmem:[%s1 + $0x468] sm:$0xff]
        %v702 = vld [vmem:[%s1 + $0x470] sm:$0xff]
        %v703 = vld [vmem:[%s1 + $0x478] sm:$0xff]
        %v704 = vld [vmem:[%s1 + $0x480] sm:$0xff]
        %v705 = vld [vmem:[%s1 + $0x488] sm:$0xff]
        %v706 = vld [vmem:[%s1 + $0x490] sm:$0xff]
        %v707 = vld [vmem:[%s1 + $0x498] sm:$0xff]
        %v708 = vld [vmem:[%s1 + $0x4a0] sm:$0xff]
        %v709 = vld [vmem:[%s1 + $0x4a8] sm:$0xff]
        %v710 = vld [vmem:[%s1 + $0x4b0] sm:$0xff]
        %v711 = vld [vmem:[%s1 + $0x4b8] sm:$0xff]
        %v712 = vld [vmem:[%s1 + $0x4c0] sm:$0xff]
        %v713 = vld [vmem:[%s1 + $0x4c8] sm:$0xff]
        %v714 = vld [vmem:[%s1 + $0x4d0] sm:$0xff]
        %v715 = vld [vmem:[%s1 + $0x4d8] sm:$0xff]
        %v716 = vld [vmem:[%s1 + $0x4e0] sm:$0xff]
        %v717 = vld [vmem:[%s1 + $0x4e8] sm:$0xff]
        %v718 = vld [vmem:[%s1 + $0x4f0] sm:$0xff]
        %v719 = vld [vmem:[%s1 + $0x4f8] sm:$0xff]
        %v720 = vld [vmem:[%s1 + $0x500] sm:$0xff]
        %v721 = vld [vmem:[%s1 + $0x508] sm:$0xff]
        %v722 = vld [vmem:[%s1 + $0x510] sm:$0xff]
        %v723 = vld [vmem:[%s1 + $0x518] sm:$0xff]
        %v724 = vld [vmem:[%s1 + $0x520] sm:$0xff]
        %v725 = vld [vmem:[%s1 + $0x528] sm:$0xff]
        %v726 = vld [vmem:[%s1 + $0x530] sm:$0xff]
        %v727 = vld [vmem:[%s1 + $0x538] sm:$0xff]
        %v728 = vld [vmem:[%s1 + $0x540] sm:$0xff]
        %v729 = vld [vmem:[%s1 + $0x548] sm:$0xff]
        %v730 = vld [vmem:[%s1 + $0x550] sm:$0xff]
        %v731 = vld [vmem:[%s1 + $0x558] sm:$0xff]
        %v732 = vld [vmem:[%s1 + $0x560] sm:$0xff]
        %v733 = vld [vmem:[%s1 + $0x568] sm:$0xff]
        %v734 = vld [vmem:[%s1 + $0x570] sm:$0xff]
        %v735 = vld [vmem:[%s1 + $0x578] sm:$0xff]
        %v736 = vld [vmem:[%s1 + $0x580] sm:$0xff]
        %v737 = vld [vmem:[%s1 + $0x588] sm:$0xff]
        %v738 = vld [vmem:[%s1 + $0x590] sm:$0xff]
        %v739 = vld [vmem:[%s1 + $0x598] sm:$0xff]
        %v740 = vld [vmem:[%s1 + $0x5a0] sm:$0xff]
        %v741 = vld [vmem:[%s1 + $0x5a8] sm:$0xff]
        %v742 = vld [vmem:[%s1 + $0x5b0] sm:$0xff]
        %v743 = vld [vmem:[%s1 + $0x5b8] sm:$0xff]
        %v744 = vld [vmem:[%s1 + $0x5c0] sm:$0xff]
        %v745 = vld [vmem:[%s1 + $0x5c8] sm:$0xff]
        %v746 = vld [vmem:[%s1 + $0x5d0] sm:$0xff]
        %v747 = vld [vmem:[%s1 + $0x5d8] sm:$0xff]
        %v748 = vld [vmem:[%s1 + $0x5e0] sm:$0xff]
        %v749 = vld [vmem:[%s1 + $0x5e8] sm:$0xff]
        %v750 = vld [vmem:[%s1 + $0x5f0] sm:$0xff]
        %v751 = vld [vmem:[%s1 + $0x5f8] sm:$0xff]
        %v752 = vld [vmem:[%s1 + $0x600] sm:$0xff]
        %v753 = vld [vmem:[%s1 + $0x608] sm:$0xff]
        %v754 = vld [vmem:[%s1 + $0x610] sm:$0xff]
        %v755 = vld [vmem:[%s1 + $0x618] sm:$0xff]
        %v756 = vld [vmem:[%s2] sm:$0xf]
        %v758 = vlaneseq
        %v759 = vshrl.u32 %v758, 7
        %v760 = vsub.s32 0, %v759
        %v761 = vrot.slane %v756, %v760
        %v762 = vlaneseq
        %v763 = vshrl.u32 %v762, 7
        %v764 = vsub.s32 1, %v763
        %v765 = vrot.slane %v756, %v764
        %v766 = vlaneseq
        %v767 = vshrl.u32 %v766, 7
        %v768 = vsub.s32 2, %v767
        %v769 = vrot.slane %v756, %v768
        %v770 = vlaneseq
        %v771 = vshrl.u32 %v770, 7
        %v772 = vsub.s32 3, %v771
        %v773 = vrot.slane %v756, %v772
        %v974 = vunpack.c.l.b16 %v560
        %v975 = vunpack.c.h.b16 %v560
        %v976 = vunpack.c.l.b16 %v561
        %v977 = vunpack.c.h.b16 %v561
        %v978 = vunpack.c.l.b16 %v562
        %v979 = vunpack.c.h.b16 %v562
        %v980 = vunpack.c.l.b16 %v563
        %v981 = vunpack.c.h.b16 %v563
        %v982 = vunpack.c.l.b16 %v564
        %v983 = vunpack.c.h.b16 %v564
        %v984 = vunpack.c.l.b16 %v565
        %v985 = vunpack.c.h.b16 %v565
        %v986 = vunpack.c.l.b16 %v566
        %v987 = vunpack.c.h.b16 %v566
        %v988 = vunpack.c.l.b16 %v567
        %v989 = vunpack.c.h.b16 %v567
        %v990 = vunpack.c.l.b16 %v568
        %v991 = vunpack.c.h.b16 %v568
        %v992 = vunpack.c.l.b16 %v569
        %v993 = vunpack.c.h.b16 %v569
        %v994 = vunpack.c.l.b16 %v570
        %v995 = vunpack.c.h.b16 %v570
        %v996 = vunpack.c.l.b16 %v571
        %v997 = vunpack.c.h.b16 %v571
        %v998 = vunpack.c.l.b16 %v572
        %v999 = vunpack.c.h.b16 %v572
        %v1000 = vunpack.c.l.b16 %v573
        %v1001 = vunpack.c.h.b16 %v573
        %v1002 = vunpack.c.l.b16 %v574
        %v1003 = vunpack.c.h.b16 %v574
        %v1004 = vunpack.c.l.b16 %v575
        %v1005 = vunpack.c.h.b16 %v575
        %v1006 = vunpack.c.l.b16 %v576
        %v1007 = vunpack.c.h.b16 %v576
        %v1008 = vunpack.c.l.b16 %v577
        %v1009 = vunpack.c.h.b16 %v577
        %v1010 = vunpack.c.l.b16 %v578
        %v1011 = vunpack.c.h.b16 %v578
        %v1012 = vunpack.c.l.b16 %v579
        %v1013 = vunpack.c.h.b16 %v579
        %v1014 = vunpack.c.l.b16 %v580
        %v1015 = vunpack.c.h.b16 %v580
        %v1016 = vunpack.c.l.b16 %v581
        %v1017 = vunpack.c.h.b16 %v581
        %v1018 = vunpack.c.l.b16 %v582
        %v1019 = vunpack.c.h.b16 %v582
        %v1020 = vunpack.c.l.b16 %v583
        %v1021 = vunpack.c.h.b16 %v583
        %v1022 = vunpack.c.l.b16 %v584
        %v1023 = vunpack.c.h.b16 %v584
        %v1024 = vunpack.c.l.b16 %v585
        %v1025 = vunpack.c.h.b16 %v585
        %v1026 = vunpack.c.l.b16 %v586
        %v1027 = vunpack.c.h.b16 %v586
        %v1028 = vunpack.c.l.b16 %v587
        %v1029 = vunpack.c.h.b16 %v587
        %v1030 = vunpack.c.l.b16 %v588
        %v1031 = vunpack.c.h.b16 %v588
        %v1032 = vunpack.c.l.b16 %v589
        %v1033 = vunpack.c.h.b16 %v589
        %v1034 = vunpack.c.l.b16 %v590
        %v1035 = vunpack.c.h.b16 %v590
        %v1036 = vunpack.c.l.b16 %v591
        %v1037 = vunpack.c.h.b16 %v591
        %v1038 = vunpack.c.l.b16 %v592
        %v1039 = vunpack.c.h.b16 %v592
        %v1040 = vunpack.c.l.b16 %v593
        %v1041 = vunpack.c.h.b16 %v593
        %v1042 = vunpack.c.l.b16 %v594
        %v1043 = vunpack.c.h.b16 %v594
        %v1044 = vunpack.c.l.b16 %v595
        %v1045 = vunpack.c.h.b16 %v595
        %v1046 = vunpack.c.l.b16 %v596
        %v1047 = vunpack.c.h.b16 %v596
        %v1048 = vunpack.c.l.b16 %v597
        %v1049 = vunpack.c.h.b16 %v597
        %v1050 = vunpack.c.l.b16 %v598
        %v1051 = vunpack.c.h.b16 %v598
        %v1052 = vunpack.c.l.b16 %v599
        %v1053 = vunpack.c.h.b16 %v599
        %v1054 = vunpack.c.l.b16 %v600
        %v1055 = vunpack.c.h.b16 %v600
        %v1056 = vunpack.c.l.b16 %v601
        %v1057 = vunpack.c.h.b16 %v601
        %v1058 = vunpack.c.l.b16 %v602
        %v1059 = vunpack.c.h.b16 %v602
        %v1060 = vunpack.c.l.b16 %v603
        %v1061 = vunpack.c.h.b16 %v603
        %v1062 = vunpack.c.l.b16 %v604
        %v1063 = vunpack.c.h.b16 %v604
        %v1064 = vunpack.c.l.b16 %v605
        %v1065 = vunpack.c.h.b16 %v605
        %v1066 = vunpack.c.l.b16 %v606
        %v1067 = vunpack.c.h.b16 %v606
        %v1068 = vunpack.c.l.b16 %v607
        %v1069 = vunpack.c.h.b16 %v607
        %v1070 = vunpack.c.l.b16 %v608
        %v1071 = vunpack.c.h.b16 %v608
        %v1072 = vunpack.c.l.b16 %v609
        %v1073 = vunpack.c.h.b16 %v609
        %v1074 = vunpack.c.l.b16 %v610
        %v1075 = vunpack.c.h.b16 %v610
        %v1076 = vunpack.c.l.b16 %v611
        %v1077 = vunpack.c.h.b16 %v611
        %v1078 = vunpack.c.l.b16 %v612
        %v1079 = vunpack.c.h.b16 %v612
        %v1080 = vunpack.c.l.b16 %v613
        %v1081 = vunpack.c.h.b16 %v613
        %v1082 = vunpack.c.l.b16 %v614
        %v1083 = vunpack.c.h.b16 %v614
        %v1084 = vunpack.c.l.b16 %v615
        %v1085 = vunpack.c.h.b16 %v615
        %v1086 = vunpack.c.l.b16 %v616
        %v1087 = vunpack.c.h.b16 %v616
        %v1088 = vunpack.c.l.b16 %v617
        %v1089 = vunpack.c.h.b16 %v617
        %v1090 = vunpack.c.l.b16 %v618
        %v1091 = vunpack.c.h.b16 %v618
        %v1092 = vunpack.c.l.b16 %v619
        %v1093 = vunpack.c.h.b16 %v619
        %v1094 = vunpack.c.l.b16 %v620
        %v1095 = vunpack.c.h.b16 %v620
        %v1096 = vunpack.c.l.b16 %v621
        %v1097 = vunpack.c.h.b16 %v621
        %v1098 = vunpack.c.l.b16 %v622
        %v1099 = vunpack.c.h.b16 %v622
        %v1100 = vunpack.c.l.b16 %v623
        %v1101 = vunpack.c.h.b16 %v623
        %v1102 = vunpack.c.l.b16 %v624
        %v1103 = vunpack.c.h.b16 %v624
        %v1104 = vunpack.c.l.b16 %v625
        %v1105 = vunpack.c.h.b16 %v625
        %v1106 = vunpack.c.l.b16 %v626
        %v1107 = vunpack.c.h.b16 %v626
        %v1108 = vunpack.c.l.b16 %v627
        %v1109 = vunpack.c.h.b16 %v627
        %v1110 = vunpack.c.l.b16 %v628
        %v1111 = vunpack.c.h.b16 %v628
        %v1112 = vunpack.c.l.b16 %v629
        %v1113 = vunpack.c.h.b16 %v629
        %v1114 = vunpack.c.l.b16 %v630
        %v1115 = vunpack.c.h.b16 %v630
        %v1116 = vunpack.c.l.b16 %v631
        %v1117 = vunpack.c.h.b16 %v631
        %v1118 = vunpack.c.l.b16 %v632
        %v1119 = vunpack.c.h.b16 %v632
        %v1120 = vunpack.c.l.b16 %v633
        %v1121 = vunpack.c.h.b16 %v633
        %v1122 = vunpack.c.l.b16 %v634
        %v1123 = vunpack.c.h.b16 %v634
        %v1124 = vunpack.c.l.b16 %v635
        %v1125 = vunpack.c.h.b16 %v635
        %v1126 = vunpack.c.l.b16 %v636
        %v1127 = vunpack.c.h.b16 %v636
        %v1128 = vunpack.c.l.b16 %v637
        %v1129 = vunpack.c.h.b16 %v637
        %v1130 = vunpack.c.l.b16 %v638
        %v1131 = vunpack.c.h.b16 %v638
        %v1132 = vunpack.c.l.b16 %v639
        %v1133 = vunpack.c.h.b16 %v639
        %v1134 = vunpack.c.l.b16 %v640
        %v1135 = vunpack.c.h.b16 %v640
        %v1136 = vunpack.c.l.b16 %v641
        %v1137 = vunpack.c.h.b16 %v641
        %v1138 = vunpack.c.l.b16 %v642
        %v1139 = vunpack.c.h.b16 %v642
        %v1140 = vunpack.c.l.b16 %v643
        %v1141 = vunpack.c.h.b16 %v643
        %v1142 = vunpack.c.l.b16 %v644
        %v1143 = vunpack.c.h.b16 %v644
        %v1144 = vunpack.c.l.b16 %v645
        %v1145 = vunpack.c.h.b16 %v645
        %v1146 = vunpack.c.l.b16 %v646
        %v1147 = vunpack.c.h.b16 %v646
        %v1148 = vunpack.c.l.b16 %v647
        %v1149 = vunpack.c.h.b16 %v647
        %v1150 = vunpack.c.l.b16 %v648
        %v1151 = vunpack.c.h.b16 %v648
        %v1152 = vunpack.c.l.b16 %v649
        %v1153 = vunpack.c.h.b16 %v649
        %v1154 = vunpack.c.l.b16 %v650
        %v1155 = vunpack.c.h.b16 %v650
        %v1156 = vunpack.c.l.b16 %v651
        %v1157 = vunpack.c.h.b16 %v651
        %v1158 = vunpack.c.l.b16 %v652
        %v1159 = vunpack.c.h.b16 %v652
        %v1160 = vunpack.c.l.b16 %v653
        %v1161 = vunpack.c.h.b16 %v653
        %v1162 = vunpack.c.l.b16 %v654
        %v1163 = vunpack.c.h.b16 %v654
        %v1164 = vunpack.c.l.b16 %v655
        %v1165 = vunpack.c.h.b16 %v655
        %v1166 = vunpack.c.l.b16 %v656
        %v1167 = vunpack.c.h.b16 %v656
        %v1168 = vunpack.c.l.b16 %v657
        %v1169 = vunpack.c.h.b16 %v657
        %v1170 = vunpack.c.l.b16 %v658
        %v1171 = vunpack.c.h.b16 %v658
        %v1172 = vunpack.c.l.b16 %v659
        %v1173 = vunpack.c.h.b16 %v659
        %v1174 = vunpack.c.l.b16 %v660
        %v1175 = vunpack.c.h.b16 %v660
        %v1176 = vunpack.c.l.b16 %v661
        %v1177 = vunpack.c.h.b16 %v661
        %v1178 = vunpack.c.l.b16 %v662
        %v1179 = vunpack.c.h.b16 %v662
        %v1180 = vunpack.c.l.b16 %v663
        %v1181 = vunpack.c.h.b16 %v663
        %v1182 = vunpack.c.l.b16 %v664
        %v1183 = vunpack.c.h.b16 %v664
        %v1184 = vunpack.c.l.b16 %v665
        %v1185 = vunpack.c.h.b16 %v665
        %v1186 = vunpack.c.l.b16 %v666
        %v1187 = vunpack.c.h.b16 %v666
        %v1188 = vunpack.c.l.b16 %v667
        %v1189 = vunpack.c.h.b16 %v667
        %v1190 = vunpack.c.l.b16 %v668
        %v1191 = vunpack.c.h.b16 %v668
        %v1192 = vunpack.c.l.b16 %v669
        %v1193 = vunpack.c.h.b16 %v669
        %v1194 = vunpack.c.l.b16 %v670
        %v1195 = vunpack.c.h.b16 %v670
        %v1196 = vunpack.c.l.b16 %v671
        %v1197 = vunpack.c.h.b16 %v671
        %v1198 = vunpack.c.l.b16 %v672
        %v1199 = vunpack.c.h.b16 %v672
        %v1200 = vunpack.c.l.b16 %v673
        %v1201 = vunpack.c.h.b16 %v673
        %v1202 = vunpack.c.l.b16 %v674
        %v1203 = vunpack.c.h.b16 %v674
        %v1204 = vunpack.c.l.b16 %v675
        %v1205 = vunpack.c.h.b16 %v675
        %v1206 = vunpack.c.l.b16 %v676
        %v1207 = vunpack.c.h.b16 %v676
        %v1208 = vunpack.c.l.b16 %v677
        %v1209 = vunpack.c.h.b16 %v677
        %v1210 = vunpack.c.l.b16 %v678
        %v1211 = vunpack.c.h.b16 %v678
        %v1212 = vunpack.c.l.b16 %v679
        %v1213 = vunpack.c.h.b16 %v679
        %v1214 = vunpack.c.l.b16 %v680
        %v1215 = vunpack.c.h.b16 %v680
        %v1216 = vunpack.c.l.b16 %v681
        %v1217 = vunpack.c.h.b16 %v681
        %v1218 = vunpack.c.l.b16 %v682
        %v1219 = vunpack.c.h.b16 %v682
        %v1220 = vunpack.c.l.b16 %v683
        %v1221 = vunpack.c.h.b16 %v683
        %v1222 = vunpack.c.l.b16 %v684
        %v1223 = vunpack.c.h.b16 %v684
        %v1224 = vunpack.c.l.b16 %v685
        %v1225 = vunpack.c.h.b16 %v685
        %v1226 = vunpack.c.l.b16 %v686
        %v1227 = vunpack.c.h.b16 %v686
        %v1228 = vunpack.c.l.b16 %v687
        %v1229 = vunpack.c.h.b16 %v687
        %v1230 = vunpack.c.l.b16 %v688
        %v1231 = vunpack.c.h.b16 %v688
        %v1232 = vunpack.c.l.b16 %v689
        %v1233 = vunpack.c.h.b16 %v689
        %v1234 = vunpack.c.l.b16 %v690
        %v1235 = vunpack.c.h.b16 %v690
        %v1236 = vunpack.c.l.b16 %v691
        %v1237 = vunpack.c.h.b16 %v691
        %v1238 = vunpack.c.l.b16 %v692
        %v1239 = vunpack.c.h.b16 %v692
        %v1240 = vunpack.c.l.b16 %v693
        %v1241 = vunpack.c.h.b16 %v693
        %v1242 = vunpack.c.l.b16 %v694
        %v1243 = vunpack.c.h.b16 %v694
        %v1244 = vunpack.c.l.b16 %v695
        %v1245 = vunpack.c.h.b16 %v695
        %v1246 = vunpack.c.l.b16 %v696
        %v1247 = vunpack.c.h.b16 %v696
        %v1248 = vunpack.c.l.b16 %v697
        %v1249 = vunpack.c.h.b16 %v697
        %v1250 = vunpack.c.l.b16 %v698
        %v1251 = vunpack.c.h.b16 %v698
        %v1252 = vunpack.c.l.b16 %v699
        %v1253 = vunpack.c.h.b16 %v699
        %v1254 = vunpack.c.l.b16 %v700
        %v1255 = vunpack.c.h.b16 %v700
        %v1256 = vunpack.c.l.b16 %v701
        %v1257 = vunpack.c.h.b16 %v701
        %v1258 = vunpack.c.l.b16 %v702
        %v1259 = vunpack.c.h.b16 %v702
        %v1260 = vunpack.c.l.b16 %v703
        %v1261 = vunpack.c.h.b16 %v703
        %v1262 = vunpack.c.l.b16 %v704
        %v1263 = vunpack.c.h.b16 %v704
        %v1264 = vunpack.c.l.b16 %v705
        %v1265 = vunpack.c.h.b16 %v705
        %v1266 = vunpack.c.l.b16 %v706
        %v1267 = vunpack.c.h.b16 %v706
        %v1268 = vunpack.c.l.b16 %v707
        %v1269 = vunpack.c.h.b16 %v707
        %v1270 = vunpack.c.l.b16 %v708
        %v1271 = vunpack.c.h.b16 %v708
        %v1272 = vunpack.c.l.b16 %v709
        %v1273 = vunpack.c.h.b16 %v709
        %v1274 = vunpack.c.l.b16 %v710
        %v1275 = vunpack.c.h.b16 %v710
        %v1276 = vunpack.c.l.b16 %v711
        %v1277 = vunpack.c.h.b16 %v711
        %v1278 = vunpack.c.l.b16 %v712
        %v1279 = vunpack.c.h.b16 %v712
        %v1280 = vunpack.c.l.b16 %v713
        %v1281 = vunpack.c.h.b16 %v713
        %v1282 = vunpack.c.l.b16 %v714
        %v1283 = vunpack.c.h.b16 %v714
        %v1284 = vunpack.c.l.b16 %v715
        %v1285 = vunpack.c.h.b16 %v715
        %v1286 = vunpack.c.l.b16 %v716
        %v1287 = vunpack.c.h.b16 %v716
        %v1288 = vunpack.c.l.b16 %v717
        %v1289 = vunpack.c.h.b16 %v717
        %v1290 = vunpack.c.l.b16 %v718
        %v1291 = vunpack.c.h.b16 %v718
        %v1292 = vunpack.c.l.b16 %v719
        %v1293 = vunpack.c.h.b16 %v719
        %v1294 = vunpack.c.l.b16 %v720
        %v1295 = vunpack.c.h.b16 %v720
        %v1296 = vunpack.c.l.b16 %v721
        %v1297 = vunpack.c.h.b16 %v721
        %v1298 = vunpack.c.l.b16 %v722
        %v1299 = vunpack.c.h.b16 %v722
        %v1300 = vunpack.c.l.b16 %v723
        %v1301 = vunpack.c.h.b16 %v723
        %v1302 = vunpack.c.l.b16 %v724
        %v1303 = vunpack.c.h.b16 %v724
        %v1304 = vunpack.c.l.b16 %v725
        %v1305 = vunpack.c.h.b16 %v725
        %v1306 = vunpack.c.l.b16 %v726
        %v1307 = vunpack.c.h.b16 %v726
        %v1308 = vunpack.c.l.b16 %v727
        %v1309 = vunpack.c.h.b16 %v727
        %v1310 = vunpack.c.l.b16 %v728
        %v1311 = vunpack.c.h.b16 %v728
        %v1312 = vunpack.c.l.b16 %v729
        %v1313 = vunpack.c.h.b16 %v729
        %v1314 = vunpack.c.l.b16 %v730
        %v1315 = vunpack.c.h.b16 %v730
        %v1316 = vunpack.c.l.b16 %v731
        %v1317 = vunpack.c.h.b16 %v731
        %v1318 = vunpack.c.l.b16 %v732
        %v1319 = vunpack.c.h.b16 %v732
        %v1320 = vunpack.c.l.b16 %v733
        %v1321 = vunpack.c.h.b16 %v733
        %v1322 = vunpack.c.l.b16 %v734
        %v1323 = vunpack.c.h.b16 %v734
        %v1324 = vunpack.c.l.b16 %v735
        %v1325 = vunpack.c.h.b16 %v735
        %v1326 = vunpack.c.l.b16 %v736
        %v1327 = vunpack.c.h.b16 %v736
        %v1328 = vunpack.c.l.b16 %v737
        %v1329 = vunpack.c.h.b16 %v737
        %v1330 = vunpack.c.l.b16 %v738
        %v1331 = vunpack.c.h.b16 %v738
        %v1332 = vunpack.c.l.b16 %v739
        %v1333 = vunpack.c.h.b16 %v739
        %v1334 = vunpack.c.l.b16 %v740
        %v1335 = vunpack.c.h.b16 %v740
        %v1336 = vunpack.c.l.b16 %v741
        %v1337 = vunpack.c.h.b16 %v741
        %v1338 = vunpack.c.l.b16 %v742
        %v1339 = vunpack.c.h.b16 %v742
        %v1340 = vunpack.c.l.b16 %v743
        %v1341 = vunpack.c.h.b16 %v743
        %v1342 = vunpack.c.l.b16 %v744
        %v1343 = vunpack.c.h.b16 %v744
        %v1344 = vunpack.c.l.b16 %v745
        %v1345 = vunpack.c.h.b16 %v745
        %v1346 = vunpack.c.l.b16 %v746
        %v1347 = vunpack.c.h.b16 %v746
        %v1348 = vunpack.c.l.b16 %v747
        %v1349 = vunpack.c.h.b16 %v747
        %v1350 = vunpack.c.l.b16 %v748
        %v1351 = vunpack.c.h.b16 %v748
        %v1352 = vunpack.c.l.b16 %v749
        %v1353 = vunpack.c.h.b16 %v749
        %v1354 = vunpack.c.l.b16 %v750
        %v1355 = vunpack.c.h.b16 %v750
        %v1356 = vunpack.c.l.b16 %v751
        %v1357 = vunpack.c.h.b16 %v751
        %v1358 = vunpack.c.l.b16 %v752
        %v1359 = vunpack.c.h.b16 %v752
        %v1360 = vunpack.c.l.b16 %v753
        %v1361 = vunpack.c.h.b16 %v753
        %v1362 = vunpack.c.l.b16 %v754
        %v1363 = vunpack.c.h.b16 %v754
        %v1364 = vunpack.c.l.b16 %v755
        %v1365 = vunpack.c.h.b16 %v755
        %v1366 = vpack.c.b16 %v978, %v974
        %v1367 = vpack.c.b16 %v979, %v975
        %v1368 = vpack.c.b16 %v980, %v976
        %v1369 = vpack.c.b16 %v981, %v977
        %v1370 = vpack.c.b16 %v986, %v982
        %v1371 = vpack.c.b16 %v987, %v983
        %v1372 = vpack.c.b16 %v988, %v984
        %v1373 = vpack.c.b16 %v989, %v985
        %v1374 = vpack.c.b16 %v994, %v990
        %v1375 = vpack.c.b16 %v995, %v991
        %v1376 = vpack.c.b16 %v996, %v992
        %v1377 = vpack.c.b16 %v997, %v993
        %v1378 = vpack.c.b16 %v1002, %v998
        %v1379 = vpack.c.b16 %v1003, %v999
        %v1380 = vpack.c.b16 %v1004, %v1000
        %v1381 = vpack.c.b16 %v1005, %v1001
        %v1382 = vpack.c.b16 %v1010, %v1006
        %v1383 = vpack.c.b16 %v1011, %v1007
        %v1384 = vpack.c.b16 %v1012, %v1008
        %v1385 = vpack.c.b16 %v1013, %v1009
        %v1386 = vpack.c.b16 %v1018, %v1014
        %v1387 = vpack.c.b16 %v1019, %v1015
        %v1388 = vpack.c.b16 %v1020, %v1016
        %v1389 = vpack.c.b16 %v1021, %v1017
        %v1390 = vpack.c.b16 %v1026, %v1022
        %v1391 = vpack.c.b16 %v1027, %v1023
        %v1392 = vpack.c.b16 %v1028, %v1024
        %v1393 = vpack.c.b16 %v1029, %v1025
        %v1394 = vpack.c.b16 %v1034, %v1030
        %v1395 = vpack.c.b16 %v1035, %v1031
        %v1396 = vpack.c.b16 %v1036, %v1032
        %v1397 = vpack.c.b16 %v1037, %v1033
        %v1398 = vpack.c.b16 %v1042, %v1038
        %v1399 = vpack.c.b16 %v1043, %v1039
        %v1400 = vpack.c.b16 %v1044, %v1040
        %v1401 = vpack.c.b16 %v1045, %v1041
        %v1402 = vpack.c.b16 %v1050, %v1046
        %v1403 = vpack.c.b16 %v1051, %v1047
        %v1404 = vpack.c.b16 %v1052, %v1048
        %v1405 = vpack.c.b16 %v1053, %v1049
        %v1406 = vpack.c.b16 %v1058, %v1054
        %v1407 = vpack.c.b16 %v1059, %v1055
        %v1408 = vpack.c.b16 %v1060, %v1056
        %v1409 = vpack.c.b16 %v1061, %v1057
        %v1410 = vpack.c.b16 %v1066, %v1062
        %v1411 = vpack.c.b16 %v1067, %v1063
        %v1412 = vpack.c.b16 %v1068, %v1064
        %v1413 = vpack.c.b16 %v1069, %v1065
        %v1414 = vpack.c.b16 %v1074, %v1070
        %v1415 = vpack.c.b16 %v1075, %v1071
        %v1416 = vpack.c.b16 %v1076, %v1072
        %v1417 = vpack.c.b16 %v1077, %v1073
        %v1418 = vpack.c.b16 %v1082, %v1078
        %v1419 = vpack.c.b16 %v1083, %v1079
        %v1420 = vpack.c.b16 %v1084, %v1080
        %v1421 = vpack.c.b16 %v1085, %v1081
        %v1422 = vpack.c.b16 %v1090, %v1086
        %v1423 = vpack.c.b16 %v1091, %v1087
        %v1424 = vpack.c.b16 %v1092, %v1088
        %v1425 = vpack.c.b16 %v1093, %v1089
        %v1426 = vpack.c.b16 %v1098, %v1094
        %v1427 = vpack.c.b16 %v1099, %v1095
        %v1428 = vpack.c.b16 %v1100, %v1096
        %v1429 = vpack.c.b16 %v1101, %v1097
        %v1430 = vpack.c.b16 %v1106, %v1102
        %v1431 = vpack.c.b16 %v1107, %v1103
        %v1432 = vpack.c.b16 %v1108, %v1104
        %v1433 = vpack.c.b16 %v1109, %v1105
        %v1434 = vpack.c.b16 %v1114, %v1110
        %v1435 = vpack.c.b16 %v1115, %v1111
        %v1436 = vpack.c.b16 %v1116, %v1112
        %v1437 = vpack.c.b16 %v1117, %v1113
        %v1438 = vpack.c.b16 %v1122, %v1118
        %v1439 = vpack.c.b16 %v1123, %v1119
        %v1440 = vpack.c.b16 %v1124, %v1120
        %v1441 = vpack.c.b16 %v1125, %v1121
        %v1442 = vpack.c.b16 %v1130, %v1126
        %v1443 = vpack.c.b16 %v1131, %v1127
        %v1444 = vpack.c.b16 %v1132, %v1128
        %v1445 = vpack.c.b16 %v1133, %v1129
        %v1446 = vpack.c.b16 %v1138, %v1134
        %v1447 = vpack.c.b16 %v1139, %v1135
        %v1448 = vpack.c.b16 %v1140, %v1136
        %v1449 = vpack.c.b16 %v1141, %v1137
        %v1450 = vpack.c.b16 %v1146, %v1142
        %v1451 = vpack.c.b16 %v1147, %v1143
        %v1452 = vpack.c.b16 %v1148, %v1144
        %v1453 = vpack.c.b16 %v1149, %v1145
        %v1454 = vpack.c.b16 %v1154, %v1150
        %v1455 = vpack.c.b16 %v1155, %v1151
        %v1456 = vpack.c.b16 %v1156, %v1152
        %v1457 = vpack.c.b16 %v1157, %v1153
        %v1458 = vpack.c.b16 %v1162, %v1158
        %v1459 = vpack.c.b16 %v1163, %v1159
        %v1460 = vpack.c.b16 %v1164, %v1160
        %v1461 = vpack.c.b16 %v1165, %v1161
        %v1462 = vpack.c.b16 %v1170, %v1166
        %v1463 = vpack.c.b16 %v1171, %v1167
        %v1464 = vpack.c.b16 %v1172, %v1168
        %v1465 = vpack.c.b16 %v1173, %v1169
        %v1466 = vpack.c.b16 %v1178, %v1174
        %v1467 = vpack.c.b16 %v1179, %v1175
        %v1468 = vpack.c.b16 %v1180, %v1176
        %v1469 = vpack.c.b16 %v1181, %v1177
        %v1470 = vpack.c.b16 %v1186, %v1182
        %v1471 = vpack.c.b16 %v1187, %v1183
        %v1472 = vpack.c.b16 %v1188, %v1184
        %v1473 = vpack.c.b16 %v1189, %v1185
        %v1474 = vpack.c.b16 %v1194, %v1190
        %v1475 = vpack.c.b16 %v1195, %v1191
        %v1476 = vpack.c.b16 %v1196, %v1192
        %v1477 = vpack.c.b16 %v1197, %v1193
        %v1478 = vpack.c.b16 %v1202, %v1198
        %v1479 = vpack.c.b16 %v1203, %v1199
        %v1480 = vpack.c.b16 %v1204, %v1200
        %v1481 = vpack.c.b16 %v1205, %v1201
        %v1482 = vpack.c.b16 %v1210, %v1206
        %v1483 = vpack.c.b16 %v1211, %v1207
        %v1484 = vpack.c.b16 %v1212, %v1208
        %v1485 = vpack.c.b16 %v1213, %v1209
        %v1486 = vpack.c.b16 %v1218, %v1214
        %v1487 = vpack.c.b16 %v1219, %v1215
        %v1488 = vpack.c.b16 %v1220, %v1216
        %v1489 = vpack.c.b16 %v1221, %v1217
        %v1490 = vpack.c.b16 %v1226, %v1222
        %v1491 = vpack.c.b16 %v1227, %v1223
        %v1492 = vpack.c.b16 %v1228, %v1224
        %v1493 = vpack.c.b16 %v1229, %v1225
        %v1494 = vpack.c.b16 %v1234, %v1230
        %v1495 = vpack.c.b16 %v1235, %v1231
        %v1496 = vpack.c.b16 %v1236, %v1232
        %v1497 = vpack.c.b16 %v1237, %v1233
        %v1498 = vpack.c.b16 %v1242, %v1238
        %v1499 = vpack.c.b16 %v1243, %v1239
        %v1500 = vpack.c.b16 %v1244, %v1240
        %v1501 = vpack.c.b16 %v1245, %v1241
        %v1502 = vpack.c.b16 %v1250, %v1246
        %v1503 = vpack.c.b16 %v1251, %v1247
        %v1504 = vpack.c.b16 %v1252, %v1248
        %v1505 = vpack.c.b16 %v1253, %v1249
        %v1506 = vpack.c.b16 %v1258, %v1254
        %v1507 = vpack.c.b16 %v1259, %v1255
        %v1508 = vpack.c.b16 %v1260, %v1256
        %v1509 = vpack.c.b16 %v1261, %v1257
        %v1510 = vpack.c.b16 %v1266, %v1262
        %v1511 = vpack.c.b16 %v1267, %v1263
        %v1512 = vpack.c.b16 %v1268, %v1264
        %v1513 = vpack.c.b16 %v1269, %v1265
        %v1514 = vpack.c.b16 %v1274, %v1270
        %v1515 = vpack.c.b16 %v1275, %v1271
        %v1516 = vpack.c.b16 %v1276, %v1272
        %v1517 = vpack.c.b16 %v1277, %v1273
        %v1518 = vpack.c.b16 %v1282, %v1278
        %v1519 = vpack.c.b16 %v1283, %v1279
        %v1520 = vpack.c.b16 %v1284, %v1280
        %v1521 = vpack.c.b16 %v1285, %v1281
        %v1522 = vpack.c.b16 %v1290, %v1286
        %v1523 = vpack.c.b16 %v1291, %v1287
        %v1524 = vpack.c.b16 %v1292, %v1288
        %v1525 = vpack.c.b16 %v1293, %v1289
        %v1526 = vpack.c.b16 %v1298, %v1294
        %v1527 = vpack.c.b16 %v1299, %v1295
        %v1528 = vpack.c.b16 %v1300, %v1296
        %v1529 = vpack.c.b16 %v1301, %v1297
        %v1530 = vpack.c.b16 %v1306, %v1302
        %v1531 = vpack.c.b16 %v1307, %v1303
        %v1532 = vpack.c.b16 %v1308, %v1304
        %v1533 = vpack.c.b16 %v1309, %v1305
        %v1534 = vpack.c.b16 %v1314, %v1310
        %v1535 = vpack.c.b16 %v1315, %v1311
        %v1536 = vpack.c.b16 %v1316, %v1312
        %v1537 = vpack.c.b16 %v1317, %v1313
        %v1538 = vpack.c.b16 %v1322, %v1318
        %v1539 = vpack.c.b16 %v1323, %v1319
        %v1540 = vpack.c.b16 %v1324, %v1320
        %v1541 = vpack.c.b16 %v1325, %v1321
        %v1542 = vpack.c.b16 %v1330, %v1326
        %v1543 = vpack.c.b16 %v1331, %v1327
        %v1544 = vpack.c.b16 %v1332, %v1328
        %v1545 = vpack.c.b16 %v1333, %v1329
        %v1546 = vpack.c.b16 %v1338, %v1334
        %v1547 = vpack.c.b16 %v1339, %v1335
        %v1548 = vpack.c.b16 %v1340, %v1336
        %v1549 = vpack.c.b16 %v1341, %v1337
        %v1550 = vpack.c.b16 %v1346, %v1342
        %v1551 = vpack.c.b16 %v1347, %v1343
        %v1552 = vpack.c.b16 %v1348, %v1344
        %v1553 = vpack.c.b16 %v1349, %v1345
        %v1554 = vpack.c.b16 %v1354, %v1350
        %v1555 = vpack.c.b16 %v1355, %v1351
        %v1556 = vpack.c.b16 %v1356, %v1352
        %v1557 = vpack.c.b16 %v1357, %v1353
        %v1558 = vpack.c.b16 %v1362, %v1358
        %v1559 = vpack.c.b16 %v1363, %v1359
        %v1560 = vpack.c.b16 %v1364, %v1360
        %v1561 = vpack.c.b16 %v1365, %v1361
        %vm1758 = vcmask 130048
        %v1760 = vsel %vm1758, %v510, 0
        %v1763 = vsel %vm1758, %v517, 0
        %v1766 = vsel %vm1758, %v524, 0
        %v1769 = vsel %vm1758, %v531, 0
        %v1772 = vsel %vm1758, %v538, 0
        %v1775 = vsel %vm1758, %v545, 0
        %v1778 = vsel %vm1758, %v552, 0
        %v1781 = vsel %vm1758, %v559, 0
        %1783 = vmatprep.subr.bf16.mxu0 %v1367
        %1784 = vmatpush1.bf16.msra.mxu0 %v1366
        %1785 = vmatprep.subr.bf16.mxu0 %v1371
        %1786 = vmatpush1.bf16.msra.mxu0 %v1370
        %1787 = vmatprep.subr.bf16.mxu0 %v1375
        %1788 = vmatpush1.bf16.msra.mxu0 %v1374
        %1789 = vmatprep.subr.bf16.mxu0 %v1379
        %1790 = vmatpush1.bf16.msra.mxu0 %v1378
        %1791 = vmatprep.subr.bf16.mxu0 %v1383
        %1792 = vmatpush1.bf16.msra.mxu0 %v1382
        %1793 = vmatprep.subr.bf16.mxu0 %v1387
        %1794 = vmatpush1.bf16.msra.mxu0 %v1386
        %1795 = vmatprep.subr.bf16.mxu0 %v1391
        %1796 = vmatpush1.bf16.msra.mxu0 %v1390
        %1797 = vmatprep.subr.bf16.mxu0 %v1395
        %1798 = vmatpush1.bf16.msra.mxu0 %v1394
        %1799 = vmatprep.subr.bf16.mxu0 %v1399
        %1800 = vmatpush1.bf16.msra.mxu0 %v1398
        %1801 = vmatprep.subr.bf16.mxu0 %v1403
        %1802 = vmatpush1.bf16.msra.mxu0 %v1402
        %1803 = vmatprep.subr.bf16.mxu0 %v1407
        %1804 = vmatpush1.bf16.msra.mxu0 %v1406
        %1805 = vmatprep.subr.bf16.mxu0 %v1411
        %1806 = vmatpush1.bf16.msra.mxu0 %v1410
        %1807 = vmatprep.subr.bf16.mxu0 %v1415
        %1808 = vmatpush1.bf16.msra.mxu0 %v1414
        %1809 = vmatprep.subr.bf16.mxu0 %v1419
        %1810 = vmatpush1.bf16.msra.mxu0 %v1418
        %1811 = vmatprep.subr.bf16.mxu0 %v1423
        %1812 = vmatpush1.bf16.msra.mxu0 %v1422
        %1813 = vmatprep.subr.bf16.mxu0 %v1427
        %1814 = vmatpush1.bf16.msra.mxu0 %v1426
        %1815 = vmatprep.mubr.bf16.mxu0 %v505
        %1816 = vmatmul.mubr.bf16.gmra.mrb[0].mxu0 %v504
        %v1817 = vpop.f32.mrb[0].mxu0
        %v1818 = vadd.f32 %v761, %v1817
        %v1819 = vpop.f32.mrb[0].mxu0
        %v1820 = vadd.f32 %v765, %v1819
        %v1821 = vpop.f32.mrb[0].mxu0
        %v1822 = vadd.f32 %v761, %v1821
        %v1823 = vpop.f32.mrb[0].mxu0
        %v1824 = vadd.f32 %v765, %v1823
        %1825 = vmatprep.mubr.bf16.mxu0 %v512
        %1826 = vmatmul.mubr.bf16.gmra.mrb[0].mxu0 %v511
        %v1827 = vpop.f32.mrb[0].mxu0
        %v1828 = vadd.f32 %v761, %v1827
        %v1829 = vpop.f32.mrb[0].mxu0
        %v1830 = vadd.f32 %v765, %v1829
        %v1831 = vpop.f32.mrb[0].mxu0
        %v1832 = vadd.f32 %v761, %v1831
        %v1833 = vpop.f32.mrb[0].mxu0
        %v1834 = vadd.f32 %v765, %v1833
        %1835 = vmatprep.mubr.bf16.mxu0 %v519
        %1836 = vmatmul.mubr.bf16.gmra.mrb[0].mxu0 %v518
        %v1837 = vpop.f32.mrb[0].mxu0
        %v1838 = vadd.f32 %v761, %v1837
        %v1839 = vpop.f32.mrb[0].mxu0
        %v1840 = vadd.f32 %v765, %v1839
        %v1841 = vpop.f32.mrb[0].mxu0
        %v1842 = vadd.f32 %v761, %v1841
        %v1843 = vpop.f32.mrb[0].mxu0
        %v1844 = vadd.f32 %v765, %v1843
        %1845 = vmatprep.mubr.bf16.mxu0 %v526
        %1846 = vmatmul.mubr.bf16.gmra.mrb[0].mxu0 %v525
        %v1847 = vpop.f32.mrb[0].mxu0
        %v1848 = vadd.f32 %v761, %v1847
        %v1849 = vpop.f32.mrb[0].mxu0
        %v1850 = vadd.f32 %v765, %v1849
        %v1851 = vpop.f32.mrb[0].mxu0
        %v1852 = vadd.f32 %v761, %v1851
        %v1853 = vpop.f32.mrb[0].mxu0
        %v1854 = vadd.f32 %v765, %v1853
        %1855 = vmatprep.mubr.bf16.mxu0 %v533
        %1856 = vmatmul.mubr.bf16.gmra.mrb[0].mxu0 %v532
        %v1857 = vpop.f32.mrb[0].mxu0
        %v1858 = vadd.f32 %v761, %v1857
        %v1859 = vpop.f32.mrb[0].mxu0
        %v1860 = vadd.f32 %v765, %v1859
        %v1861 = vpop.f32.mrb[0].mxu0
        %v1862 = vadd.f32 %v761, %v1861
        %v1863 = vpop.f32.mrb[0].mxu0
        %v1864 = vadd.f32 %v765, %v1863
        %1865 = vmatprep.mubr.bf16.mxu0 %v540
        %1866 = vmatmul.mubr.bf16.gmra.mrb[0].mxu0 %v539
        %v1867 = vpop.f32.mrb[0].mxu0
        %v1868 = vadd.f32 %v761, %v1867
        %v1869 = vpop.f32.mrb[0].mxu0
        %v1870 = vadd.f32 %v765, %v1869
        %v1871 = vpop.f32.mrb[0].mxu0
        %v1872 = vadd.f32 %v761, %v1871
        %v1873 = vpop.f32.mrb[0].mxu0
        %v1874 = vadd.f32 %v765, %v1873
        %1875 = vmatprep.mubr.bf16.mxu0 %v547
        %1876 = vmatmul.mubr.bf16.gmra.mrb[0].mxu0 %v546
        %v1877 = vpop.f32.mrb[0].mxu0
        %v1878 = vadd.f32 %v761, %v1877
        %v1879 = vpop.f32.mrb[0].mxu0
        %v1880 = vadd.f32 %v765, %v1879
        %v1881 = vpop.f32.mrb[0].mxu0
        %v1882 = vadd.f32 %v761, %v1881
        %v1883 = vpop.f32.mrb[0].mxu0
        %v1884 = vadd.f32 %v765, %v1883
        %1885 = vmatprep.mubr.bf16.mxu0 %v554
        %1886 = vmatmul.mubr.bf16.gmra.mrb[0].mxu0 %v553
        %v1887 = vpop.f32.mrb[0].mxu0
        %v1888 = vadd.f32 %v761, %v1887
        %v1889 = vpop.f32.mrb[0].mxu0
        %v1890 = vadd.f32 %v765, %v1889
        %v1891 = vpop.f32.mrb[0].mxu0
        %v1892 = vadd.f32 %v761, %v1891
        %v1893 = vpop.f32.mrb[0].mxu0
        %v1894 = vadd.f32 %v765, %v1893
        %1895 = vdwg.mxu0
        %1896 = vmatprep.subr.bf16.mxu0 %v1431
        %1897 = vmatpush1.bf16.msra.mxu0 %v1430
        %1898 = vmatprep.subr.bf16.mxu0 %v1435
        %1899 = vmatpush1.bf16.msra.mxu0 %v1434
        %1900 = vmatprep.subr.bf16.mxu0 %v1439
        %1901 = vmatpush1.bf16.msra.mxu0 %v1438
        %1902 = vmatprep.subr.bf16.mxu0 %v1443
        %1903 = vmatpush1.bf16.msra.mxu0 %v1442
        %1904 = vmatprep.subr.bf16.mxu0 %v1447
        %1905 = vmatpush1.bf16.msra.mxu0 %v1446
        %1906 = vmatprep.subr.bf16.mxu0 %v1451
        %1907 = vmatpush1.bf16.msra.mxu0 %v1450
        %1908 = vmatprep.subr.bf16.mxu0 %v1455
        %1909 = vmatpush1.bf16.msra.mxu0 %v1454
        %1910 = vmatprep.subr.bf16.mxu0 %v1459
        %1911 = vmatpush1.bf16.msra.mxu0 %v1458
        %1912 = vmatprep.subr.bf16.mxu0 %v1463
        %1913 = vmatpush1.bf16.msra.mxu0 %v1462
        %1914 = vmatprep.subr.bf16.mxu0 %v1467
        %1915 = vmatpush1.bf16.msra.mxu0 %v1466
        %1916 = vmatprep.subr.bf16.mxu0 %v1471
        %1917 = vmatpush1.bf16.msra.mxu0 %v1470
        %1918 = vmatprep.subr.bf16.mxu0 %v1475
        %1919 = vmatpush1.bf16.msra.mxu0 %v1474
        %1920 = vmatprep.subr.bf16.mxu0 %v1479
        %1921 = vmatpush1.bf16.msra.mxu0 %v1478
        %1922 = vmatprep.subr.bf16.mxu0 %v1483
        %1923 = vmatpush1.bf16.msra.mxu0 %v1482
        %1924 = vmatprep.subr.bf16.mxu0 %v1487
        %1925 = vmatpush1.bf16.msra.mxu0 %v1486
        %1926 = vmatprep.subr.bf16.mxu0 %v1491
        %1927 = vmatpush1.bf16.msra.mxu0 %v1490
        %1928 = vmatprep.mubr.bf16.mxu0 %v507
        %1929 = vmatmul.mubr.bf16.gmra.mrb[0].mxu0 %v506
        %v1930 = vpop.f32.mrb[0].mxu0
        %v1931 = vadd.f32 %v1818, %v1930
        %v1932 = vpop.f32.mrb[0].mxu0
        %v1933 = vadd.f32 %v1820, %v1932
        %v1934 = vpop.f32.mrb[0].mxu0
        %v1935 = vadd.f32 %v1822, %v1934
        %v1936 = vpop.f32.mrb[0].mxu0
        %v1937 = vadd.f32 %v1824, %v1936
        %1938 = vmatprep.mubr.bf16.mxu0 %v514
        %1939 = vmatmul.mubr.bf16.gmra.mrb[0].mxu0 %v513
        %v1940 = vpop.f32.mrb[0].mxu0
        %v1941 = vadd.f32 %v1828, %v1940
        %v1942 = vpop.f32.mrb[0].mxu0
        %v1943 = vadd.f32 %v1830, %v1942
        %v1944 = vpop.f32.mrb[0].mxu0
        %v1945 = vadd.f32 %v1832, %v1944
        %v1946 = vpop.f32.mrb[0].mxu0
        %v1947 = vadd.f32 %v1834, %v1946
        %1948 = vmatprep.mubr.bf16.mxu0 %v521
        %1949 = vmatmul.mubr.bf16.gmra.mrb[0].mxu0 %v520
        %v1950 = vpop.f32.mrb[0].mxu0
        %v1951 = vadd.f32 %v1838, %v1950
        %v1952 = vpop.f32.mrb[0].mxu0
        %v1953 = vadd.f32 %v1840, %v1952
        %v1954 = vpop.f32.mrb[0].mxu0
        %v1955 = vadd.f32 %v1842, %v1954
        %v1956 = vpop.f32.mrb[0].mxu0
        %v1957 = vadd.f32 %v1844, %v1956
        %1958 = vmatprep.mubr.bf16.mxu0 %v528
        %1959 = vmatmul.mubr.bf16.gmra.mrb[0].mxu0 %v527
        %v1960 = vpop.f32.mrb[0].mxu0
        %v1961 = vadd.f32 %v1848, %v1960
        %v1962 = vpop.f32.mrb[0].mxu0
        %v1963 = vadd.f32 %v1850, %v1962
        %v1964 = vpop.f32.mrb[0].mxu0
        %v1965 = vadd.f32 %v1852, %v1964
        %v1966 = vpop.f32.mrb[0].mxu0
        %v1967 = vadd.f32 %v1854, %v1966
        %1968 = vmatprep.mubr.bf16.mxu0 %v535
        %1969 = vmatmul.mubr.bf16.gmra.mrb[0].mxu0 %v534
        %v1970 = vpop.f32.mrb[0].mxu0
        %v1971 = vadd.f32 %v1858, %v1970
        %v1972 = vpop.f32.mrb[0].mxu0
        %v1973 = vadd.f32 %v1860, %v1972
        %v1974 = vpop.f32.mrb[0].mxu0
        %v1975 = vadd.f32 %v1862, %v1974
        %v1976 = vpop.f32.mrb[0].mxu0
        %v1977 = vadd.f32 %v1864, %v1976
        %1978 = vmatprep.mubr.bf16.mxu0 %v542
        %1979 = vmatmul.mubr.bf16.gmra.mrb[0].mxu0 %v541
        %v1980 = vpop.f32.mrb[0].mxu0
        %v1981 = vadd.f32 %v1868, %v1980
        %v1982 = vpop.f32.mrb[0].mxu0
        %v1983 = vadd.f32 %v1870, %v1982
        %v1984 = vpop.f32.mrb[0].mxu0
        %v1985 = vadd.f32 %v1872, %v1984
        %v1986 = vpop.f32.mrb[0].mxu0
        %v1987 = vadd.f32 %v1874, %v1986
        %1988 = vmatprep.mubr.bf16.mxu0 %v549
        %1989 = vmatmul.mubr.bf16.gmra.mrb[0].mxu0 %v548
        %v1990 = vpop.f32.mrb[0].mxu0
        %v1991 = vadd.f32 %v1878, %v1990
        %v1992 = vpop.f32.mrb[0].mxu0
        %v1993 = vadd.f32 %v1880, %v1992
        %v1994 = vpop.f32.mrb[0].mxu0
        %v1995 = vadd.f32 %v1882, %v1994
        %v1996 = vpop.f32.mrb[0].mxu0
        %v1997 = vadd.f32 %v1884, %v1996
        %1998 = vmatprep.mubr.bf16.mxu0 %v556
        %1999 = vmatmul.mubr.bf16.gmra.mrb[0].mxu0 %v555
        %v2000 = vpop.f32.mrb[0].mxu0
        %v2001 = vadd.f32 %v1888, %v2000
        %v2002 = vpop.f32.mrb[0].mxu0
        %v2003 = vadd.f32 %v1890, %v2002
        %v2004 = vpop.f32.mrb[0].mxu0
        %v2005 = vadd.f32 %v1892, %v2004
        %v2006 = vpop.f32.mrb[0].mxu0
        %v2007 = vadd.f32 %v1894, %v2006
        %2008 = vdwg.mxu0
        %2009 = vmatprep.subr.bf16.mxu0 %v1495
        %2010 = vmatpush1.bf16.msra.mxu0 %v1494
        %2011 = vmatprep.subr.bf16.mxu0 %v1499
        %2012 = vmatpush1.bf16.msra.mxu0 %v1498
        %2013 = vmatprep.subr.bf16.mxu0 %v1503
        %2014 = vmatpush1.bf16.msra.mxu0 %v1502
        %2015 = vmatprep.subr.bf16.mxu0 %v1507
        %2016 = vmatpush1.bf16.msra.mxu0 %v1506
        %2017 = vmatprep.subr.bf16.mxu0 %v1511
        %2018 = vmatpush1.bf16.msra.mxu0 %v1510
        %2019 = vmatprep.subr.bf16.mxu0 %v1515
        %2020 = vmatpush1.bf16.msra.mxu0 %v1514
        %2021 = vmatprep.subr.bf16.mxu0 %v1519
        %2022 = vmatpush1.bf16.msra.mxu0 %v1518
        %2023 = vmatprep.subr.bf16.mxu0 %v1523
        %2024 = vmatpush1.bf16.msra.mxu0 %v1522
        %2025 = vmatprep.subr.bf16.mxu0 %v1527
        %2026 = vmatpush1.bf16.msra.mxu0 %v1526
        %2027 = vmatprep.subr.bf16.mxu0 %v1531
        %2028 = vmatpush1.bf16.msra.mxu0 %v1530
        %2029 = vmatprep.subr.bf16.mxu0 %v1535
        %2030 = vmatpush1.bf16.msra.mxu0 %v1534
        %2031 = vmatprep.subr.bf16.mxu0 %v1539
        %2032 = vmatpush1.bf16.msra.mxu0 %v1538
        %2033 = vmatprep.subr.bf16.mxu0 %v1543
        %2034 = vmatpush1.bf16.msra.mxu0 %v1542
        %2035 = vmatprep.subr.bf16.mxu0 %v1547
        %2036 = vmatpush1.bf16.msra.mxu0 %v1546
        %2037 = vmatprep.subr.bf16.mxu0 %v1551
        %2038 = vmatpush1.bf16.msra.mxu0 %v1550
        %2039 = vmatprep.subr.bf16.mxu0 %v1555
        %2040 = vmatpush1.bf16.msra.mxu0 %v1554
        %2041 = vmatprep.mubr.bf16.mxu0 %v509
        %2042 = vmatmul.mubr.bf16.gmra.mrb[0].mxu0 %v508
        %v2043 = vpop.f32.mrb[0].mxu0
        %v2044 = vadd.f32 %v1931, %v2043
        %v2045 = vpop.f32.mrb[0].mxu0
        %v2046 = vadd.f32 %v1933, %v2045
        %v2047 = vpop.f32.mrb[0].mxu0
        %v2048 = vadd.f32 %v1935, %v2047
        %v2049 = vpop.f32.mrb[0].mxu0
        %v2050 = vadd.f32 %v1937, %v2049
        %2051 = vmatprep.mubr.bf16.mxu0 %v516
        %2052 = vmatmul.mubr.bf16.gmra.mrb[0].mxu0 %v515
        %v2053 = vpop.f32.mrb[0].mxu0
        %v2054 = vadd.f32 %v1941, %v2053
        %v2055 = vpop.f32.mrb[0].mxu0
        %v2056 = vadd.f32 %v1943, %v2055
        %v2057 = vpop.f32.mrb[0].mxu0
        %v2058 = vadd.f32 %v1945, %v2057
        %v2059 = vpop.f32.mrb[0].mxu0
        %v2060 = vadd.f32 %v1947, %v2059
        %2061 = vmatprep.mubr.bf16.mxu0 %v523
        %2062 = vmatmul.mubr.bf16.gmra.mrb[0].mxu0 %v522
        %v2063 = vpop.f32.mrb[0].mxu0
        %v2064 = vadd.f32 %v1951, %v2063
        %v2065 = vpop.f32.mrb[0].mxu0
        %v2066 = vadd.f32 %v1953, %v2065
        %v2067 = vpop.f32.mrb[0].mxu0
        %v2068 = vadd.f32 %v1955, %v2067
        %v2069 = vpop.f32.mrb[0].mxu0
        %v2070 = vadd.f32 %v1957, %v2069
        %2071 = vmatprep.mubr.bf16.mxu0 %v530
        %2072 = vmatmul.mubr.bf16.gmra.mrb[0].mxu0 %v529
        %v2073 = vpop.f32.mrb[0].mxu0
        %v2074 = vadd.f32 %v1961, %v2073
        %v2075 = vpop.f32.mrb[0].mxu0
        %v2076 = vadd.f32 %v1963, %v2075
        %v2077 = vpop.f32.mrb[0].mxu0
        %v2078 = vadd.f32 %v1965, %v2077
        %v2079 = vpop.f32.mrb[0].mxu0
        %v2080 = vadd.f32 %v1967, %v2079
        %2081 = vmatprep.mubr.bf16.mxu0 %v537
        %2082 = vmatmul.mubr.bf16.gmra.mrb[0].mxu0 %v536
        %v2083 = vpop.f32.mrb[0].mxu0
        %v2084 = vadd.f32 %v1971, %v2083
        %v2085 = vpop.f32.mrb[0].mxu0
        %v2086 = vadd.f32 %v1973, %v2085
        %v2087 = vpop.f32.mrb[0].mxu0
        %v2088 = vadd.f32 %v1975, %v2087
        %v2089 = vpop.f32.mrb[0].mxu0
        %v2090 = vadd.f32 %v1977, %v2089
        %2091 = vmatprep.mubr.bf16.mxu0 %v544
        %2092 = vmatmul.mubr.bf16.gmra.mrb[0].mxu0 %v543
        %v2093 = vpop.f32.mrb[0].mxu0
        %v2094 = vadd.f32 %v1981, %v2093
        %v2095 = vpop.f32.mrb[0].mxu0
        %v2096 = vadd.f32 %v1983, %v2095
        %v2097 = vpop.f32.mrb[0].mxu0
        %v2098 = vadd.f32 %v1985, %v2097
        %v2099 = vpop.f32.mrb[0].mxu0
        %v2100 = vadd.f32 %v1987, %v2099
        %2101 = vmatprep.mubr.bf16.mxu0 %v551
        %2102 = vmatmul.mubr.bf16.gmra.mrb[0].mxu0 %v550
        %v2103 = vpop.f32.mrb[0].mxu0
        %v2104 = vadd.f32 %v1991, %v2103
        %v2105 = vpop.f32.mrb[0].mxu0
        %v2106 = vadd.f32 %v1993, %v2105
        %v2107 = vpop.f32.mrb[0].mxu0
        %v2108 = vadd.f32 %v1995, %v2107
        %v2109 = vpop.f32.mrb[0].mxu0
        %v2110 = vadd.f32 %v1997, %v2109
        %2111 = vmatprep.mubr.bf16.mxu0 %v558
        %2112 = vmatmul.mubr.bf16.gmra.mrb[0].mxu0 %v557
        %v2113 = vpop.f32.mrb[0].mxu0
        %v2114 = vadd.f32 %v2001, %v2113
        %v2115 = vpop.f32.mrb[0].mxu0
        %v2116 = vadd.f32 %v2003, %v2115
        %v2117 = vpop.f32.mrb[0].mxu0
        %v2118 = vadd.f32 %v2005, %v2117
        %v2119 = vpop.f32.mrb[0].mxu0
        %v2120 = vadd.f32 %v2007, %v2119
        %2121 = vdwg.mxu0
        %2122 = vmatprep.subr.bf16.mxu0 %v1559
        %2123 = vmatpush1.bf16.msra.mxu0 %v1558
        %2124 = vmatprep.subr.bf16.mxu0 0
        %2125 = vmatpush1.bf16.msra.mxu0 0
        %2126 = vmatprep.subr.bf16.mxu0 0
        %2127 = vmatpush1.bf16.msra.mxu0 0
        %2128 = vmatprep.subr.bf16.mxu0 0
        %2129 = vmatpush1.bf16.msra.mxu0 0
        %2130 = vmatprep.subr.bf16.mxu0 0
        %2131 = vmatpush1.bf16.msra.mxu0 0
        %2132 = vmatprep.subr.bf16.mxu0 0
        %2133 = vmatpush1.bf16.msra.mxu0 0
        %2134 = vmatprep.subr.bf16.mxu0 0
        %2135 = vmatpush1.bf16.msra.mxu0 0
        %2136 = vmatprep.subr.bf16.mxu0 0
        %2137 = vmatpush1.bf16.msra.mxu0 0
        %2138 = vmatprep.subr.bf16.mxu0 0
        %2139 = vmatpush1.bf16.msra.mxu0 0
        %2140 = vmatprep.subr.bf16.mxu0 0
        %2141 = vmatpush1.bf16.msra.mxu0 0
        %2142 = vmatprep.subr.bf16.mxu0 0
        %2143 = vmatpush1.bf16.msra.mxu0 0
        %2144 = vmatprep.subr.bf16.mxu0 0
        %2145 = vmatpush1.bf16.msra.mxu0 0
        %2146 = vmatprep.subr.bf16.mxu0 0
        %2147 = vmatpush1.bf16.msra.mxu0 0
        %2148 = vmatprep.subr.bf16.mxu0 0
        %2149 = vmatpush1.bf16.msra.mxu0 0
        %2150 = vmatprep.subr.bf16.mxu0 0
        %2151 = vmatpush1.bf16.msra.mxu0 0
        %2152 = vmatprep.subr.bf16.mxu0 0
        %2153 = vmatpush1.bf16.msra.mxu0 0
        %2154 = vmatprep.mubr.bf16.mxu0 0
        %2155 = vmatmul.mubr.bf16.gmra.mrb[0].mxu0 %v1760
        %v2156 = vpop.f32.mrb[0].mxu0
        %v2157 = vadd.f32 %v2044, %v2156
        %v2158 = vpop.f32.mrb[0].mxu0
        %v2159 = vadd.f32 %v2046, %v2158
        %v2160 = vpop.f32.mrb[0].mxu0
        %v2161 = vadd.f32 %v2048, %v2160
        %v2162 = vpop.f32.mrb[0].mxu0
        %v2163 = vadd.f32 %v2050, %v2162
        %2164 = vmatprep.mubr.bf16.mxu0 0
        %2165 = vmatmul.mubr.bf16.gmra.mrb[0].mxu0 %v1763
        %v2166 = vpop.f32.mrb[0].mxu0
        %v2167 = vadd.f32 %v2054, %v2166
        %v2168 = vpop.f32.mrb[0].mxu0
        %v2169 = vadd.f32 %v2056, %v2168
        %v2170 = vpop.f32.mrb[0].mxu0
        %v2171 = vadd.f32 %v2058, %v2170
        %v2172 = vpop.f32.mrb[0].mxu0
        %v2173 = vadd.f32 %v2060, %v2172
        %2174 = vmatprep.mubr.bf16.mxu0 0
        %2175 = vmatmul.mubr.bf16.gmra.mrb[0].mxu0 %v1766
        %v2176 = vpop.f32.mrb[0].mxu0
        %v2177 = vadd.f32 %v2064, %v2176
        %v2178 = vpop.f32.mrb[0].mxu0
        %v2179 = vadd.f32 %v2066, %v2178
        %v2180 = vpop.f32.mrb[0].mxu0
        %v2181 = vadd.f32 %v2068, %v2180
        %v2182 = vpop.f32.mrb[0].mxu0
        %v2183 = vadd.f32 %v2070, %v2182
        %2184 = vmatprep.mubr.bf16.mxu0 0
        %2185 = vmatmul.mubr.bf16.gmra.mrb[0].mxu0 %v1769
        %v2186 = vpop.f32.mrb[0].mxu0
        %v2187 = vadd.f32 %v2074, %v2186
        %v2188 = vpop.f32.mrb[0].mxu0
        %v2189 = vadd.f32 %v2076, %v2188
        %v2190 = vpop.f32.mrb[0].mxu0
        %v2191 = vadd.f32 %v2078, %v2190
        %v2192 = vpop.f32.mrb[0].mxu0
        %v2193 = vadd.f32 %v2080, %v2192
        %2194 = vmatprep.mubr.bf16.mxu0 0
        %2195 = vmatmul.mubr.bf16.gmra.mrb[0].mxu0 %v1772
        %v2196 = vpop.f32.mrb[0].mxu0
        %v2197 = vadd.f32 %v2084, %v2196
        %v2198 = vpop.f32.mrb[0].mxu0
        %v2199 = vadd.f32 %v2086, %v2198
        %v2200 = vpop.f32.mrb[0].mxu0
        %v2201 = vadd.f32 %v2088, %v2200
        %v2202 = vpop.f32.mrb[0].mxu0
        %v2203 = vadd.f32 %v2090, %v2202
        %2204 = vmatprep.mubr.bf16.mxu0 0
        %2205 = vmatmul.mubr.bf16.gmra.mrb[0].mxu0 %v1775
        %v2206 = vpop.f32.mrb[0].mxu0
        %v2207 = vadd.f32 %v2094, %v2206
        %v2208 = vpop.f32.mrb[0].mxu0
        %v2209 = vadd.f32 %v2096, %v2208
        %v2210 = vpop.f32.mrb[0].mxu0
        %v2211 = vadd.f32 %v2098, %v2210
        %v2212 = vpop.f32.mrb[0].mxu0
        %v2213 = vadd.f32 %v2100, %v2212
        %2214 = vmatprep.mubr.bf16.mxu0 0
        %2215 = vmatmul.mubr.bf16.gmra.mrb[0].mxu0 %v1778
        %v2216 = vpop.f32.mrb[0].mxu0
        %v2217 = vadd.f32 %v2104, %v2216
        %v2218 = vpop.f32.mrb[0].mxu0
        %v2219 = vadd.f32 %v2106, %v2218
        %v2220 = vpop.f32.mrb[0].mxu0
        %v2221 = vadd.f32 %v2108, %v2220
        %v2222 = vpop.f32.mrb[0].mxu0
        %v2223 = vadd.f32 %v2110, %v2222
        %2224 = vmatprep.mubr.bf16.mxu0 0
        %2225 = vmatmul.mubr.bf16.gmra.mrb[0].mxu0 %v1781
        %v2226 = vpop.f32.mrb[0].mxu0
        %v2227 = vadd.f32 %v2114, %v2226
        %v2228 = vpop.f32.mrb[0].mxu0
        %v2229 = vadd.f32 %v2116, %v2228
        %v2230 = vpop.f32.mrb[0].mxu0
        %v2231 = vadd.f32 %v2118, %v2230
        %v2232 = vpop.f32.mrb[0].mxu0
        %v2233 = vadd.f32 %v2120, %v2232
        %2234 = vdwg.mxu0
        %2235 = vmatprep.subr.bf16.mxu0 %v1369
        %2236 = vmatpush1.bf16.msra.mxu0 %v1368
        %2237 = vmatprep.subr.bf16.mxu0 %v1373
        %2238 = vmatpush1.bf16.msra.mxu0 %v1372
        %2239 = vmatprep.subr.bf16.mxu0 %v1377
        %2240 = vmatpush1.bf16.msra.mxu0 %v1376
        %2241 = vmatprep.subr.bf16.mxu0 %v1381
        %2242 = vmatpush1.bf16.msra.mxu0 %v1380
        %2243 = vmatprep.subr.bf16.mxu0 %v1385
        %2244 = vmatpush1.bf16.msra.mxu0 %v1384
        %2245 = vmatprep.subr.bf16.mxu0 %v1389
        %2246 = vmatpush1.bf16.msra.mxu0 %v1388
        %2247 = vmatprep.subr.bf16.mxu0 %v1393
        %2248 = vmatpush1.bf16.msra.mxu0 %v1392
        %2249 = vmatprep.subr.bf16.mxu0 %v1397
        %2250 = vmatpush1.bf16.msra.mxu0 %v1396
        %2251 = vmatprep.subr.bf16.mxu0 %v1401
        %2252 = vmatpush1.bf16.msra.mxu0 %v1400
        %2253 = vmatprep.subr.bf16.mxu0 %v1405
        %2254 = vmatpush1.bf16.msra.mxu0 %v1404
        %2255 = vmatprep.subr.bf16.mxu0 %v1409
        %2256 = vmatpush1.bf16.msra.mxu0 %v1408
        %2257 = vmatprep.subr.bf16.mxu0 %v1413
        %2258 = vmatpush1.bf16.msra.mxu0 %v1412
        %2259 = vmatprep.subr.bf16.mxu0 %v1417
        %2260 = vmatpush1.bf16.msra.mxu0 %v1416
        %2261 = vmatprep.subr.bf16.mxu0 %v1421
        %2262 = vmatpush1.bf16.msra.mxu0 %v1420
        %2263 = vmatprep.subr.bf16.mxu0 %v1425
        %2264 = vmatpush1.bf16.msra.mxu0 %v1424
        %2265 = vmatprep.subr.bf16.mxu0 %v1429
        %2266 = vmatpush1.bf16.msra.mxu0 %v1428
        %2267 = vmatprep.mubr.bf16.mxu0 %v505
        %2268 = vmatmul.mubr.bf16.gmra.mrb[0].mxu0 %v504
        %v2269 = vpop.f32.mrb[0].mxu0
        %v2270 = vadd.f32 %v769, %v2269
        %v2271 = vpop.f32.mrb[0].mxu0
        %v2272 = vadd.f32 %v773, %v2271
        %v2273 = vpop.f32.mrb[0].mxu0
        %v2274 = vadd.f32 %v769, %v2273
        %v2275 = vpop.f32.mrb[0].mxu0
        %v2276 = vadd.f32 %v773, %v2275
        %2277 = vmatprep.mubr.bf16.mxu0 %v512
        %2278 = vmatmul.mubr.bf16.gmra.mrb[0].mxu0 %v511
        %v2279 = vpop.f32.mrb[0].mxu0
        %v2280 = vadd.f32 %v769, %v2279
        %v2281 = vpop.f32.mrb[0].mxu0
        %v2282 = vadd.f32 %v773, %v2281
        %v2283 = vpop.f32.mrb[0].mxu0
        %v2284 = vadd.f32 %v769, %v2283
        %v2285 = vpop.f32.mrb[0].mxu0
        %v2286 = vadd.f32 %v773, %v2285
        %2287 = vmatprep.mubr.bf16.mxu0 %v519
        %2288 = vmatmul.mubr.bf16.gmra.mrb[0].mxu0 %v518
        %v2289 = vpop.f32.mrb[0].mxu0
        %v2290 = vadd.f32 %v769, %v2289
        %v2291 = vpop.f32.mrb[0].mxu0
        %v2292 = vadd.f32 %v773, %v2291
        %v2293 = vpop.f32.mrb[0].mxu0
        %v2294 = vadd.f32 %v769, %v2293
        %v2295 = vpop.f32.mrb[0].mxu0
        %v2296 = vadd.f32 %v773, %v2295
        %2297 = vmatprep.mubr.bf16.mxu0 %v526
        %2298 = vmatmul.mubr.bf16.gmra.mrb[0].mxu0 %v525
        %v2299 = vpop.f32.mrb[0].mxu0
        %v2300 = vadd.f32 %v769, %v2299
        %v2301 = vpop.f32.mrb[0].mxu0
        %v2302 = vadd.f32 %v773, %v2301
        %v2303 = vpop.f32.mrb[0].mxu0
        %v2304 = vadd.f32 %v769, %v2303
        %v2305 = vpop.f32.mrb[0].mxu0
        %v2306 = vadd.f32 %v773, %v2305
        %2307 = vmatprep.mubr.bf16.mxu0 %v533
        %2308 = vmatmul.mubr.bf16.gmra.mrb[0].mxu0 %v532
        %v2309 = vpop.f32.mrb[0].mxu0
        %v2310 = vadd.f32 %v769, %v2309
        %v2311 = vpop.f32.mrb[0].mxu0
        %v2312 = vadd.f32 %v773, %v2311
        %v2313 = vpop.f32.mrb[0].mxu0
        %v2314 = vadd.f32 %v769, %v2313
        %v2315 = vpop.f32.mrb[0].mxu0
        %v2316 = vadd.f32 %v773, %v2315
        %2317 = vmatprep.mubr.bf16.mxu0 %v540
        %2318 = vmatmul.mubr.bf16.gmra.mrb[0].mxu0 %v539
        %v2319 = vpop.f32.mrb[0].mxu0
        %v2320 = vadd.f32 %v769, %v2319
        %v2321 = vpop.f32.mrb[0].mxu0
        %v2322 = vadd.f32 %v773, %v2321
        %v2323 = vpop.f32.mrb[0].mxu0
        %v2324 = vadd.f32 %v769, %v2323
        %v2325 = vpop.f32.mrb[0].mxu0
        %v2326 = vadd.f32 %v773, %v2325
        %2327 = vmatprep.mubr.bf16.mxu0 %v547
        %2328 = vmatmul.mubr.bf16.gmra.mrb[0].mxu0 %v546
        %v2329 = vpop.f32.mrb[0].mxu0
        %v2330 = vadd.f32 %v769, %v2329
        %v2331 = vpop.f32.mrb[0].mxu0
        %v2332 = vadd.f32 %v773, %v2331
        %v2333 = vpop.f32.mrb[0].mxu0
        %v2334 = vadd.f32 %v769, %v2333
        %v2335 = vpop.f32.mrb[0].mxu0
        %v2336 = vadd.f32 %v773, %v2335
        %2337 = vmatprep.mubr.bf16.mxu0 %v554
        %2338 = vmatmul.mubr.bf16.gmra.mrb[0].mxu0 %v553
        %v2339 = vpop.f32.mrb[0].mxu0
        %v2340 = vadd.f32 %v769, %v2339
        %v2341 = vpop.f32.mrb[0].mxu0
        %v2342 = vadd.f32 %v773, %v2341
        %v2343 = vpop.f32.mrb[0].mxu0
        %v2344 = vadd.f32 %v769, %v2343
        %v2345 = vpop.f32.mrb[0].mxu0
        %v2346 = vadd.f32 %v773, %v2345
        %2347 = vdwg.mxu0
        %2348 = vmatprep.subr.bf16.mxu0 %v1433
        %2349 = vmatpush1.bf16.msra.mxu0 %v1432
        %2350 = vmatprep.subr.bf16.mxu0 %v1437
        %2351 = vmatpush1.bf16.msra.mxu0 %v1436
        %2352 = vmatprep.subr.bf16.mxu0 %v1441
        %2353 = vmatpush1.bf16.msra.mxu0 %v1440
        %2354 = vmatprep.subr.bf16.mxu0 %v1445
        %2355 = vmatpush1.bf16.msra.mxu0 %v1444
        %2356 = vmatprep.subr.bf16.mxu0 %v1449
        %2357 = vmatpush1.bf16.msra.mxu0 %v1448
        %2358 = vmatprep.subr.bf16.mxu0 %v1453
        %2359 = vmatpush1.bf16.msra.mxu0 %v1452
        %2360 = vmatprep.subr.bf16.mxu0 %v1457
        %2361 = vmatpush1.bf16.msra.mxu0 %v1456
        %2362 = vmatprep.subr.bf16.mxu0 %v1461
        %2363 = vmatpush1.bf16.msra.mxu0 %v1460
        %2364 = vmatprep.subr.bf16.mxu0 %v1465
        %2365 = vmatpush1.bf16.msra.mxu0 %v1464
        %2366 = vmatprep.subr.bf16.mxu0 %v1469
        %2367 = vmatpush1.bf16.msra.mxu0 %v1468
        %2368 = vmatprep.subr.bf16.mxu0 %v1473
        %2369 = vmatpush1.bf16.msra.mxu0 %v1472
        %2370 = vmatprep.subr.bf16.mxu0 %v1477
        %2371 = vmatpush1.bf16.msra.mxu0 %v1476
        %2372 = vmatprep.subr.bf16.mxu0 %v1481
        %2373 = vmatpush1.bf16.msra.mxu0 %v1480
        %2374 = vmatprep.subr.bf16.mxu0 %v1485
        %2375 = vmatpush1.bf16.msra.mxu0 %v1484
        %2376 = vmatprep.subr.bf16.mxu0 %v1489
        %2377 = vmatpush1.bf16.msra.mxu0 %v1488
        %2378 = vmatprep.subr.bf16.mxu0 %v1493
        %2379 = vmatpush1.bf16.msra.mxu0 %v1492
        %2380 = vmatprep.mubr.bf16.mxu0 %v507
        %2381 = vmatmul.mubr.bf16.gmra.mrb[0].mxu0 %v506
        %v2382 = vpop.f32.mrb[0].mxu0
        %v2383 = vadd.f32 %v2270, %v2382
        %v2384 = vpop.f32.mrb[0].mxu0
        %v2385 = vadd.f32 %v2272, %v2384
        %v2386 = vpop.f32.mrb[0].mxu0
        %v2387 = vadd.f32 %v2274, %v2386
        %v2388 = vpop.f32.mrb[0].mxu0
        %v2389 = vadd.f32 %v2276, %v2388
        %2390 = vmatprep.mubr.bf16.mxu0 %v514
        %2391 = vmatmul.mubr.bf16.gmra.mrb[0].mxu0 %v513
        %v2392 = vpop.f32.mrb[0].mxu0
        %v2393 = vadd.f32 %v2280, %v2392
        %v2394 = vpop.f32.mrb[0].mxu0
        %v2395 = vadd.f32 %v2282, %v2394
        %v2396 = vpop.f32.mrb[0].mxu0
        %v2397 = vadd.f32 %v2284, %v2396
        %v2398 = vpop.f32.mrb[0].mxu0
        %v2399 = vadd.f32 %v2286, %v2398
        %2400 = vmatprep.mubr.bf16.mxu0 %v521
        %2401 = vmatmul.mubr.bf16.gmra.mrb[0].mxu0 %v520
        %v2402 = vpop.f32.mrb[0].mxu0
        %v2403 = vadd.f32 %v2290, %v2402
        %v2404 = vpop.f32.mrb[0].mxu0
        %v2405 = vadd.f32 %v2292, %v2404
        %v2406 = vpop.f32.mrb[0].mxu0
        %v2407 = vadd.f32 %v2294, %v2406
        %v2408 = vpop.f32.mrb[0].mxu0
        %v2409 = vadd.f32 %v2296, %v2408
        %2410 = vmatprep.mubr.bf16.mxu0 %v528
        %2411 = vmatmul.mubr.bf16.gmra.mrb[0].mxu0 %v527
        %v2412 = vpop.f32.mrb[0].mxu0
        %v2413 = vadd.f32 %v2300, %v2412
        %v2414 = vpop.f32.mrb[0].mxu0
        %v2415 = vadd.f32 %v2302, %v2414
        %v2416 = vpop.f32.mrb[0].mxu0
        %v2417 = vadd.f32 %v2304, %v2416
        %v2418 = vpop.f32.mrb[0].mxu0
        %v2419 = vadd.f32 %v2306, %v2418
        %2420 = vmatprep.mubr.bf16.mxu0 %v535
        %2421 = vmatmul.mubr.bf16.gmra.mrb[0].mxu0 %v534
        %v2422 = vpop.f32.mrb[0].mxu0
        %v2423 = vadd.f32 %v2310, %v2422
        %v2424 = vpop.f32.mrb[0].mxu0
        %v2425 = vadd.f32 %v2312, %v2424
        %v2426 = vpop.f32.mrb[0].mxu0
        %v2427 = vadd.f32 %v2314, %v2426
        %v2428 = vpop.f32.mrb[0].mxu0
        %v2429 = vadd.f32 %v2316, %v2428
        %2430 = vmatprep.mubr.bf16.mxu0 %v542
        %2431 = vmatmul.mubr.bf16.gmra.mrb[0].mxu0 %v541
        %v2432 = vpop.f32.mrb[0].mxu0
        %v2433 = vadd.f32 %v2320, %v2432
        %v2434 = vpop.f32.mrb[0].mxu0
        %v2435 = vadd.f32 %v2322, %v2434
        %v2436 = vpop.f32.mrb[0].mxu0
        %v2437 = vadd.f32 %v2324, %v2436
        %v2438 = vpop.f32.mrb[0].mxu0
        %v2439 = vadd.f32 %v2326, %v2438
        %2440 = vmatprep.mubr.bf16.mxu0 %v549
        %2441 = vmatmul.mubr.bf16.gmra.mrb[0].mxu0 %v548
        %v2442 = vpop.f32.mrb[0].mxu0
        %v2443 = vadd.f32 %v2330, %v2442
        %v2444 = vpop.f32.mrb[0].mxu0
        %v2445 = vadd.f32 %v2332, %v2444
        %v2446 = vpop.f32.mrb[0].mxu0
        %v2447 = vadd.f32 %v2334, %v2446
        %v2448 = vpop.f32.mrb[0].mxu0
        %v2449 = vadd.f32 %v2336, %v2448
        %2450 = vmatprep.mubr.bf16.mxu0 %v556
        %2451 = vmatmul.mubr.bf16.gmra.mrb[0].mxu0 %v555
        %v2452 = vpop.f32.mrb[0].mxu0
        %v2453 = vadd.f32 %v2340, %v2452
        %v2454 = vpop.f32.mrb[0].mxu0
        %v2455 = vadd.f32 %v2342, %v2454
        %v2456 = vpop.f32.mrb[0].mxu0
        %v2457 = vadd.f32 %v2344, %v2456
        %v2458 = vpop.f32.mrb[0].mxu0
        %v2459 = vadd.f32 %v2346, %v2458
        %2460 = vdwg.mxu0
        %2461 = vmatprep.subr.bf16.mxu0 %v1497
        %2462 = vmatpush1.bf16.msra.mxu0 %v1496
        %2463 = vmatprep.subr.bf16.mxu0 %v1501
        %2464 = vmatpush1.bf16.msra.mxu0 %v1500
        %2465 = vmatprep.subr.bf16.mxu0 %v1505
        %2466 = vmatpush1.bf16.msra.mxu0 %v1504
        %2467 = vmatprep.subr.bf16.mxu0 %v1509
        %2468 = vmatpush1.bf16.msra.mxu0 %v1508
        %2469 = vmatprep.subr.bf16.mxu0 %v1513
        %2470 = vmatpush1.bf16.msra.mxu0 %v1512
        %2471 = vmatprep.subr.bf16.mxu0 %v1517
        %2472 = vmatpush1.bf16.msra.mxu0 %v1516
        %2473 = vmatprep.subr.bf16.mxu0 %v1521
        %2474 = vmatpush1.bf16.msra.mxu0 %v1520
        %2475 = vmatprep.subr.bf16.mxu0 %v1525
        %2476 = vmatpush1.bf16.msra.mxu0 %v1524
        %2477 = vmatprep.subr.bf16.mxu0 %v1529
        %2478 = vmatpush1.bf16.msra.mxu0 %v1528
        %2479 = vmatprep.subr.bf16.mxu0 %v1533
        %2480 = vmatpush1.bf16.msra.mxu0 %v1532
        %2481 = vmatprep.subr.bf16.mxu0 %v1537
        %2482 = vmatpush1.bf16.msra.mxu0 %v1536
        %2483 = vmatprep.subr.bf16.mxu0 %v1541
        %2484 = vmatpush1.bf16.msra.mxu0 %v1540
        %2485 = vmatprep.subr.bf16.mxu0 %v1545
        %2486 = vmatpush1.bf16.msra.mxu0 %v1544
        %2487 = vmatprep.subr.bf16.mxu0 %v1549
        %2488 = vmatpush1.bf16.msra.mxu0 %v1548
        %2489 = vmatprep.subr.bf16.mxu0 %v1553
        %2490 = vmatpush1.bf16.msra.mxu0 %v1552
        %2491 = vmatprep.subr.bf16.mxu0 %v1557
        %2492 = vmatpush1.bf16.msra.mxu0 %v1556
        %2493 = vmatprep.mubr.bf16.mxu0 %v509
        %2494 = vmatmul.mubr.bf16.gmra.mrb[0].mxu0 %v508
        %v2495 = vpop.f32.mrb[0].mxu0
        %v2496 = vadd.f32 %v2383, %v2495
        %v2497 = vpop.f32.mrb[0].mxu0
        %v2498 = vadd.f32 %v2385, %v2497
        %v2499 = vpop.f32.mrb[0].mxu0
        %v2500 = vadd.f32 %v2387, %v2499
        %v2501 = vpop.f32.mrb[0].mxu0
        %v2502 = vadd.f32 %v2389, %v2501
        %2503 = vmatprep.mubr.bf16.mxu0 %v516
        %2504 = vmatmul.mubr.bf16.gmra.mrb[0].mxu0 %v515
        %v2505 = vpop.f32.mrb[0].mxu0
        %v2506 = vadd.f32 %v2393, %v2505
        %v2507 = vpop.f32.mrb[0].mxu0
        %v2508 = vadd.f32 %v2395, %v2507
        %v2509 = vpop.f32.mrb[0].mxu0
        %v2510 = vadd.f32 %v2397, %v2509
        %v2511 = vpop.f32.mrb[0].mxu0
        %v2512 = vadd.f32 %v2399, %v2511
        %2513 = vmatprep.mubr.bf16.mxu0 %v523
        %2514 = vmatmul.mubr.bf16.gmra.mrb[0].mxu0 %v522
        %v2515 = vpop.f32.mrb[0].mxu0
        %v2516 = vadd.f32 %v2403, %v2515
        %v2517 = vpop.f32.mrb[0].mxu0
        %v2518 = vadd.f32 %v2405, %v2517
        %v2519 = vpop.f32.mrb[0].mxu0
        %v2520 = vadd.f32 %v2407, %v2519
        %v2521 = vpop.f32.mrb[0].mxu0
        %v2522 = vadd.f32 %v2409, %v2521
        %2523 = vmatprep.mubr.bf16.mxu0 %v530
        %2524 = vmatmul.mubr.bf16.gmra.mrb[0].mxu0 %v529
        %v2525 = vpop.f32.mrb[0].mxu0
        %v2526 = vadd.f32 %v2413, %v2525
        %v2527 = vpop.f32.mrb[0].mxu0
        %v2528 = vadd.f32 %v2415, %v2527
        %v2529 = vpop.f32.mrb[0].mxu0
        %v2530 = vadd.f32 %v2417, %v2529
        %v2531 = vpop.f32.mrb[0].mxu0
        %v2532 = vadd.f32 %v2419, %v2531
        %2533 = vmatprep.mubr.bf16.mxu0 %v537
        %2534 = vmatmul.mubr.bf16.gmra.mrb[0].mxu0 %v536
        %v2535 = vpop.f32.mrb[0].mxu0
        %v2536 = vadd.f32 %v2423, %v2535
        %v2537 = vpop.f32.mrb[0].mxu0
        %v2538 = vadd.f32 %v2425, %v2537
        %v2539 = vpop.f32.mrb[0].mxu0
        %v2540 = vadd.f32 %v2427, %v2539
        %v2541 = vpop.f32.mrb[0].mxu0
        %v2542 = vadd.f32 %v2429, %v2541
        %2543 = vmatprep.mubr.bf16.mxu0 %v544
        %2544 = vmatmul.mubr.bf16.gmra.mrb[0].mxu0 %v543
        %v2545 = vpop.f32.mrb[0].mxu0
        %v2546 = vadd.f32 %v2433, %v2545
        %v2547 = vpop.f32.mrb[0].mxu0
        %v2548 = vadd.f32 %v2435, %v2547
        %v2549 = vpop.f32.mrb[0].mxu0
        %v2550 = vadd.f32 %v2437, %v2549
        %v2551 = vpop.f32.mrb[0].mxu0
        %v2552 = vadd.f32 %v2439, %v2551
        %2553 = vmatprep.mubr.bf16.mxu0 %v551
        %2554 = vmatmul.mubr.bf16.gmra.mrb[0].mxu0 %v550
        %v2555 = vpop.f32.mrb[0].mxu0
        %v2556 = vadd.f32 %v2443, %v2555
        %v2557 = vpop.f32.mrb[0].mxu0
        %v2558 = vadd.f32 %v2445, %v2557
        %v2559 = vpop.f32.mrb[0].mxu0
        %v2560 = vadd.f32 %v2447, %v2559
        %v2561 = vpop.f32.mrb[0].mxu0
        %v2562 = vadd.f32 %v2449, %v2561
        %2563 = vmatprep.mubr.bf16.mxu0 %v558
        %2564 = vmatmul.mubr.bf16.gmra.mrb[0].mxu0 %v557
        %v2565 = vpop.f32.mrb[0].mxu0
        %v2566 = vadd.f32 %v2453, %v2565
        %v2567 = vpop.f32.mrb[0].mxu0
        %v2568 = vadd.f32 %v2455, %v2567
        %v2569 = vpop.f32.mrb[0].mxu0
        %v2570 = vadd.f32 %v2457, %v2569
        %v2571 = vpop.f32.mrb[0].mxu0
        %v2572 = vadd.f32 %v2459, %v2571
        %2573 = vdwg.mxu0
        %2574 = vmatprep.subr.bf16.mxu0 %v1561
        %2575 = vmatpush1.bf16.msra.mxu0 %v1560
        %2576 = vmatprep.subr.bf16.mxu0 0
        %2577 = vmatpush1.bf16.msra.mxu0 0
        %2578 = vmatprep.subr.bf16.mxu0 0
        %2579 = vmatpush1.bf16.msra.mxu0 0
        %2580 = vmatprep.subr.bf16.mxu0 0
        %2581 = vmatpush1.bf16.msra.mxu0 0
        %2582 = vmatprep.subr.bf16.mxu0 0
        %2583 = vmatpush1.bf16.msra.mxu0 0
        %2584 = vmatprep.subr.bf16.mxu0 0
        %2585 = vmatpush1.bf16.msra.mxu0 0
        %2586 = vmatprep.subr.bf16.mxu0 0
        %2587 = vmatpush1.bf16.msra.mxu0 0
        %2588 = vmatprep.subr.bf16.mxu0 0
        %2589 = vmatpush1.bf16.msra.mxu0 0
        %2590 = vmatprep.subr.bf16.mxu0 0
        %2591 = vmatpush1.bf16.msra.mxu0 0
        %2592 = vmatprep.subr.bf16.mxu0 0
        %2593 = vmatpush1.bf16.msra.mxu0 0
        %2594 = vmatprep.subr.bf16.mxu0 0
        %2595 = vmatpush1.bf16.msra.mxu0 0
        %2596 = vmatprep.subr.bf16.mxu0 0
        %2597 = vmatpush1.bf16.msra.mxu0 0
        %2598 = vmatprep.subr.bf16.mxu0 0
        %2599 = vmatpush1.bf16.msra.mxu0 0
        %2600 = vmatprep.subr.bf16.mxu0 0
        %2601 = vmatpush1.bf16.msra.mxu0 0
        %2602 = vmatprep.subr.bf16.mxu0 0
        %2603 = vmatpush1.bf16.msra.mxu0 0
        %2604 = vmatprep.subr.bf16.mxu0 0
        %2605 = vmatpush1.bf16.msra.mxu0 0
        %2606 = vmatprep.mubr.bf16.mxu0 0
        %2607 = vmatmul.mubr.bf16.gmra.mrb[0].mxu0 %v1760
        %v2608 = vpop.f32.mrb[0].mxu0
        %v2609 = vadd.f32 %v2496, %v2608
        %v2610 = vpop.f32.mrb[0].mxu0
        %v2611 = vadd.f32 %v2498, %v2610
        %v2612 = vpop.f32.mrb[0].mxu0
        %v2613 = vadd.f32 %v2500, %v2612
        %v2614 = vpop.f32.mrb[0].mxu0
        %v2615 = vadd.f32 %v2502, %v2614
        %2616 = vmatprep.mubr.bf16.mxu0 0
        %2617 = vmatmul.mubr.bf16.gmra.mrb[0].mxu0 %v1763
        %v2618 = vpop.f32.mrb[0].mxu0
        %v2619 = vadd.f32 %v2506, %v2618
        %v2620 = vpop.f32.mrb[0].mxu0
        %v2621 = vadd.f32 %v2508, %v2620
        %v2622 = vpop.f32.mrb[0].mxu0
        %v2623 = vadd.f32 %v2510, %v2622
        %v2624 = vpop.f32.mrb[0].mxu0
        %v2625 = vadd.f32 %v2512, %v2624
        %2626 = vmatprep.mubr.bf16.mxu0 0
        %2627 = vmatmul.mubr.bf16.gmra.mrb[0].mxu0 %v1766
        %v2628 = vpop.f32.mrb[0].mxu0
        %v2629 = vadd.f32 %v2516, %v2628
        %v2630 = vpop.f32.mrb[0].mxu0
        %v2631 = vadd.f32 %v2518, %v2630
        %v2632 = vpop.f32.mrb[0].mxu0
        %v2633 = vadd.f32 %v2520, %v2632
        %v2634 = vpop.f32.mrb[0].mxu0
        %v2635 = vadd.f32 %v2522, %v2634
        %2636 = vmatprep.mubr.bf16.mxu0 0
        %2637 = vmatmul.mubr.bf16.gmra.mrb[0].mxu0 %v1769
        %v2638 = vpop.f32.mrb[0].mxu0
        %v2639 = vadd.f32 %v2526, %v2638
        %v2640 = vpop.f32.mrb[0].mxu0
        %v2641 = vadd.f32 %v2528, %v2640
        %v2642 = vpop.f32.mrb[0].mxu0
        %v2643 = vadd.f32 %v2530, %v2642
        %v2644 = vpop.f32.mrb[0].mxu0
        %v2645 = vadd.f32 %v2532, %v2644
        %2646 = vmatprep.mubr.bf16.mxu0 0
        %2647 = vmatmul.mubr.bf16.gmra.mrb[0].mxu0 %v1772
        %v2648 = vpop.f32.mrb[0].mxu0
        %v2649 = vadd.f32 %v2536, %v2648
        %v2650 = vpop.f32.mrb[0].mxu0
        %v2651 = vadd.f32 %v2538, %v2650
        %v2652 = vpop.f32.mrb[0].mxu0
        %v2653 = vadd.f32 %v2540, %v2652
        %v2654 = vpop.f32.mrb[0].mxu0
        %v2655 = vadd.f32 %v2542, %v2654
        %2656 = vmatprep.mubr.bf16.mxu0 0
        %2657 = vmatmul.mubr.bf16.gmra.mrb[0].mxu0 %v1775
        %v2658 = vpop.f32.mrb[0].mxu0
        %v2659 = vadd.f32 %v2546, %v2658
        %v2660 = vpop.f32.mrb[0].mxu0
        %v2661 = vadd.f32 %v2548, %v2660
        %v2662 = vpop.f32.mrb[0].mxu0
        %v2663 = vadd.f32 %v2550, %v2662
        %v2664 = vpop.f32.mrb[0].mxu0
        %v2665 = vadd.f32 %v2552, %v2664
        %2666 = vmatprep.mubr.bf16.mxu0 0
        %2667 = vmatmul.mubr.bf16.gmra.mrb[0].mxu0 %v1778
        %v2668 = vpop.f32.mrb[0].mxu0
        %v2669 = vadd.f32 %v2556, %v2668
        %v2670 = vpop.f32.mrb[0].mxu0
        %v2671 = vadd.f32 %v2558, %v2670
        %v2672 = vpop.f32.mrb[0].mxu0
        %v2673 = vadd.f32 %v2560, %v2672
        %v2674 = vpop.f32.mrb[0].mxu0
        %v2675 = vadd.f32 %v2562, %v2674
        %2676 = vmatprep.mubr.bf16.mxu0 0
        %2677 = vmatmul.mubr.bf16.gmra.mrb[0].mxu0 %v1781
        %v2678 = vpop.f32.mrb[0].mxu0
        %v2679 = vadd.f32 %v2566, %v2678
        %v2680 = vpop.f32.mrb[0].mxu0
        %v2681 = vadd.f32 %v2568, %v2680
        %v2682 = vpop.f32.mrb[0].mxu0
        %v2683 = vadd.f32 %v2570, %v2682
        %v2684 = vpop.f32.mrb[0].mxu0
        %v2685 = vadd.f32 %v2572, %v2684
        %2686 = vdwg.mxu0
        %v2687 = vmax.f32 %v2157, 0.0
        %v2688 = vmax.f32 %v2159, 0.0
        %v2689 = vmax.f32 %v2609, 0.0
        %v2690 = vmax.f32 %v2611, 0.0
        %v2691 = vmax.f32 %v2161, 0.0
        %v2692 = vmax.f32 %v2163, 0.0
        %v2693 = vmax.f32 %v2613, 0.0
        %v2694 = vmax.f32 %v2615, 0.0
        %v2695 = vmax.f32 %v2167, 0.0
        %v2696 = vmax.f32 %v2169, 0.0
        %v2697 = vmax.f32 %v2619, 0.0
        %v2698 = vmax.f32 %v2621, 0.0
        %v2699 = vmax.f32 %v2171, 0.0
        %v2700 = vmax.f32 %v2173, 0.0
        %v2701 = vmax.f32 %v2623, 0.0
        %v2702 = vmax.f32 %v2625, 0.0
        %v2703 = vmax.f32 %v2177, 0.0
        %v2704 = vmax.f32 %v2179, 0.0
        %v2705 = vmax.f32 %v2629, 0.0
        %v2706 = vmax.f32 %v2631, 0.0
        %v2707 = vmax.f32 %v2181, 0.0
        %v2708 = vmax.f32 %v2183, 0.0
        %v2709 = vmax.f32 %v2633, 0.0
        %v2710 = vmax.f32 %v2635, 0.0
        %v2711 = vmax.f32 %v2187, 0.0
        %v2712 = vmax.f32 %v2189, 0.0
        %v2713 = vmax.f32 %v2639, 0.0
        %v2714 = vmax.f32 %v2641, 0.0
        %v2715 = vmax.f32 %v2191, 0.0
        %v2716 = vmax.f32 %v2193, 0.0
        %v2717 = vmax.f32 %v2643, 0.0
        %v2718 = vmax.f32 %v2645, 0.0
        %v2719 = vmax.f32 %v2197, 0.0
        %v2720 = vmax.f32 %v2199, 0.0
        %v2721 = vmax.f32 %v2649, 0.0
        %v2722 = vmax.f32 %v2651, 0.0
        %v2723 = vmax.f32 %v2201, 0.0
        %v2724 = vmax.f32 %v2203, 0.0
        %v2725 = vmax.f32 %v2653, 0.0
        %v2726 = vmax.f32 %v2655, 0.0
        %v2727 = vmax.f32 %v2207, 0.0
        %v2728 = vmax.f32 %v2209, 0.0
        %v2729 = vmax.f32 %v2659, 0.0
        %v2730 = vmax.f32 %v2661, 0.0
        %v2731 = vmax.f32 %v2211, 0.0
        %v2732 = vmax.f32 %v2213, 0.0
        %v2733 = vmax.f32 %v2663, 0.0
        %v2734 = vmax.f32 %v2665, 0.0
        %v2735 = vmax.f32 %v2217, 0.0
        %v2736 = vmax.f32 %v2219, 0.0
        %v2737 = vmax.f32 %v2669, 0.0
        %v2738 = vmax.f32 %v2671, 0.0
        %v2739 = vmax.f32 %v2221, 0.0
        %v2740 = vmax.f32 %v2223, 0.0
        %v2741 = vmax.f32 %v2673, 0.0
        %v2742 = vmax.f32 %v2675, 0.0
        %v2743 = vmax.f32 %v2227, 0.0
        %v2744 = vmax.f32 %v2229, 0.0
        %v2745 = vmax.f32 %v2679, 0.0
        %v2746 = vmax.f32 %v2681, 0.0
        %v2747 = vmax.f32 %v2231, 0.0
        %v2748 = vmax.f32 %v2233, 0.0
        %v2749 = vmax.f32 %v2683, 0.0
        %v2750 = vmax.f32 %v2685, 0.0
        %v2751 = vpack.c.bf16 %v2691, %v2687
        %v2752 = vpack.c.bf16 %v2692, %v2688
        %v2753 = vpack.c.bf16 %v2693, %v2689
        %v2754 = vpack.c.bf16 %v2694, %v2690
        %v2755 = vpack.c.bf16 %v2699, %v2695
        %v2756 = vpack.c.bf16 %v2700, %v2696
        %v2757 = vpack.c.bf16 %v2701, %v2697
        %v2758 = vpack.c.bf16 %v2702, %v2698
        %v2759 = vpack.c.bf16 %v2707, %v2703
        %v2760 = vpack.c.bf16 %v2708, %v2704
        %v2761 = vpack.c.bf16 %v2709, %v2705
        %v2762 = vpack.c.bf16 %v2710, %v2706
        %v2763 = vpack.c.bf16 %v2715, %v2711
        %v2764 = vpack.c.bf16 %v2716, %v2712
        %v2765 = vpack.c.bf16 %v2717, %v2713
        %v2766 = vpack.c.bf16 %v2718, %v2714
        %v2767 = vpack.c.bf16 %v2723, %v2719
        %v2768 = vpack.c.bf16 %v2724, %v2720
        %v2769 = vpack.c.bf16 %v2725, %v2721
        %v2770 = vpack.c.bf16 %v2726, %v2722
        %v2771 = vpack.c.bf16 %v2731, %v2727
        %v2772 = vpack.c.bf16 %v2732, %v2728
        %v2773 = vpack.c.bf16 %v2733, %v2729
        %v2774 = vpack.c.bf16 %v2734, %v2730
        %v2775 = vpack.c.bf16 %v2739, %v2735
        %v2776 = vpack.c.bf16 %v2740, %v2736
        %v2777 = vpack.c.bf16 %v2741, %v2737
        %v2778 = vpack.c.bf16 %v2742, %v2738
        %v2779 = vpack.c.bf16 %v2747, %v2743
        %v2780 = vpack.c.bf16 %v2748, %v2744
        %v2781 = vpack.c.bf16 %v2749, %v2745
        %v2782 = vpack.c.bf16 %v2750, %v2746
        %v2783 = vld [vmem:[%s3] sm:$0xff]
        %v2784 = vld [vmem:[%s3 + $0x8] sm:$0xff]
        %v2785 = vld [vmem:[%s3 + $0x10] sm:$0xff]
        %v2786 = vld [vmem:[%s3 + $0x18] sm:$0xff]
        %v2787 = vld [vmem:[%s3 + $0x20] sm:$0xff]
        %v2788 = vld [vmem:[%s3 + $0x28] sm:$0xff]
        %v2789 = vld [vmem:[%s3 + $0x30] sm:$0xff]
        %v2790 = vld [vmem:[%s3 + $0x38] sm:$0xff]
        %v2791 = vld [vmem:[%s3 + $0x40] sm:$0xff]
        %v2792 = vld [vmem:[%s3 + $0x48] sm:$0xff]
        %v2793 = vld [vmem:[%s3 + $0x50] sm:$0xff]
        %v2794 = vld [vmem:[%s3 + $0x58] sm:$0xff]
        %v2795 = vld [vmem:[%s3 + $0x60] sm:$0xff]
        %v2796 = vld [vmem:[%s3 + $0x68] sm:$0xff]
        %v2797 = vld [vmem:[%s3 + $0x70] sm:$0xff]
        %v2798 = vld [vmem:[%s3 + $0x78] sm:$0xff]
        %v2799 = vld [vmem:[%s3 + $0x80] sm:$0xff]
        %v2800 = vld [vmem:[%s3 + $0x88] sm:$0xff]
        %v2801 = vld [vmem:[%s3 + $0x90] sm:$0xff]
        %v2802 = vld [vmem:[%s3 + $0x98] sm:$0xff]
        %v2803 = vld [vmem:[%s3 + $0xa0] sm:$0xff]
        %v2804 = vld [vmem:[%s3 + $0xa8] sm:$0xff]
        %v2805 = vld [vmem:[%s3 + $0xb0] sm:$0xff]
        %v2806 = vld [vmem:[%s3 + $0xb8] sm:$0xff]
        %v2807 = vld [vmem:[%s3 + $0xc0] sm:$0xff]
        %v2808 = vld [vmem:[%s3 + $0xc8] sm:$0xff]
        %v2809 = vld [vmem:[%s3 + $0xd0] sm:$0xff]
        %v2810 = vld [vmem:[%s3 + $0xd8] sm:$0xff]
        %v2811 = vld [vmem:[%s3 + $0xe0] sm:$0xff]
        %v2812 = vld [vmem:[%s3 + $0xe8] sm:$0xff]
        %v2813 = vld [vmem:[%s3 + $0xf0] sm:$0xff]
        %v2814 = vld [vmem:[%s3 + $0xf8] sm:$0xff]
        %v2815 = vld [vmem:[%s3 + $0x100] sm:$0xff]
        %v2816 = vld [vmem:[%s3 + $0x108] sm:$0xff]
        %v2817 = vld [vmem:[%s3 + $0x110] sm:$0xff]
        %v2818 = vld [vmem:[%s3 + $0x118] sm:$0xff]
        %v2819 = vld [vmem:[%s3 + $0x120] sm:$0xff]
        %v2820 = vld [vmem:[%s3 + $0x128] sm:$0xff]
        %v2821 = vld [vmem:[%s3 + $0x130] sm:$0xff]
        %v2822 = vld [vmem:[%s3 + $0x138] sm:$0xff]
        %v2823 = vld [vmem:[%s3 + $0x140] sm:$0xff]
        %v2824 = vld [vmem:[%s3 + $0x148] sm:$0xff]
        %v2825 = vld [vmem:[%s3 + $0x150] sm:$0xff]
        %v2826 = vld [vmem:[%s3 + $0x158] sm:$0xff]
        %v2827 = vld [vmem:[%s3 + $0x160] sm:$0xff]
        %v2828 = vld [vmem:[%s3 + $0x168] sm:$0xff]
        %v2829 = vld [vmem:[%s3 + $0x170] sm:$0xff]
        %v2830 = vld [vmem:[%s3 + $0x178] sm:$0xff]
        %v2831 = vld [vmem:[%s3 + $0x180] sm:$0xff]
        %v2832 = vld [vmem:[%s3 + $0x188] sm:$0xff]
        %v2833 = vld [vmem:[%s3 + $0x190] sm:$0xff]
        %v2834 = vld [vmem:[%s3 + $0x198] sm:$0xff]
        %v2835 = vld [vmem:[%s3 + $0x1a0] sm:$0xff]
        %v2836 = vld [vmem:[%s3 + $0x1a8] sm:$0xff]
        %v2837 = vld [vmem:[%s3 + $0x1b0] sm:$0xff]
        %v2838 = vld [vmem:[%s3 + $0x1b8] sm:$0xff]
        %v2839 = vld [vmem:[%s3 + $0x1c0] sm:$0xff]
        %v2840 = vld [vmem:[%s3 + $0x1c8] sm:$0xff]
        %v2841 = vld [vmem:[%s3 + $0x1d0] sm:$0xff]
        %v2842 = vld [vmem:[%s3 + $0x1d8] sm:$0xff]
        %v2843 = vld [vmem:[%s3 + $0x1e0] sm:$0xff]
        %v2844 = vld [vmem:[%s3 + $0x1e8] sm:$0xff]
        %v2845 = vld [vmem:[%s3 + $0x1f0] sm:$0xff]
        %v2846 = vld [vmem:[%s3 + $0x1f8] sm:$0xff]
        %v2847 = vld [vmem:[%s4] sm:$0x3]
        %v2849 = vlaneseq
        %v2850 = vshrl.u32 %v2849, 7
        %v2851 = vsub.s32 0, %v2850
        %v2852 = vrot.slane %v2847, %v2851
        %v2853 = vlaneseq
        %v2854 = vshrl.u32 %v2853, 7
        %v2855 = vsub.s32 1, %v2854
        %v2856 = vrot.slane %v2847, %v2855
        %v2923 = vunpack.c.l.b16 %v2783
        %v2924 = vunpack.c.h.b16 %v2783
        %v2925 = vunpack.c.l.b16 %v2784
        %v2926 = vunpack.c.h.b16 %v2784
        %v2927 = vunpack.c.l.b16 %v2785
        %v2928 = vunpack.c.h.b16 %v2785
        %v2929 = vunpack.c.l.b16 %v2786
        %v2930 = vunpack.c.h.b16 %v2786
        %v2931 = vunpack.c.l.b16 %v2787
        %v2932 = vunpack.c.h.b16 %v2787
        %v2933 = vunpack.c.l.b16 %v2788
        %v2934 = vunpack.c.h.b16 %v2788
        %v2935 = vunpack.c.l.b16 %v2789
        %v2936 = vunpack.c.h.b16 %v2789
        %v2937 = vunpack.c.l.b16 %v2790
        %v2938 = vunpack.c.h.b16 %v2790
        %v2939 = vunpack.c.l.b16 %v2791
        %v2940 = vunpack.c.h.b16 %v2791
        %v2941 = vunpack.c.l.b16 %v2792
        %v2942 = vunpack.c.h.b16 %v2792
        %v2943 = vunpack.c.l.b16 %v2793
        %v2944 = vunpack.c.h.b16 %v2793
        %v2945 = vunpack.c.l.b16 %v2794
        %v2946 = vunpack.c.h.b16 %v2794
        %v2947 = vunpack.c.l.b16 %v2795
        %v2948 = vunpack.c.h.b16 %v2795
        %v2949 = vunpack.c.l.b16 %v2796
        %v2950 = vunpack.c.h.b16 %v2796
        %v2951 = vunpack.c.l.b16 %v2797
        %v2952 = vunpack.c.h.b16 %v2797
        %v2953 = vunpack.c.l.b16 %v2798
        %v2954 = vunpack.c.h.b16 %v2798
        %v2955 = vunpack.c.l.b16 %v2799
        %v2956 = vunpack.c.h.b16 %v2799
        %v2957 = vunpack.c.l.b16 %v2800
        %v2958 = vunpack.c.h.b16 %v2800
        %v2959 = vunpack.c.l.b16 %v2801
        %v2960 = vunpack.c.h.b16 %v2801
        %v2961 = vunpack.c.l.b16 %v2802
        %v2962 = vunpack.c.h.b16 %v2802
        %v2963 = vunpack.c.l.b16 %v2803
        %v2964 = vunpack.c.h.b16 %v2803
        %v2965 = vunpack.c.l.b16 %v2804
        %v2966 = vunpack.c.h.b16 %v2804
        %v2967 = vunpack.c.l.b16 %v2805
        %v2968 = vunpack.c.h.b16 %v2805
        %v2969 = vunpack.c.l.b16 %v2806
        %v2970 = vunpack.c.h.b16 %v2806
        %v2971 = vunpack.c.l.b16 %v2807
        %v2972 = vunpack.c.h.b16 %v2807
        %v2973 = vunpack.c.l.b16 %v2808
        %v2974 = vunpack.c.h.b16 %v2808
        %v2975 = vunpack.c.l.b16 %v2809
        %v2976 = vunpack.c.h.b16 %v2809
        %v2977 = vunpack.c.l.b16 %v2810
        %v2978 = vunpack.c.h.b16 %v2810
        %v2979 = vunpack.c.l.b16 %v2811
        %v2980 = vunpack.c.h.b16 %v2811
        %v2981 = vunpack.c.l.b16 %v2812
        %v2982 = vunpack.c.h.b16 %v2812
        %v2983 = vunpack.c.l.b16 %v2813
        %v2984 = vunpack.c.h.b16 %v2813
        %v2985 = vunpack.c.l.b16 %v2814
        %v2986 = vunpack.c.h.b16 %v2814
        %v2987 = vunpack.c.l.b16 %v2815
        %v2988 = vunpack.c.h.b16 %v2815
        %v2989 = vunpack.c.l.b16 %v2816
        %v2990 = vunpack.c.h.b16 %v2816
        %v2991 = vunpack.c.l.b16 %v2817
        %v2992 = vunpack.c.h.b16 %v2817
        %v2993 = vunpack.c.l.b16 %v2818
        %v2994 = vunpack.c.h.b16 %v2818
        %v2995 = vunpack.c.l.b16 %v2819
        %v2996 = vunpack.c.h.b16 %v2819
        %v2997 = vunpack.c.l.b16 %v2820
        %v2998 = vunpack.c.h.b16 %v2820
        %v2999 = vunpack.c.l.b16 %v2821
        %v3000 = vunpack.c.h.b16 %v2821
        %v3001 = vunpack.c.l.b16 %v2822
        %v3002 = vunpack.c.h.b16 %v2822
        %v3003 = vunpack.c.l.b16 %v2823
        %v3004 = vunpack.c.h.b16 %v2823
        %v3005 = vunpack.c.l.b16 %v2824
        %v3006 = vunpack.c.h.b16 %v2824
        %v3007 = vunpack.c.l.b16 %v2825
        %v3008 = vunpack.c.h.b16 %v2825
        %v3009 = vunpack.c.l.b16 %v2826
        %v3010 = vunpack.c.h.b16 %v2826
        %v3011 = vunpack.c.l.b16 %v2827
        %v3012 = vunpack.c.h.b16 %v2827
        %v3013 = vunpack.c.l.b16 %v2828
        %v3014 = vunpack.c.h.b16 %v2828
        %v3015 = vunpack.c.l.b16 %v2829
        %v3016 = vunpack.c.h.b16 %v2829
        %v3017 = vunpack.c.l.b16 %v2830
        %v3018 = vunpack.c.h.b16 %v2830
        %v3019 = vunpack.c.l.b16 %v2831
        %v3020 = vunpack.c.h.b16 %v2831
        %v3021 = vunpack.c.l.b16 %v2832
        %v3022 = vunpack.c.h.b16 %v2832
        %v3023 = vunpack.c.l.b16 %v2833
        %v3024 = vunpack.c.h.b16 %v2833
        %v3025 = vunpack.c.l.b16 %v2834
        %v3026 = vunpack.c.h.b16 %v2834
        %v3027 = vunpack.c.l.b16 %v2835
        %v3028 = vunpack.c.h.b16 %v2835
        %v3029 = vunpack.c.l.b16 %v2836
        %v3030 = vunpack.c.h.b16 %v2836
        %v3031 = vunpack.c.l.b16 %v2837
        %v3032 = vunpack.c.h.b16 %v2837
        %v3033 = vunpack.c.l.b16 %v2838
        %v3034 = vunpack.c.h.b16 %v2838
        %v3035 = vunpack.c.l.b16 %v2839
        %v3036 = vunpack.c.h.b16 %v2839
        %v3037 = vunpack.c.l.b16 %v2840
        %v3038 = vunpack.c.h.b16 %v2840
        %v3039 = vunpack.c.l.b16 %v2841
        %v3040 = vunpack.c.h.b16 %v2841
        %v3041 = vunpack.c.l.b16 %v2842
        %v3042 = vunpack.c.h.b16 %v2842
        %v3043 = vunpack.c.l.b16 %v2843
        %v3044 = vunpack.c.h.b16 %v2843
        %v3045 = vunpack.c.l.b16 %v2844
        %v3046 = vunpack.c.h.b16 %v2844
        %v3047 = vunpack.c.l.b16 %v2845
        %v3048 = vunpack.c.h.b16 %v2845
        %v3049 = vunpack.c.l.b16 %v2846
        %v3050 = vunpack.c.h.b16 %v2846
        %v3051 = vpack.c.b16 %v2925, %v2923
        %v3052 = vpack.c.b16 %v2926, %v2924
        %v3053 = vpack.c.b16 %v2929, %v2927
        %v3054 = vpack.c.b16 %v2930, %v2928
        %v3055 = vpack.c.b16 %v2933, %v2931
        %v3056 = vpack.c.b16 %v2934, %v2932
        %v3057 = vpack.c.b16 %v2937, %v2935
        %v3058 = vpack.c.b16 %v2938, %v2936
        %v3059 = vpack.c.b16 %v2941, %v2939
        %v3060 = vpack.c.b16 %v2942, %v2940
        %v3061 = vpack.c.b16 %v2945, %v2943
        %v3062 = vpack.c.b16 %v2946, %v2944
        %v3063 = vpack.c.b16 %v2949, %v2947
        %v3064 = vpack.c.b16 %v2950, %v2948
        %v3065 = vpack.c.b16 %v2953, %v2951
        %v3066 = vpack.c.b16 %v2954, %v2952
        %v3067 = vpack.c.b16 %v2957, %v2955
        %v3068 = vpack.c.b16 %v2958, %v2956
        %v3069 = vpack.c.b16 %v2961, %v2959
        %v3070 = vpack.c.b16 %v2962, %v2960
        %v3071 = vpack.c.b16 %v2965, %v2963
        %v3072 = vpack.c.b16 %v2966, %v2964
        %v3073 = vpack.c.b16 %v2969, %v2967
        %v3074 = vpack.c.b16 %v2970, %v2968
        %v3075 = vpack.c.b16 %v2973, %v2971
        %v3076 = vpack.c.b16 %v2974, %v2972
        %v3077 = vpack.c.b16 %v2977, %v2975
        %v3078 = vpack.c.b16 %v2978, %v2976
        %v3079 = vpack.c.b16 %v2981, %v2979
        %v3080 = vpack.c.b16 %v2982, %v2980
        %v3081 = vpack.c.b16 %v2985, %v2983
        %v3082 = vpack.c.b16 %v2986, %v2984
        %v3083 = vpack.c.b16 %v2989, %v2987
        %v3084 = vpack.c.b16 %v2990, %v2988
        %v3085 = vpack.c.b16 %v2993, %v2991
        %v3086 = vpack.c.b16 %v2994, %v2992
        %v3087 = vpack.c.b16 %v2997, %v2995
        %v3088 = vpack.c.b16 %v2998, %v2996
        %v3089 = vpack.c.b16 %v3001, %v2999
        %v3090 = vpack.c.b16 %v3002, %v3000
        %v3091 = vpack.c.b16 %v3005, %v3003
        %v3092 = vpack.c.b16 %v3006, %v3004
        %v3093 = vpack.c.b16 %v3009, %v3007
        %v3094 = vpack.c.b16 %v3010, %v3008
        %v3095 = vpack.c.b16 %v3013, %v3011
        %v3096 = vpack.c.b16 %v3014, %v3012
        %v3097 = vpack.c.b16 %v3017, %v3015
        %v3098 = vpack.c.b16 %v3018, %v3016
        %v3099 = vpack.c.b16 %v3021, %v3019
        %v3100 = vpack.c.b16 %v3022, %v3020
        %v3101 = vpack.c.b16 %v3025, %v3023
        %v3102 = vpack.c.b16 %v3026, %v3024
        %v3103 = vpack.c.b16 %v3029, %v3027
        %v3104 = vpack.c.b16 %v3030, %v3028
        %v3105 = vpack.c.b16 %v3033, %v3031
        %v3106 = vpack.c.b16 %v3034, %v3032
        %v3107 = vpack.c.b16 %v3037, %v3035
        %v3108 = vpack.c.b16 %v3038, %v3036
        %v3109 = vpack.c.b16 %v3041, %v3039
        %v3110 = vpack.c.b16 %v3042, %v3040
        %v3111 = vpack.c.b16 %v3045, %v3043
        %v3112 = vpack.c.b16 %v3046, %v3044
        %v3113 = vpack.c.b16 %v3049, %v3047
        %v3114 = vpack.c.b16 %v3050, %v3048
        %3179 = vmatprep.subr.bf16.mxu0 %v3052
        %3180 = vmatpush1.bf16.msra.mxu0 %v3051
        %3181 = vmatprep.subr.bf16.mxu0 %v3054
        %3182 = vmatpush1.bf16.msra.mxu0 %v3053
        %3183 = vmatprep.subr.bf16.mxu0 %v3056
        %3184 = vmatpush1.bf16.msra.mxu0 %v3055
        %3185 = vmatprep.subr.bf16.mxu0 %v3058
        %3186 = vmatpush1.bf16.msra.mxu0 %v3057
        %3187 = vmatprep.subr.bf16.mxu0 %v3060
        %3188 = vmatpush1.bf16.msra.mxu0 %v3059
        %3189 = vmatprep.subr.bf16.mxu0 %v3062
        %3190 = vmatpush1.bf16.msra.mxu0 %v3061
        %3191 = vmatprep.subr.bf16.mxu0 %v3064
        %3192 = vmatpush1.bf16.msra.mxu0 %v3063
        %3193 = vmatprep.subr.bf16.mxu0 %v3066
        %3194 = vmatpush1.bf16.msra.mxu0 %v3065
        %3195 = vmatprep.subr.bf16.mxu0 %v3068
        %3196 = vmatpush1.bf16.msra.mxu0 %v3067
        %3197 = vmatprep.subr.bf16.mxu0 %v3070
        %3198 = vmatpush1.bf16.msra.mxu0 %v3069
        %3199 = vmatprep.subr.bf16.mxu0 %v3072
        %3200 = vmatpush1.bf16.msra.mxu0 %v3071
        %3201 = vmatprep.subr.bf16.mxu0 %v3074
        %3202 = vmatpush1.bf16.msra.mxu0 %v3073
        %3203 = vmatprep.subr.bf16.mxu0 %v3076
        %3204 = vmatpush1.bf16.msra.mxu0 %v3075
        %3205 = vmatprep.subr.bf16.mxu0 %v3078
        %3206 = vmatpush1.bf16.msra.mxu0 %v3077
        %3207 = vmatprep.subr.bf16.mxu0 %v3080
        %3208 = vmatpush1.bf16.msra.mxu0 %v3079
        %3209 = vmatprep.subr.bf16.mxu0 %v3082
        %3210 = vmatpush1.bf16.msra.mxu0 %v3081
        %3211 = vmatprep.mubr.bf16.mxu0 %v2752
        %3212 = vmatmul.mubr.bf16.gmra.mrb[0].mxu0 %v2751
        %v3213 = vpop.f32.mrb[0].mxu0
        %v3214 = vadd.f32 %v2852, %v3213
        %v3215 = vpop.f32.mrb[0].mxu0
        %v3216 = vadd.f32 %v2856, %v3215
        %v3217 = vpop.f32.mrb[0].mxu0
        %v3218 = vadd.f32 %v2852, %v3217
        %v3219 = vpop.f32.mrb[0].mxu0
        %v3220 = vadd.f32 %v2856, %v3219
        %3221 = vmatprep.mubr.bf16.mxu0 %v2756
        %3222 = vmatmul.mubr.bf16.gmra.mrb[0].mxu0 %v2755
        %v3223 = vpop.f32.mrb[0].mxu0
        %v3224 = vadd.f32 %v2852, %v3223
        %v3225 = vpop.f32.mrb[0].mxu0
        %v3226 = vadd.f32 %v2856, %v3225
        %v3227 = vpop.f32.mrb[0].mxu0
        %v3228 = vadd.f32 %v2852, %v3227
        %v3229 = vpop.f32.mrb[0].mxu0
        %v3230 = vadd.f32 %v2856, %v3229
        %3231 = vmatprep.mubr.bf16.mxu0 %v2760
        %3232 = vmatmul.mubr.bf16.gmra.mrb[0].mxu0 %v2759
        %v3233 = vpop.f32.mrb[0].mxu0
        %v3234 = vadd.f32 %v2852, %v3233
        %v3235 = vpop.f32.mrb[0].mxu0
        %v3236 = vadd.f32 %v2856, %v3235
        %v3237 = vpop.f32.mrb[0].mxu0
        %v3238 = vadd.f32 %v2852, %v3237
        %v3239 = vpop.f32.mrb[0].mxu0
        %v3240 = vadd.f32 %v2856, %v3239
        %3241 = vmatprep.mubr.bf16.mxu0 %v2764
        %3242 = vmatmul.mubr.bf16.gmra.mrb[0].mxu0 %v2763
        %v3243 = vpop.f32.mrb[0].mxu0
        %v3244 = vadd.f32 %v2852, %v3243
        %v3245 = vpop.f32.mrb[0].mxu0
        %v3246 = vadd.f32 %v2856, %v3245
        %v3247 = vpop.f32.mrb[0].mxu0
        %v3248 = vadd.f32 %v2852, %v3247
        %v3249 = vpop.f32.mrb[0].mxu0
        %v3250 = vadd.f32 %v2856, %v3249
        %3251 = vmatprep.mubr.bf16.mxu0 %v2768
        %3252 = vmatmul.mubr.bf16.gmra.mrb[0].mxu0 %v2767
        %v3253 = vpop.f32.mrb[0].mxu0
        %v3254 = vadd.f32 %v2852, %v3253
        %v3255 = vpop.f32.mrb[0].mxu0
        %v3256 = vadd.f32 %v2856, %v3255
        %v3257 = vpop.f32.mrb[0].mxu0
        %v3258 = vadd.f32 %v2852, %v3257
        %v3259 = vpop.f32.mrb[0].mxu0
        %v3260 = vadd.f32 %v2856, %v3259
        %3261 = vmatprep.mubr.bf16.mxu0 %v2772
        %3262 = vmatmul.mubr.bf16.gmra.mrb[0].mxu0 %v2771
        %v3263 = vpop.f32.mrb[0].mxu0
        %v3264 = vadd.f32 %v2852, %v3263
        %v3265 = vpop.f32.mrb[0].mxu0
        %v3266 = vadd.f32 %v2856, %v3265
        %v3267 = vpop.f32.mrb[0].mxu0
        %v3268 = vadd.f32 %v2852, %v3267
        %v3269 = vpop.f32.mrb[0].mxu0
        %v3270 = vadd.f32 %v2856, %v3269
        %3271 = vmatprep.mubr.bf16.mxu0 %v2776
        %3272 = vmatmul.mubr.bf16.gmra.mrb[0].mxu0 %v2775
        %v3273 = vpop.f32.mrb[0].mxu0
        %v3274 = vadd.f32 %v2852, %v3273
        %v3275 = vpop.f32.mrb[0].mxu0
        %v3276 = vadd.f32 %v2856, %v3275
        %v3277 = vpop.f32.mrb[0].mxu0
        %v3278 = vadd.f32 %v2852, %v3277
        %v3279 = vpop.f32.mrb[0].mxu0
        %v3280 = vadd.f32 %v2856, %v3279
        %3281 = vmatprep.mubr.bf16.mxu0 %v2780
        %3282 = vmatmul.mubr.bf16.gmra.mrb[0].mxu0 %v2779
        %v3283 = vpop.f32.mrb[0].mxu0
        %v3284 = vadd.f32 %v2852, %v3283
        %v3285 = vpop.f32.mrb[0].mxu0
        %v3286 = vadd.f32 %v2856, %v3285
        %v3287 = vpop.f32.mrb[0].mxu0
        %v3288 = vadd.f32 %v2852, %v3287
        %v3289 = vpop.f32.mrb[0].mxu0
        %v3290 = vadd.f32 %v2856, %v3289
        %3291 = vdwg.mxu0
        %3292 = vmatprep.subr.bf16.mxu0 %v3084
        %3293 = vmatpush1.bf16.msra.mxu0 %v3083
        %3294 = vmatprep.subr.bf16.mxu0 %v3086
        %3295 = vmatpush1.bf16.msra.mxu0 %v3085
        %3296 = vmatprep.subr.bf16.mxu0 %v3088
        %3297 = vmatpush1.bf16.msra.mxu0 %v3087
        %3298 = vmatprep.subr.bf16.mxu0 %v3090
        %3299 = vmatpush1.bf16.msra.mxu0 %v3089
        %3300 = vmatprep.subr.bf16.mxu0 %v3092
        %3301 = vmatpush1.bf16.msra.mxu0 %v3091
        %3302 = vmatprep.subr.bf16.mxu0 %v3094
        %3303 = vmatpush1.bf16.msra.mxu0 %v3093
        %3304 = vmatprep.subr.bf16.mxu0 %v3096
        %3305 = vmatpush1.bf16.msra.mxu0 %v3095
        %3306 = vmatprep.subr.bf16.mxu0 %v3098
        %3307 = vmatpush1.bf16.msra.mxu0 %v3097
        %3308 = vmatprep.subr.bf16.mxu0 %v3100
        %3309 = vmatpush1.bf16.msra.mxu0 %v3099
        %3310 = vmatprep.subr.bf16.mxu0 %v3102
        %3311 = vmatpush1.bf16.msra.mxu0 %v3101
        %3312 = vmatprep.subr.bf16.mxu0 %v3104
        %3313 = vmatpush1.bf16.msra.mxu0 %v3103
        %3314 = vmatprep.subr.bf16.mxu0 %v3106
        %3315 = vmatpush1.bf16.msra.mxu0 %v3105
        %3316 = vmatprep.subr.bf16.mxu0 %v3108
        %3317 = vmatpush1.bf16.msra.mxu0 %v3107
        %3318 = vmatprep.subr.bf16.mxu0 %v3110
        %3319 = vmatpush1.bf16.msra.mxu0 %v3109
        %3320 = vmatprep.subr.bf16.mxu0 %v3112
        %3321 = vmatpush1.bf16.msra.mxu0 %v3111
        %3322 = vmatprep.subr.bf16.mxu0 %v3114
        %3323 = vmatpush1.bf16.msra.mxu0 %v3113
        %3324 = vmatprep.mubr.bf16.mxu0 %v2754
        %3325 = vmatmul.mubr.bf16.gmra.mrb[0].mxu0 %v2753
        %v3326 = vpop.f32.mrb[0].mxu0
        %v3327 = vadd.f32 %v3214, %v3326
        %v3328 = vpop.f32.mrb[0].mxu0
        %v3329 = vadd.f32 %v3216, %v3328
        %v3330 = vpop.f32.mrb[0].mxu0
        %v3331 = vadd.f32 %v3218, %v3330
        %v3332 = vpop.f32.mrb[0].mxu0
        %v3333 = vadd.f32 %v3220, %v3332
        %3334 = vmatprep.mubr.bf16.mxu0 %v2758
        %3335 = vmatmul.mubr.bf16.gmra.mrb[0].mxu0 %v2757
        %v3336 = vpop.f32.mrb[0].mxu0
        %v3337 = vadd.f32 %v3224, %v3336
        %v3338 = vpop.f32.mrb[0].mxu0
        %v3339 = vadd.f32 %v3226, %v3338
        %v3340 = vpop.f32.mrb[0].mxu0
        %v3341 = vadd.f32 %v3228, %v3340
        %v3342 = vpop.f32.mrb[0].mxu0
        %v3343 = vadd.f32 %v3230, %v3342
        %3344 = vmatprep.mubr.bf16.mxu0 %v2762
        %3345 = vmatmul.mubr.bf16.gmra.mrb[0].mxu0 %v2761
        %v3346 = vpop.f32.mrb[0].mxu0
        %v3347 = vadd.f32 %v3234, %v3346
        %v3348 = vpop.f32.mrb[0].mxu0
        %v3349 = vadd.f32 %v3236, %v3348
        %v3350 = vpop.f32.mrb[0].mxu0
        %v3351 = vadd.f32 %v3238, %v3350
        %v3352 = vpop.f32.mrb[0].mxu0
        %v3353 = vadd.f32 %v3240, %v3352
        %3354 = vmatprep.mubr.bf16.mxu0 %v2766
        %3355 = vmatmul.mubr.bf16.gmra.mrb[0].mxu0 %v2765
        %v3356 = vpop.f32.mrb[0].mxu0
        %v3357 = vadd.f32 %v3244, %v3356
        %v3358 = vpop.f32.mrb[0].mxu0
        %v3359 = vadd.f32 %v3246, %v3358
        %v3360 = vpop.f32.mrb[0].mxu0
        %v3361 = vadd.f32 %v3248, %v3360
        %v3362 = vpop.f32.mrb[0].mxu0
        %v3363 = vadd.f32 %v3250, %v3362
        %3364 = vmatprep.mubr.bf16.mxu0 %v2770
        %3365 = vmatmul.mubr.bf16.gmra.mrb[0].mxu0 %v2769
        %v3366 = vpop.f32.mrb[0].mxu0
        %v3367 = vadd.f32 %v3254, %v3366
        %v3368 = vpop.f32.mrb[0].mxu0
        %v3369 = vadd.f32 %v3256, %v3368
        %v3370 = vpop.f32.mrb[0].mxu0
        %v3371 = vadd.f32 %v3258, %v3370
        %v3372 = vpop.f32.mrb[0].mxu0
        %v3373 = vadd.f32 %v3260, %v3372
        %3374 = vmatprep.mubr.bf16.mxu0 %v2774
        %3375 = vmatmul.mubr.bf16.gmra.mrb[0].mxu0 %v2773
        %v3376 = vpop.f32.mrb[0].mxu0
        %v3377 = vadd.f32 %v3264, %v3376
        %v3378 = vpop.f32.mrb[0].mxu0
        %v3379 = vadd.f32 %v3266, %v3378
        %v3380 = vpop.f32.mrb[0].mxu0
        %v3381 = vadd.f32 %v3268, %v3380
        %v3382 = vpop.f32.mrb[0].mxu0
        %v3383 = vadd.f32 %v3270, %v3382
        %3384 = vmatprep.mubr.bf16.mxu0 %v2778
        %3385 = vmatmul.mubr.bf16.gmra.mrb[0].mxu0 %v2777
        %v3386 = vpop.f32.mrb[0].mxu0
        %v3387 = vadd.f32 %v3274, %v3386
        %v3388 = vpop.f32.mrb[0].mxu0
        %v3389 = vadd.f32 %v3276, %v3388
        %v3390 = vpop.f32.mrb[0].mxu0
        %v3391 = vadd.f32 %v3278, %v3390
        %v3392 = vpop.f32.mrb[0].mxu0
        %v3393 = vadd.f32 %v3280, %v3392
        %3394 = vmatprep.mubr.bf16.mxu0 %v2782
        %3395 = vmatmul.mubr.bf16.gmra.mrb[0].mxu0 %v2781
        %v3396 = vpop.f32.mrb[0].mxu0
        %v3397 = vadd.f32 %v3284, %v3396
        %v3398 = vpop.f32.mrb[0].mxu0
        %v3399 = vadd.f32 %v3286, %v3398
        %v3400 = vpop.f32.mrb[0].mxu0
        %v3401 = vadd.f32 %v3288, %v3400
        %v3402 = vpop.f32.mrb[0].mxu0
        %v3403 = vadd.f32 %v3290, %v3402
        %3404 = vdwg.mxu0
        %v3405 = vmax.f32 %v3327, 0.0
        %v3406 = vmax.f32 %v3329, 0.0
        %v3407 = vmax.f32 %v3331, 0.0
        %v3408 = vmax.f32 %v3333, 0.0
        %v3409 = vmax.f32 %v3337, 0.0
        %v3410 = vmax.f32 %v3339, 0.0
        %v3411 = vmax.f32 %v3341, 0.0
        %v3412 = vmax.f32 %v3343, 0.0
        %v3413 = vmax.f32 %v3347, 0.0
        %v3414 = vmax.f32 %v3349, 0.0
        %v3415 = vmax.f32 %v3351, 0.0
        %v3416 = vmax.f32 %v3353, 0.0
        %v3417 = vmax.f32 %v3357, 0.0
        %v3418 = vmax.f32 %v3359, 0.0
        %v3419 = vmax.f32 %v3361, 0.0
        %v3420 = vmax.f32 %v3363, 0.0
        %v3421 = vmax.f32 %v3367, 0.0
        %v3422 = vmax.f32 %v3369, 0.0
        %v3423 = vmax.f32 %v3371, 0.0
        %v3424 = vmax.f32 %v3373, 0.0
        %v3425 = vmax.f32 %v3377, 0.0
        %v3426 = vmax.f32 %v3379, 0.0
        %v3427 = vmax.f32 %v3381, 0.0
        %v3428 = vmax.f32 %v3383, 0.0
        %v3429 = vmax.f32 %v3387, 0.0
        %v3430 = vmax.f32 %v3389, 0.0
        %v3431 = vmax.f32 %v3391, 0.0
        %v3432 = vmax.f32 %v3393, 0.0
        %v3433 = vmax.f32 %v3397, 0.0
        %v3434 = vmax.f32 %v3399, 0.0
        %v3435 = vmax.f32 %v3401, 0.0
        %v3436 = vmax.f32 %v3403, 0.0
        %v3437 = vpack.c.bf16 %v3407, %v3405
        %v3438 = vpack.c.bf16 %v3408, %v3406
        %v3439 = vpack.c.bf16 %v3411, %v3409
        %v3440 = vpack.c.bf16 %v3412, %v3410
        %v3441 = vpack.c.bf16 %v3415, %v3413
        %v3442 = vpack.c.bf16 %v3416, %v3414
        %v3443 = vpack.c.bf16 %v3419, %v3417
        %v3444 = vpack.c.bf16 %v3420, %v3418
        %v3445 = vpack.c.bf16 %v3423, %v3421
        %v3446 = vpack.c.bf16 %v3424, %v3422
        %v3447 = vpack.c.bf16 %v3427, %v3425
        %v3448 = vpack.c.bf16 %v3428, %v3426
        %v3449 = vpack.c.bf16 %v3431, %v3429
        %v3450 = vpack.c.bf16 %v3432, %v3430
        %v3451 = vpack.c.bf16 %v3435, %v3433
        %v3452 = vpack.c.bf16 %v3436, %v3434
        %v3453 = vld [vmem:[%s5] sm:$0xf]
        %v3454 = vld [vmem:[%s5 + $0x4] sm:$0xf]
        %v3455 = vld [vmem:[%s5 + $0x8] sm:$0xf]
        %v3456 = vld [vmem:[%s5 + $0xc] sm:$0xf]
        %v3457 = vld [vmem:[%s5 + $0x10] sm:$0xf]
        %v3458 = vld [vmem:[%s5 + $0x14] sm:$0xf]
        %v3459 = vld [vmem:[%s5 + $0x18] sm:$0xf]
        %v3460 = vld [vmem:[%s5 + $0x1c] sm:$0xf]
        %v3461 = vld [vmem:[%s5 + $0x20] sm:$0xf]
        %v3462 = vld [vmem:[%s5 + $0x24] sm:$0xf]
        %v3463 = vld [vmem:[%s5 + $0x28] sm:$0xf]
        %v3464 = vld [vmem:[%s5 + $0x2c] sm:$0xf]
        %v3465 = vld [vmem:[%s5 + $0x30] sm:$0xf]
        %v3466 = vld [vmem:[%s5 + $0x34] sm:$0xf]
        %v3467 = vld [vmem:[%s5 + $0x38] sm:$0xf]
        %v3468 = vld [vmem:[%s5 + $0x3c] sm:$0xf]
        %v3469 = vld [vmem:[%s5 + $0x40] sm:$0xf]
        %v3470 = vld [vmem:[%s5 + $0x44] sm:$0xf]
        %v3471 = vld [vmem:[%s5 + $0x48] sm:$0xf]
        %v3472 = vld [vmem:[%s5 + $0x4c] sm:$0xf]
        %v3473 = vld [vmem:[%s5 + $0x50] sm:$0xf]
        %v3474 = vld [vmem:[%s5 + $0x54] sm:$0xf]
        %v3475 = vld [vmem:[%s5 + $0x58] sm:$0xf]
        %v3476 = vld [vmem:[%s5 + $0x5c] sm:$0xf]
        %v3477 = vld [vmem:[%s5 + $0x60] sm:$0xf]
        %v3478 = vld [vmem:[%s5 + $0x64] sm:$0xf]
        %v3479 = vld [vmem:[%s5 + $0x68] sm:$0xf]
        %v3480 = vld [vmem:[%s5 + $0x6c] sm:$0xf]
        %v3481 = vld [vmem:[%s5 + $0x70] sm:$0xf]
        %v3482 = vld [vmem:[%s5 + $0x74] sm:$0xf]
        %v3483 = vld [vmem:[%s5 + $0x78] sm:$0xf]
        %v3484 = vld [vmem:[%s5 + $0x7c] sm:$0xf]
        %v3485 = vld [vmem:[%s6] sm:$0x1]
        %v3487 = vlaneseq
        %v3488 = vshrl.u32 %v3487, 7
        %v3489 = vsub.s32 0, %v3488
        %v3490 = vrot.slane %v3485, %v3489
        %v3524 = vunpack.c.l.b16 %v3453
        %v3525 = vunpack.c.l.b16 %v3454
        %v3526 = vunpack.c.l.b16 %v3455
        %v3527 = vunpack.c.l.b16 %v3456
        %v3528 = vunpack.c.l.b16 %v3457
        %v3529 = vunpack.c.l.b16 %v3458
        %v3530 = vunpack.c.l.b16 %v3459
        %v3531 = vunpack.c.l.b16 %v3460
        %v3532 = vunpack.c.l.b16 %v3461
        %v3533 = vunpack.c.l.b16 %v3462
        %v3534 = vunpack.c.l.b16 %v3463
        %v3535 = vunpack.c.l.b16 %v3464
        %v3536 = vunpack.c.l.b16 %v3465
        %v3537 = vunpack.c.l.b16 %v3466
        %v3538 = vunpack.c.l.b16 %v3467
        %v3539 = vunpack.c.l.b16 %v3468
        %v3540 = vunpack.c.l.b16 %v3469
        %v3541 = vunpack.c.l.b16 %v3470
        %v3542 = vunpack.c.l.b16 %v3471
        %v3543 = vunpack.c.l.b16 %v3472
        %v3544 = vunpack.c.l.b16 %v3473
        %v3545 = vunpack.c.l.b16 %v3474
        %v3546 = vunpack.c.l.b16 %v3475
        %v3547 = vunpack.c.l.b16 %v3476
        %v3548 = vunpack.c.l.b16 %v3477
        %v3549 = vunpack.c.l.b16 %v3478
        %v3550 = vunpack.c.l.b16 %v3479
        %v3551 = vunpack.c.l.b16 %v3480
        %v3552 = vunpack.c.l.b16 %v3481
        %v3553 = vunpack.c.l.b16 %v3482
        %v3554 = vunpack.c.l.b16 %v3483
        %v3555 = vunpack.c.l.b16 %v3484
        %v3556 = vpack.c.b16 %v3525, %v3524
        %v3557 = vpack.c.b16 %v3527, %v3526
        %v3558 = vpack.c.b16 %v3529, %v3528
        %v3559 = vpack.c.b16 %v3531, %v3530
        %v3560 = vpack.c.b16 %v3533, %v3532
        %v3561 = vpack.c.b16 %v3535, %v3534
        %v3562 = vpack.c.b16 %v3537, %v3536
        %v3563 = vpack.c.b16 %v3539, %v3538
        %v3564 = vpack.c.b16 %v3541, %v3540
        %v3565 = vpack.c.b16 %v3543, %v3542
        %v3566 = vpack.c.b16 %v3545, %v3544
        %v3567 = vpack.c.b16 %v3547, %v3546
        %v3568 = vpack.c.b16 %v3549, %v3548
        %v3569 = vpack.c.b16 %v3551, %v3550
        %v3570 = vpack.c.b16 %v3553, %v3552
        %v3571 = vpack.c.b16 %v3555, %v3554
        %3588 = vmatprep.subr.bf16.mxu0 0
        %3589 = vmatpush1.bf16.msra.mxu0 %v3556
        %3590 = vmatprep.subr.bf16.mxu0 0
        %3591 = vmatpush1.bf16.msra.mxu0 %v3557
        %3592 = vmatprep.subr.bf16.mxu0 0
        %3593 = vmatpush1.bf16.msra.mxu0 %v3558
        %3594 = vmatprep.subr.bf16.mxu0 0
        %3595 = vmatpush1.bf16.msra.mxu0 %v3559
        %3596 = vmatprep.subr.bf16.mxu0 0
        %3597 = vmatpush1.bf16.msra.mxu0 %v3560
        %3598 = vmatprep.subr.bf16.mxu0 0
        %3599 = vmatpush1.bf16.msra.mxu0 %v3561
        %3600 = vmatprep.subr.bf16.mxu0 0
        %3601 = vmatpush1.bf16.msra.mxu0 %v3562
        %3602 = vmatprep.subr.bf16.mxu0 0
        %3603 = vmatpush1.bf16.msra.mxu0 %v3563
        %3604 = vmatprep.subr.bf16.mxu0 0
        %3605 = vmatpush1.bf16.msra.mxu0 %v3564
        %3606 = vmatprep.subr.bf16.mxu0 0
        %3607 = vmatpush1.bf16.msra.mxu0 %v3565
        %3608 = vmatprep.subr.bf16.mxu0 0
        %3609 = vmatpush1.bf16.msra.mxu0 %v3566
        %3610 = vmatprep.subr.bf16.mxu0 0
        %3611 = vmatpush1.bf16.msra.mxu0 %v3567
        %3612 = vmatprep.subr.bf16.mxu0 0
        %3613 = vmatpush1.bf16.msra.mxu0 %v3568
        %3614 = vmatprep.subr.bf16.mxu0 0
        %3615 = vmatpush1.bf16.msra.mxu0 %v3569
        %3616 = vmatprep.subr.bf16.mxu0 0
        %3617 = vmatpush1.bf16.msra.mxu0 %v3570
        %3618 = vmatprep.subr.bf16.mxu0 0
        %3619 = vmatpush1.bf16.msra.mxu0 %v3571
        %3620 = vmatprep.mubr.bf16.mxu0 %v3438
        %3621 = vmatmul.mubr.bf16.gmra.mrb[0].mxu0 %v3437
        %v3622 = vpop.f32.mrb[0].mxu0
        %v3623 = vadd.f32 %v3490, %v3622
        %v3624 = vpop.f32.mrb[0].mxu0
        %v3625 = vpop.f32.mrb[0].mxu0
        %v3626 = vadd.f32 %v3490, %v3625
        %v3627 = vpop.f32.mrb[0].mxu0
        %3628 = vmatprep.mubr.bf16.mxu0 %v3440
        %3629 = vmatmul.mubr.bf16.gmra.mrb[0].mxu0 %v3439
        %v3630 = vpop.f32.mrb[0].mxu0
        %v3631 = vadd.f32 %v3490, %v3630
        %v3632 = vpop.f32.mrb[0].mxu0
        %v3633 = vpop.f32.mrb[0].mxu0
        %v3634 = vadd.f32 %v3490, %v3633
        %v3635 = vpop.f32.mrb[0].mxu0
        %3636 = vmatprep.mubr.bf16.mxu0 %v3442
        %3637 = vmatmul.mubr.bf16.gmra.mrb[0].mxu0 %v3441
        %v3638 = vpop.f32.mrb[0].mxu0
        %v3639 = vadd.f32 %v3490, %v3638
        %v3640 = vpop.f32.mrb[0].mxu0
        %v3641 = vpop.f32.mrb[0].mxu0
        %v3642 = vadd.f32 %v3490, %v3641
        %v3643 = vpop.f32.mrb[0].mxu0
        %3644 = vmatprep.mubr.bf16.mxu0 %v3444
        %3645 = vmatmul.mubr.bf16.gmra.mrb[0].mxu0 %v3443
        %v3646 = vpop.f32.mrb[0].mxu0
        %v3647 = vadd.f32 %v3490, %v3646
        %v3648 = vpop.f32.mrb[0].mxu0
        %v3649 = vpop.f32.mrb[0].mxu0
        %v3650 = vadd.f32 %v3490, %v3649
        %v3651 = vpop.f32.mrb[0].mxu0
        %3652 = vmatprep.mubr.bf16.mxu0 %v3446
        %3653 = vmatmul.mubr.bf16.gmra.mrb[0].mxu0 %v3445
        %v3654 = vpop.f32.mrb[0].mxu0
        %v3655 = vadd.f32 %v3490, %v3654
        %v3656 = vpop.f32.mrb[0].mxu0
        %v3657 = vpop.f32.mrb[0].mxu0
        %v3658 = vadd.f32 %v3490, %v3657
        %v3659 = vpop.f32.mrb[0].mxu0
        %3660 = vmatprep.mubr.bf16.mxu0 %v3448
        %3661 = vmatmul.mubr.bf16.gmra.mrb[0].mxu0 %v3447
        %v3662 = vpop.f32.mrb[0].mxu0
        %v3663 = vadd.f32 %v3490, %v3662
        %v3664 = vpop.f32.mrb[0].mxu0
        %v3665 = vpop.f32.mrb[0].mxu0
        %v3666 = vadd.f32 %v3490, %v3665
        %v3667 = vpop.f32.mrb[0].mxu0
        %3668 = vmatprep.mubr.bf16.mxu0 %v3450
        %3669 = vmatmul.mubr.bf16.gmra.mrb[0].mxu0 %v3449
        %v3670 = vpop.f32.mrb[0].mxu0
        %v3671 = vadd.f32 %v3490, %v3670
        %v3672 = vpop.f32.mrb[0].mxu0
        %v3673 = vpop.f32.mrb[0].mxu0
        %v3674 = vadd.f32 %v3490, %v3673
        %v3675 = vpop.f32.mrb[0].mxu0
        %3676 = vmatprep.mubr.bf16.mxu0 %v3452
        %3677 = vmatmul.mubr.bf16.gmra.mrb[0].mxu0 %v3451
        %v3678 = vpop.f32.mrb[0].mxu0
        %v3679 = vadd.f32 %v3490, %v3678
        %v3680 = vpop.f32.mrb[0].mxu0
        %v3681 = vpop.f32.mrb[0].mxu0
        %v3682 = vadd.f32 %v3490, %v3681
        %v3683 = vpop.f32.mrb[0].mxu0
        %3684 = vdwg.mxu0
        %v3685 = vmax.f32 %v3623, 0.0
        %v3686 = vmax.f32 %v3626, 0.0
        %v3687 = vmax.f32 %v3631, 0.0
        %v3688 = vmax.f32 %v3634, 0.0
        %v3689 = vmax.f32 %v3639, 0.0
        %v3690 = vmax.f32 %v3642, 0.0
        %v3691 = vmax.f32 %v3647, 0.0
        %v3692 = vmax.f32 %v3650, 0.0
        %v3693 = vmax.f32 %v3655, 0.0
        %v3694 = vmax.f32 %v3658, 0.0
        %v3695 = vmax.f32 %v3663, 0.0
        %v3696 = vmax.f32 %v3666, 0.0
        %v3697 = vmax.f32 %v3671, 0.0
        %v3698 = vmax.f32 %v3674, 0.0
        %v3699 = vmax.f32 %v3679, 0.0
        %v3700 = vmax.f32 %v3682, 0.0
        %v3701 = vpack.c.bf16 %v3686, %v3685
        %v3702 = vpack.c.bf16 %v3688, %v3687
        %v3703 = vpack.c.bf16 %v3690, %v3689
        %v3704 = vpack.c.bf16 %v3692, %v3691
        %v3705 = vpack.c.bf16 %v3694, %v3693
        %v3706 = vpack.c.bf16 %v3696, %v3695
        %v3707 = vpack.c.bf16 %v3698, %v3697
        %v3708 = vpack.c.bf16 %v3700, %v3699
        %v3709 = vld [vmem:[%s7] sm:$0xf]
        %v3710 = vld [vmem:[%s7 + $0x4] sm:$0xf]
        %v3711 = vld [vmem:[%s7 + $0x8] sm:$0xf]
        %v3712 = vld [vmem:[%s7 + $0xc] sm:$0xf]
        %v3713 = vld [vmem:[%s7 + $0x10] sm:$0xf]
        %v3714 = vld [vmem:[%s7 + $0x14] sm:$0xf]
        %v3715 = vld [vmem:[%s7 + $0x18] sm:$0xf]
        %v3716 = vld [vmem:[%s7 + $0x1c] sm:$0xf]
        %v3717 = vld [vmem:[%s7 + $0x20] sm:$0xf]
        %v3718 = vld [vmem:[%s7 + $0x24] sm:$0xf]
        %v3719 = vld [vmem:[%s7 + $0x28] sm:$0xf]
        %v3720 = vld [vmem:[%s7 + $0x2c] sm:$0xf]
        %v3721 = vld [vmem:[%s7 + $0x30] sm:$0xf]
        %v3722 = vld [vmem:[%s7 + $0x34] sm:$0xf]
        %v3723 = vld [vmem:[%s7 + $0x38] sm:$0xf]
        %v3724 = vld [vmem:[%s7 + $0x3c] sm:$0xf]
        %v3725 = vld [vmem:[%s8] sm:$0x1]
        %v3727 = vlaneseq
        %v3728 = vshrl.u32 %v3727, 7
        %v3729 = vsub.s32 0, %v3728
        %v3730 = vrot.slane %v3725, %v3729
        %v3748 = vunpack.c.l.b16 %v3709
        %v3749 = vunpack.c.l.b16 %v3710
        %v3750 = vunpack.c.l.b16 %v3711
        %v3751 = vunpack.c.l.b16 %v3712
        %v3752 = vunpack.c.l.b16 %v3713
        %v3753 = vunpack.c.l.b16 %v3714
        %v3754 = vunpack.c.l.b16 %v3715
        %v3755 = vunpack.c.l.b16 %v3716
        %v3756 = vunpack.c.l.b16 %v3717
        %v3757 = vunpack.c.l.b16 %v3718
        %v3758 = vunpack.c.l.b16 %v3719
        %v3759 = vunpack.c.l.b16 %v3720
        %v3760 = vunpack.c.l.b16 %v3721
        %v3761 = vunpack.c.l.b16 %v3722
        %v3762 = vunpack.c.l.b16 %v3723
        %v3763 = vunpack.c.l.b16 %v3724
        %v3764 = vpack.c.b16 %v3749, %v3748
        %v3765 = vpack.c.b16 %v3751, %v3750
        %v3766 = vpack.c.b16 %v3753, %v3752
        %v3767 = vpack.c.b16 %v3755, %v3754
        %v3768 = vpack.c.b16 %v3757, %v3756
        %v3769 = vpack.c.b16 %v3759, %v3758
        %v3770 = vpack.c.b16 %v3761, %v3760
        %v3771 = vpack.c.b16 %v3763, %v3762
        %3780 = vmatprep.subr.bf16.mxu0 0
        %3781 = vmatpush1.bf16.msra.mxu0 %v3764
        %3782 = vmatprep.subr.bf16.mxu0 0
        %3783 = vmatpush1.bf16.msra.mxu0 %v3765
        %3784 = vmatprep.subr.bf16.mxu0 0
        %3785 = vmatpush1.bf16.msra.mxu0 %v3766
        %3786 = vmatprep.subr.bf16.mxu0 0
        %3787 = vmatpush1.bf16.msra.mxu0 %v3767
        %3788 = vmatprep.subr.bf16.mxu0 0
        %3789 = vmatpush1.bf16.msra.mxu0 %v3768
        %3790 = vmatprep.subr.bf16.mxu0 0
        %3791 = vmatpush1.bf16.msra.mxu0 %v3769
        %3792 = vmatprep.subr.bf16.mxu0 0
        %3793 = vmatpush1.bf16.msra.mxu0 %v3770
        %3794 = vmatprep.subr.bf16.mxu0 0
        %3795 = vmatpush1.bf16.msra.mxu0 %v3771
        %3796 = vmatprep.subr.bf16.mxu0 0
        %3797 = vmatpush1.bf16.msra.mxu0 0
        %3798 = vmatprep.subr.bf16.mxu0 0
        %3799 = vmatpush1.bf16.msra.mxu0 0
        %3800 = vmatprep.subr.bf16.mxu0 0
        %3801 = vmatpush1.bf16.msra.mxu0 0
        %3802 = vmatprep.subr.bf16.mxu0 0
        %3803 = vmatpush1.bf16.msra.mxu0 0
        %3804 = vmatprep.subr.bf16.mxu0 0
        %3805 = vmatpush1.bf16.msra.mxu0 0
        %3806 = vmatprep.subr.bf16.mxu0 0
        %3807 = vmatpush1.bf16.msra.mxu0 0
        %3808 = vmatprep.subr.bf16.mxu0 0
        %3809 = vmatpush1.bf16.msra.mxu0 0
        %3810 = vmatprep.subr.bf16.mxu0 0
        %3811 = vmatpush1.bf16.msra.mxu0 0
        %3812 = vmatprep.mubr.bf16.mxu0 0
        %3813 = vmatmul.mubr.bf16.gmra.mrb[0].mxu0 %v3701
        %v3814 = vpop.f32.mrb[0].mxu0
        %v3815 = vadd.f32 %v3730, %v3814
        %v3816 = vpop.f32.mrb[0].mxu0
        %v3817 = vpop.f32.mrb[0].mxu0
        %v3818 = vadd.f32 %v3730, %v3817
        %v3819 = vpop.f32.mrb[0].mxu0
        %3820 = vmatprep.mubr.bf16.mxu0 0
        %3821 = vmatmul.mubr.bf16.gmra.mrb[0].mxu0 %v3702
        %v3822 = vpop.f32.mrb[0].mxu0
        %v3823 = vadd.f32 %v3730, %v3822
        %v3824 = vpop.f32.mrb[0].mxu0
        %v3825 = vpop.f32.mrb[0].mxu0
        %v3826 = vadd.f32 %v3730, %v3825
        %v3827 = vpop.f32.mrb[0].mxu0
        %3828 = vmatprep.mubr.bf16.mxu0 0
        %3829 = vmatmul.mubr.bf16.gmra.mrb[0].mxu0 %v3703
        %v3830 = vpop.f32.mrb[0].mxu0
        %v3831 = vadd.f32 %v3730, %v3830
        %v3832 = vpop.f32.mrb[0].mxu0
        %v3833 = vpop.f32.mrb[0].mxu0
        %v3834 = vadd.f32 %v3730, %v3833
        %v3835 = vpop.f32.mrb[0].mxu0
        %3836 = vmatprep.mubr.bf16.mxu0 0
        %3837 = vmatmul.mubr.bf16.gmra.mrb[0].mxu0 %v3704
        %v3838 = vpop.f32.mrb[0].mxu0
        %v3839 = vadd.f32 %v3730, %v3838
        %v3840 = vpop.f32.mrb[0].mxu0
        %v3841 = vpop.f32.mrb[0].mxu0
        %v3842 = vadd.f32 %v3730, %v3841
        %v3843 = vpop.f32.mrb[0].mxu0
        %3844 = vmatprep.mubr.bf16.mxu0 0
        %3845 = vmatmul.mubr.bf16.gmra.mrb[0].mxu0 %v3705
        %v3846 = vpop.f32.mrb[0].mxu0
        %v3847 = vadd.f32 %v3730, %v3846
        %v3848 = vpop.f32.mrb[0].mxu0
        %v3849 = vpop.f32.mrb[0].mxu0
        %v3850 = vadd.f32 %v3730, %v3849
        %v3851 = vpop.f32.mrb[0].mxu0
        %3852 = vmatprep.mubr.bf16.mxu0 0
        %3853 = vmatmul.mubr.bf16.gmra.mrb[0].mxu0 %v3706
        %v3854 = vpop.f32.mrb[0].mxu0
        %v3855 = vadd.f32 %v3730, %v3854
        %v3856 = vpop.f32.mrb[0].mxu0
        %v3857 = vpop.f32.mrb[0].mxu0
        %v3858 = vadd.f32 %v3730, %v3857
        %v3859 = vpop.f32.mrb[0].mxu0
        %3860 = vmatprep.mubr.bf16.mxu0 0
        %3861 = vmatmul.mubr.bf16.gmra.mrb[0].mxu0 %v3707
        %v3862 = vpop.f32.mrb[0].mxu0
        %v3863 = vadd.f32 %v3730, %v3862
        %v3864 = vpop.f32.mrb[0].mxu0
        %v3865 = vpop.f32.mrb[0].mxu0
        %v3866 = vadd.f32 %v3730, %v3865
        %v3867 = vpop.f32.mrb[0].mxu0
        %3868 = vmatprep.mubr.bf16.mxu0 0
        %3869 = vmatmul.mubr.bf16.gmra.mrb[0].mxu0 %v3708
        %v3870 = vpop.f32.mrb[0].mxu0
        %v3871 = vadd.f32 %v3730, %v3870
        %v3872 = vpop.f32.mrb[0].mxu0
        %v3873 = vpop.f32.mrb[0].mxu0
        %v3874 = vadd.f32 %v3730, %v3873
        %v3875 = vpop.f32.mrb[0].mxu0
        %3876 = vdwg.mxu0
        %v3877 = vmax.f32 %v3815, 0.0
        %v3878 = vmax.f32 %v3818, 0.0
        %v3879 = vmax.f32 %v3823, 0.0
        %v3880 = vmax.f32 %v3826, 0.0
        %v3881 = vmax.f32 %v3831, 0.0
        %v3882 = vmax.f32 %v3834, 0.0
        %v3883 = vmax.f32 %v3839, 0.0
        %v3884 = vmax.f32 %v3842, 0.0
        %v3885 = vmax.f32 %v3847, 0.0
        %v3886 = vmax.f32 %v3850, 0.0
        %v3887 = vmax.f32 %v3855, 0.0
        %v3888 = vmax.f32 %v3858, 0.0
        %v3889 = vmax.f32 %v3863, 0.0
        %v3890 = vmax.f32 %v3866, 0.0
        %v3891 = vmax.f32 %v3871, 0.0
        %v3892 = vmax.f32 %v3874, 0.0
        %v3893 = vpack.c.bf16 %v3878, %v3877
        %v3894 = vpack.c.bf16 %v3880, %v3879
        %v3895 = vpack.c.bf16 %v3882, %v3881
        %v3896 = vpack.c.bf16 %v3884, %v3883
        %v3897 = vpack.c.bf16 %v3886, %v3885
        %v3898 = vpack.c.bf16 %v3888, %v3887
        %v3899 = vpack.c.bf16 %v3890, %v3889
        %v3900 = vpack.c.bf16 %v3892, %v3891
        %v3901 = vld [vmem:[%s9] sm:$0xf]
        %v3902 = vld [vmem:[%s9 + $0x4] sm:$0xf]
        %v3903 = vld [vmem:[%s9 + $0x8] sm:$0xf]
        %v3904 = vld [vmem:[%s9 + $0xc] sm:$0xf]
        %v3905 = vld [vmem:[%s9 + $0x10] sm:$0xf]
        %v3906 = vld [vmem:[%s9 + $0x14] sm:$0xf]
        %v3907 = vld [vmem:[%s9 + $0x18] sm:$0xf]
        %v3908 = vld [vmem:[%s9 + $0x1c] sm:$0xf]
        %v3909 = vld [vmem:[%s9 + $0x20] sm:$0xf]
        %v3910 = vld [vmem:[%s9 + $0x24] sm:$0xf]
        %v3911 = vld [vmem:[%s9 + $0x28] sm:$0xf]
        %v3912 = vld [vmem:[%s9 + $0x2c] sm:$0xf]
        %v3913 = vld [vmem:[%s9 + $0x30] sm:$0xf]
        %v3914 = vld [vmem:[%s9 + $0x34] sm:$0xf]
        %v3915 = vld [vmem:[%s9 + $0x38] sm:$0xf]
        %v3916 = vld [vmem:[%s9 + $0x3c] sm:$0xf]
        %v3917 = vld [vmem:[%s10] sm:$0x1]
        %v3919 = vlaneseq
        %v3920 = vshrl.u32 %v3919, 7
        %v3921 = vsub.s32 0, %v3920
        %v3922 = vrot.slane %v3917, %v3921
        %v3940 = vunpack.c.l.b16 %v3901
        %v3941 = vunpack.c.l.b16 %v3902
        %v3942 = vunpack.c.l.b16 %v3903
        %v3943 = vunpack.c.l.b16 %v3904
        %v3944 = vunpack.c.l.b16 %v3905
        %v3945 = vunpack.c.l.b16 %v3906
        %v3946 = vunpack.c.l.b16 %v3907
        %v3947 = vunpack.c.l.b16 %v3908
        %v3948 = vunpack.c.l.b16 %v3909
        %v3949 = vunpack.c.l.b16 %v3910
        %v3950 = vunpack.c.l.b16 %v3911
        %v3951 = vunpack.c.l.b16 %v3912
        %v3952 = vunpack.c.l.b16 %v3913
        %v3953 = vunpack.c.l.b16 %v3914
        %v3954 = vunpack.c.l.b16 %v3915
        %v3955 = vunpack.c.l.b16 %v3916
        %v3956 = vpack.c.b16 %v3941, %v3940
        %v3957 = vpack.c.b16 %v3943, %v3942
        %v3958 = vpack.c.b16 %v3945, %v3944
        %v3959 = vpack.c.b16 %v3947, %v3946
        %v3960 = vpack.c.b16 %v3949, %v3948
        %v3961 = vpack.c.b16 %v3951, %v3950
        %v3962 = vpack.c.b16 %v3953, %v3952
        %v3963 = vpack.c.b16 %v3955, %v3954
        %3972 = vmatprep.subr.bf16.mxu0 0
        %3973 = vmatpush1.bf16.msra.mxu0 %v3956
        %3974 = vmatprep.subr.bf16.mxu0 0
        %3975 = vmatpush1.bf16.msra.mxu0 %v3957
        %3976 = vmatprep.subr.bf16.mxu0 0
        %3977 = vmatpush1.bf16.msra.mxu0 %v3958
        %3978 = vmatprep.subr.bf16.mxu0 0
        %3979 = vmatpush1.bf16.msra.mxu0 %v3959
        %3980 = vmatprep.subr.bf16.mxu0 0
        %3981 = vmatpush1.bf16.msra.mxu0 %v3960
        %3982 = vmatprep.subr.bf16.mxu0 0
        %3983 = vmatpush1.bf16.msra.mxu0 %v3961
        %3984 = vmatprep.subr.bf16.mxu0 0
        %3985 = vmatpush1.bf16.msra.mxu0 %v3962
        %3986 = vmatprep.subr.bf16.mxu0 0
        %3987 = vmatpush1.bf16.msra.mxu0 %v3963
        %3988 = vmatprep.subr.bf16.mxu0 0
        %3989 = vmatpush1.bf16.msra.mxu0 0
        %3990 = vmatprep.subr.bf16.mxu0 0
        %3991 = vmatpush1.bf16.msra.mxu0 0
        %3992 = vmatprep.subr.bf16.mxu0 0
        %3993 = vmatpush1.bf16.msra.mxu0 0
        %3994 = vmatprep.subr.bf16.mxu0 0
        %3995 = vmatpush1.bf16.msra.mxu0 0
        %3996 = vmatprep.subr.bf16.mxu0 0
        %3997 = vmatpush1.bf16.msra.mxu0 0
        %3998 = vmatprep.subr.bf16.mxu0 0
        %3999 = vmatpush1.bf16.msra.mxu0 0
        %4000 = vmatprep.subr.bf16.mxu0 0
        %4001 = vmatpush1.bf16.msra.mxu0 0
        %4002 = vmatprep.subr.bf16.mxu0 0
        %4003 = vmatpush1.bf16.msra.mxu0 0
        %4004 = vmatprep.mubr.bf16.mxu0 0
        %4005 = vmatmul.mubr.bf16.gmra.mrb[0].mxu0 %v3893
        %v4006 = vpop.f32.mrb[0].mxu0
        %v4007 = vadd.f32 %v3922, %v4006
        %v4008 = vpop.f32.mrb[0].mxu0
        %v4009 = vpop.f32.mrb[0].mxu0
        %v4010 = vadd.f32 %v3922, %v4009
        %v4011 = vpop.f32.mrb[0].mxu0
        %4012 = vmatprep.mubr.bf16.mxu0 0
        %4013 = vmatmul.mubr.bf16.gmra.mrb[0].mxu0 %v3894
        %v4014 = vpop.f32.mrb[0].mxu0
        %v4015 = vadd.f32 %v3922, %v4014
        %v4016 = vpop.f32.mrb[0].mxu0
        %v4017 = vpop.f32.mrb[0].mxu0
        %v4018 = vadd.f32 %v3922, %v4017
        %v4019 = vpop.f32.mrb[0].mxu0
        %4020 = vmatprep.mubr.bf16.mxu0 0
        %4021 = vmatmul.mubr.bf16.gmra.mrb[0].mxu0 %v3895
        %v4022 = vpop.f32.mrb[0].mxu0
        %v4023 = vadd.f32 %v3922, %v4022
        %v4024 = vpop.f32.mrb[0].mxu0
        %v4025 = vpop.f32.mrb[0].mxu0
        %v4026 = vadd.f32 %v3922, %v4025
        %v4027 = vpop.f32.mrb[0].mxu0
        %4028 = vmatprep.mubr.bf16.mxu0 0
        %4029 = vmatmul.mubr.bf16.gmra.mrb[0].mxu0 %v3896
        %v4030 = vpop.f32.mrb[0].mxu0
        %v4031 = vadd.f32 %v3922, %v4030
        %v4032 = vpop.f32.mrb[0].mxu0
        %v4033 = vpop.f32.mrb[0].mxu0
        %v4034 = vadd.f32 %v3922, %v4033
        %v4035 = vpop.f32.mrb[0].mxu0
        %4036 = vmatprep.mubr.bf16.mxu0 0
        %4037 = vmatmul.mubr.bf16.gmra.mrb[0].mxu0 %v3897
        %v4038 = vpop.f32.mrb[0].mxu0
        %v4039 = vadd.f32 %v3922, %v4038
        %v4040 = vpop.f32.mrb[0].mxu0
        %v4041 = vpop.f32.mrb[0].mxu0
        %v4042 = vadd.f32 %v3922, %v4041
        %v4043 = vpop.f32.mrb[0].mxu0
        %4044 = vmatprep.mubr.bf16.mxu0 0
        %4045 = vmatmul.mubr.bf16.gmra.mrb[0].mxu0 %v3898
        %v4046 = vpop.f32.mrb[0].mxu0
        %v4047 = vadd.f32 %v3922, %v4046
        %v4048 = vpop.f32.mrb[0].mxu0
        %v4049 = vpop.f32.mrb[0].mxu0
        %v4050 = vadd.f32 %v3922, %v4049
        %v4051 = vpop.f32.mrb[0].mxu0
        %4052 = vmatprep.mubr.bf16.mxu0 0
        %4053 = vmatmul.mubr.bf16.gmra.mrb[0].mxu0 %v3899
        %v4054 = vpop.f32.mrb[0].mxu0
        %v4055 = vadd.f32 %v3922, %v4054
        %v4056 = vpop.f32.mrb[0].mxu0
        %v4057 = vpop.f32.mrb[0].mxu0
        %v4058 = vadd.f32 %v3922, %v4057
        %v4059 = vpop.f32.mrb[0].mxu0
        %4060 = vmatprep.mubr.bf16.mxu0 0
        %4061 = vmatmul.mubr.bf16.gmra.mrb[0].mxu0 %v3900
        %v4062 = vpop.f32.mrb[0].mxu0
        %v4063 = vadd.f32 %v3922, %v4062
        %v4064 = vpop.f32.mrb[0].mxu0
        %v4065 = vpop.f32.mrb[0].mxu0
        %v4066 = vadd.f32 %v3922, %v4065
        %v4067 = vpop.f32.mrb[0].mxu0
        %4068 = vdwg.mxu0
        %4069 = vmax.xlane.f32.xlu0 %v4007
        %v4070 = vpop.xlane.xlu0 %4069
        %4071 = vmax.xlane.f32.xlu0 %v4010
        %v4072 = vpop.xlane.xlu0 %4071
        %4073 = vmax.xlane.f32.xlu0 %v4015
        %v4074 = vpop.xlane.xlu0 %4073
        %4075 = vmax.xlane.f32.xlu0 %v4018
        %v4076 = vpop.xlane.xlu0 %4075
        %4077 = vmax.xlane.f32.xlu0 %v4023
        %v4078 = vpop.xlane.xlu0 %4077
        %4079 = vmax.xlane.f32.xlu0 %v4026
        %v4080 = vpop.xlane.xlu0 %4079
        %4081 = vmax.xlane.f32.xlu0 %v4031
        %v4082 = vpop.xlane.xlu0 %4081
        %4083 = vmax.xlane.f32.xlu0 %v4034
        %v4084 = vpop.xlane.xlu0 %4083
        %4085 = vmax.xlane.f32.xlu0 %v4039
        %v4086 = vpop.xlane.xlu0 %4085
        %4087 = vmax.xlane.f32.xlu0 %v4042
        %v4088 = vpop.xlane.xlu0 %4087
        %4089 = vmax.xlane.f32.xlu0 %v4047
        %v4090 = vpop.xlane.xlu0 %4089
        %4091 = vmax.xlane.f32.xlu0 %v4050
        %v4092 = vpop.xlane.xlu0 %4091
        %4093 = vmax.xlane.f32.xlu0 %v4055
        %v4094 = vpop.xlane.xlu0 %4093
        %4095 = vmax.xlane.f32.xlu0 %v4058
        %v4096 = vpop.xlane.xlu0 %4095
        %4097 = vmax.xlane.f32.xlu0 %v4063
        %v4098 = vpop.xlane.xlu0 %4097
        %4099 = vmax.xlane.f32.xlu0 %v4066
        %v4100 = vpop.xlane.xlu0 %4099
        %v4101 = vsub.f32 %v4007, %v4070
        %v4102 = vsub.f32 %v4010, %v4072
        %v4103 = vsub.f32 %v4015, %v4074
        %v4104 = vsub.f32 %v4018, %v4076
        %v4105 = vsub.f32 %v4023, %v4078
        %v4106 = vsub.f32 %v4026, %v4080
        %v4107 = vsub.f32 %v4031, %v4082
        %v4108 = vsub.f32 %v4034, %v4084
        %v4109 = vsub.f32 %v4039, %v4086
        %v4110 = vsub.f32 %v4042, %v4088
        %v4111 = vsub.f32 %v4047, %v4090
        %v4112 = vsub.f32 %v4050, %v4092
        %v4113 = vsub.f32 %v4055, %v4094
        %v4114 = vsub.f32 %v4058, %v4096
        %v4115 = vsub.f32 %v4063, %v4098
        %v4116 = vsub.f32 %v4066, %v4100
        %v4117 = vmul.f32 %v4101, 1.442695
        %v4118 = vpow.pop %v4117
        %v4119 = vmul.f32 %v4102, 1.442695
        %v4120 = vpow.pop %v4119
        %v4121 = vmul.f32 %v4103, 1.442695
        %v4122 = vpow.pop %v4121
        %v4123 = vmul.f32 %v4104, 1.442695
        %v4124 = vpow.pop %v4123
        %v4125 = vmul.f32 %v4105, 1.442695
        %v4126 = vpow.pop %v4125
        %v4127 = vmul.f32 %v4106, 1.442695
        %v4128 = vpow.pop %v4127
        %v4129 = vmul.f32 %v4107, 1.442695
        %v4130 = vpow.pop %v4129
        %v4131 = vmul.f32 %v4108, 1.442695
        %v4132 = vpow.pop %v4131
        %v4133 = vmul.f32 %v4109, 1.442695
        %v4134 = vpow.pop %v4133
        %v4135 = vmul.f32 %v4110, 1.442695
        %v4136 = vpow.pop %v4135
        %v4137 = vmul.f32 %v4111, 1.442695
        %v4138 = vpow.pop %v4137
        %v4139 = vmul.f32 %v4112, 1.442695
        %v4140 = vpow.pop %v4139
        %v4141 = vmul.f32 %v4113, 1.442695
        %v4142 = vpow.pop %v4141
        %v4143 = vmul.f32 %v4114, 1.442695
        %v4144 = vpow.pop %v4143
        %v4145 = vmul.f32 %v4115, 1.442695
        %v4146 = vpow.pop %v4145
        %v4147 = vmul.f32 %v4116, 1.442695
        %v4148 = vpow.pop %v4147
        %4149 = vadd.xlane.f32.xlu0 %v4118
        %v4150 = vpop.xlane.xlu0 %4149
        %4151 = vadd.xlane.f32.xlu0 %v4120
        %v4152 = vpop.xlane.xlu0 %4151
        %4153 = vadd.xlane.f32.xlu0 %v4122
        %v4154 = vpop.xlane.xlu0 %4153
        %4155 = vadd.xlane.f32.xlu0 %v4124
        %v4156 = vpop.xlane.xlu0 %4155
        %4157 = vadd.xlane.f32.xlu0 %v4126
        %v4158 = vpop.xlane.xlu0 %4157
        %4159 = vadd.xlane.f32.xlu0 %v4128
        %v4160 = vpop.xlane.xlu0 %4159
        %4161 = vadd.xlane.f32.xlu0 %v4130
        %v4162 = vpop.xlane.xlu0 %4161
        %4163 = vadd.xlane.f32.xlu0 %v4132
        %v4164 = vpop.xlane.xlu0 %4163
        %4165 = vadd.xlane.f32.xlu0 %v4134
        %v4166 = vpop.xlane.xlu0 %4165
        %4167 = vadd.xlane.f32.xlu0 %v4136
        %v4168 = vpop.xlane.xlu0 %4167
        %4169 = vadd.xlane.f32.xlu0 %v4138
        %v4170 = vpop.xlane.xlu0 %4169
        %4171 = vadd.xlane.f32.xlu0 %v4140
        %v4172 = vpop.xlane.xlu0 %4171
        %4173 = vadd.xlane.f32.xlu0 %v4142
        %v4174 = vpop.xlane.xlu0 %4173
        %4175 = vadd.xlane.f32.xlu0 %v4144
        %v4176 = vpop.xlane.xlu0 %4175
        %4177 = vadd.xlane.f32.xlu0 %v4146
        %v4178 = vpop.xlane.xlu0 %4177
        %4179 = vadd.xlane.f32.xlu0 %v4148
        %v4180 = vpop.xlane.xlu0 %4179
        %v4181 = vlog2.pop %v4150
        %v4182 = vmul.f32 %v4181, 0.6931472
        %v4183 = vlog2.pop %v4152
        %v4184 = vmul.f32 %v4183, 0.6931472
        %v4185 = vlog2.pop %v4154
        %v4186 = vmul.f32 %v4185, 0.6931472
        %v4187 = vlog2.pop %v4156
        %v4188 = vmul.f32 %v4187, 0.6931472
        %v4189 = vlog2.pop %v4158
        %v4190 = vmul.f32 %v4189, 0.6931472
        %v4191 = vlog2.pop %v4160
        %v4192 = vmul.f32 %v4191, 0.6931472
        %v4193 = vlog2.pop %v4162
        %v4194 = vmul.f32 %v4193, 0.6931472
        %v4195 = vlog2.pop %v4164
        %v4196 = vmul.f32 %v4195, 0.6931472
        %v4197 = vlog2.pop %v4166
        %v4198 = vmul.f32 %v4197, 0.6931472
        %v4199 = vlog2.pop %v4168
        %v4200 = vmul.f32 %v4199, 0.6931472
        %v4201 = vlog2.pop %v4170
        %v4202 = vmul.f32 %v4201, 0.6931472
        %v4203 = vlog2.pop %v4172
        %v4204 = vmul.f32 %v4203, 0.6931472
        %v4205 = vlog2.pop %v4174
        %v4206 = vmul.f32 %v4205, 0.6931472
        %v4207 = vlog2.pop %v4176
        %v4208 = vmul.f32 %v4207, 0.6931472
        %v4209 = vlog2.pop %v4178
        %v4210 = vmul.f32 %v4209, 0.6931472
        %v4211 = vlog2.pop %v4180
        %v4212 = vmul.f32 %v4211, 0.6931472
        %v4213 = vadd.f32 %v4070, %v4182
        %v4214 = vadd.f32 %v4072, %v4184
        %v4215 = vadd.f32 %v4074, %v4186
        %v4216 = vadd.f32 %v4076, %v4188
        %v4217 = vadd.f32 %v4078, %v4190
        %v4218 = vadd.f32 %v4080, %v4192
        %v4219 = vadd.f32 %v4082, %v4194
        %v4220 = vadd.f32 %v4084, %v4196
        %v4221 = vadd.f32 %v4086, %v4198
        %v4222 = vadd.f32 %v4088, %v4200
        %v4223 = vadd.f32 %v4090, %v4202
        %v4224 = vadd.f32 %v4092, %v4204
        %v4225 = vadd.f32 %v4094, %v4206
        %v4226 = vadd.f32 %v4096, %v4208
        %v4227 = vadd.f32 %v4098, %v4210
        %v4228 = vadd.f32 %v4100, %v4212
        %v4229 = vsub.f32 %v4007, %v4213
        %v4230 = vsub.f32 %v4010, %v4214
        %v4231 = vsub.f32 %v4015, %v4215
        %v4232 = vsub.f32 %v4018, %v4216
        %v4233 = vsub.f32 %v4023, %v4217
        %v4234 = vsub.f32 %v4026, %v4218
        %v4235 = vsub.f32 %v4031, %v4219
        %v4236 = vsub.f32 %v4034, %v4220
        %v4237 = vsub.f32 %v4039, %v4221
        %v4238 = vsub.f32 %v4042, %v4222
        %v4239 = vsub.f32 %v4047, %v4223
        %v4240 = vsub.f32 %v4050, %v4224
        %v4241 = vsub.f32 %v4055, %v4225
        %v4242 = vsub.f32 %v4058, %v4226
        %v4243 = vsub.f32 %v4063, %v4227
        %v4244 = vsub.f32 %v4066, %v4228
        %4245 = vst [vmem:[%s382] sm:$0xff] %v4229
        %4246 = vst [vmem:[%s382 + $0x8] sm:$0xff] %v4230
        %4247 = vst [vmem:[%s382 + $0x10] sm:$0xff] %v4231
        %4248 = vst [vmem:[%s382 + $0x18] sm:$0xff] %v4232
        %4249 = vst [vmem:[%s382 + $0x20] sm:$0xff] %v4233
        %4250 = vst [vmem:[%s382 + $0x28] sm:$0xff] %v4234
        %4251 = vst [vmem:[%s382 + $0x30] sm:$0xff] %v4235
        %4252 = vst [vmem:[%s382 + $0x38] sm:$0xff] %v4236
        %4253 = vst [vmem:[%s382 + $0x40] sm:$0xff] %v4237
        %4254 = vst [vmem:[%s382 + $0x48] sm:$0xff] %v4238
        %4255 = vst [vmem:[%s382 + $0x50] sm:$0xff] %v4239
        %4256 = vst [vmem:[%s382 + $0x58] sm:$0xff] %v4240
        %4257 = vst [vmem:[%s382 + $0x60] sm:$0xff] %v4241
        %4258 = vst [vmem:[%s382 + $0x68] sm:$0xff] %v4242
        %4259 = vst [vmem:[%s382 + $0x70] sm:$0xff] %v4243
        %4260 = vst [vmem:[%s382 + $0x78] sm:$0xff] %v4244
        %s4261 = sand.u32 %s269, 1
        %s4262 = scalar_lea.sflag [#allocation3], %s4261
        %s4263 = sand.u32 %s269, 1
        %s4264 = smul.addr %s4263, 128
        %s4265 = scalar_lea.vmem [#allocation2], %s4264
        // Predicated region
        $region65: #{tpu_custom_call.1} parent=63 // pred_check
          %p4266 = pneg %p279
        $region66: #{tpu_custom_call.1} parent=63 // pred_check_branch
          %4268 = sbr.rel (%p4266) target = $region68
        $region67: #{tpu_custom_call.1} parent=63 // pred_region
          %s4269 = smul.u32 16, %s25
          %s4271 = ssub.s32 2048, 2048
          %4272 = vsyncadd %s4262, %s4271
          %s4273 = smul.addr %s4269, 128
          %s4274 = scalar_lea.hbm %s11, %s4273
          %s4275 = sshll.u32 %s4265, 4
          %s4276 = int_to_ptr.vmem [resolvable:$true] %s4275
          %4281 = dma.vmem_to_hbm [thread:$0]  %s4276, 2048, %s4274, %s4262, 128, 128, 8
        $region68: #{tpu_custom_call.1} parent=63 // pred_fallthru
          _
      $region64: #{tpu_custom_call.1} parent=5 // pred_fallthru
        _
      %p4282 = scmp.le.s32.totalorder 2, %s20
      // Predicated region
      $region69: #{tpu_custom_call.1} parent=5 // pred_check
        %p4283 = pneg %p4282
      $region70: #{tpu_custom_call.1} parent=5 // pred_check_branch
        %4285 = sbr.rel (%p4283) target = $region72
      $region71: #{tpu_custom_call.1} parent=5 // pred_region
        %s4286 = ssub.s32 %s20, 2
        // Predicated region
        $region73: #{tpu_custom_call.1} parent=71 // pred_check
          %p4287 = pneg %p285
        $region74: #{tpu_custom_call.1} parent=71 // pred_check_branch
          %4289 = sbr.rel (%p4287) target = $region76
        $region75: #{tpu_custom_call.1} parent=71 // pred_region
          %s4290 = sand.u32 %s270, 1
          %s4291 = scalar_lea.sflag [#allocation3], %s4290
          %s4292 = sand.u32 %s270, 1
          %s4293 = smul.addr %s4292, 128
          %s4294 = scalar_lea.vmem [#allocation2], %s4293
          %4295 = dma.done %s4291, 2048
        $region76: #{tpu_custom_call.1} parent=71 // pred_fallthru
          _
      $region72: #{tpu_custom_call.1} parent=5 // pred_fallthru
        _
    $region6: #{tpu_custom_call.1} parent=1 // loop_footer
      %s24 = sadd.s32 1, %s20
    $region7: #{tpu_custom_call.1} parent=1 // loop_footer_branch
      %19 = sbr.rel target = $region3
    $region8: #{tpu_custom_call.1} parent=1 // loop_exit
      _
    %4296 = vsyncpa [#allocation3], 1
    %s4297 = scalar_lea.sflag [#allocation3], 1
    %4298 = vsyncpa %s4297, 1

</llo_original>
